<compile_context>
chip_gen: v6e
topology: v6e:2x2x1
jax: 0.10.0
libtpu: 0.0.40
codegen_flags: <defaults>
</compile_context>

<pallas_src>
import numpy as np
import jax
import jax.numpy as jnp
from jax.experimental import pallas as pl
from jax.experimental.pallas import tpu as pltpu


# ----------------------------------------------------------------------------
# Architecture constants
# ----------------------------------------------------------------------------
LATENT = 32
IN_SHAPE = (1, 16, 16)          # (C, H, W)
ENC_CH = (16, 32)
MADE_HIDDEN = (64, 64)
NUM_DIST_PARAMS = 2
NUM_MIX = 1

C_IN, H_IN, W_IN = IN_SHAPE
H2, W2 = H_IN // 2, W_IN // 2                   # after conv1 (stride 2)
H4, W4 = H_IN // 4, W_IN // 4                   # after conv2
D_IN = C_IN * H_IN * W_IN                       # 256   flat input
D_C1 = ENC_CH[0] * H2 * W2                      # 1024  conv1 out
D_C2 = ENC_CH[1] * H4 * W4                      # 512   conv2 out / dec_fc out
D_D1 = ENC_CH[0] * H2 * W2                      # 1024  deconv1 out
D_IMG = C_IN * H_IN * W_IN                      # 256   image out
MH1, MH2 = MADE_HIDDEN
NOUT = LATENT * NUM_DIST_PARAMS * NUM_MIX       # 64

# Packed weight-slab layout (row offsets; mirrored/asserted by init_params).
W1024_W, W512_W, W256_W, W64_W = 1024, 512, 256, 64
R_CONV1, R_DECONV1 = 0, D_IN                    # slab "w1024": 768 rows
N_W1024 = D_IN + D_C2
R_CONV2, R_DECFC = 0, D_C1                      # slab "w512" : 1056 rows
N_W512 = D_C1 + LATENT
R_DECONV2 = 0                                   # slab "w256" : 1024 rows
N_W256 = D_D1
R_ENCFC, R_MADE1 = 0, D_C2                      # slab "w64"  : 672 rows
R_MADE2 = R_MADE1 + LATENT
R_MADE3 = R_MADE2 + MH1
N_W64 = R_MADE3 + MH2

# Bias slab: one layer per row, width 1024 (f32).
(B_CONV1, B_CONV2, B_ENCFC, B_DECFC, B_DECONV1,
 B_DECONV2, B_MADE1, B_MADE2, B_MADE3) = range(9)
N_BIAS_ROWS = 9


# ----------------------------------------------------------------------------
# Fused Pallas kernel: the whole DRMADE forward on one batch tile.
# 9 MXU matmuls (bf16 operands, f32 accumulation); intermediates in VMEM/vregs.
# ----------------------------------------------------------------------------
def _drmade_fused_kernel(x_ref, w1024_ref, w512_ref, w256_ref, w64_ref, b_ref,
                         made_ref, feat_ref, img_ref):
    f32, bf16 = jnp.float32, jnp.bfloat16

    def dot(a, w):
        return jnp.dot(a, w, preferred_element_type=f32)

    def leaky(v):
        return jnp.where(v >= 0, v, 0.01 * v)

    x = x_ref[...]                                                   # (tb, 256) bf16

    # ---- Encoder: conv1 -> conv2 (matricized) -> enc_fc -> tanh
    h = leaky(dot(x, w1024_ref[R_CONV1:R_CONV1 + D_IN, :])
              + b_ref[B_CONV1:B_CONV1 + 1, :D_C1]).astype(bf16)      # (tb, 1024)
    h = leaky(dot(h, w512_ref[R_CONV2:R_CONV2 + D_C1, :])
              + b_ref[B_CONV2:B_CONV2 + 1, :D_C2]).astype(bf16)      # (tb, 512)
    feat = jnp.tanh(dot(h, w64_ref[R_ENCFC:R_ENCFC + D_C2, :LATENT])
                    + b_ref[B_ENCFC:B_ENCFC + 1, :LATENT])           # (tb, 32) f32
    feat_ref[...] = feat
    fb = feat.astype(bf16)

    # ---- Decoder: dec_fc -> deconv1 -> deconv2 (matricized) -> sigmoid
    d = leaky(dot(fb, w512_ref[R_DECFC:R_DECFC + LATENT, :])
              + b_ref[B_DECFC:B_DECFC + 1, :D_C2]).astype(bf16)      # (tb, 512)
    d = leaky(dot(d, w1024_ref[R_DECONV1:R_DECONV1 + D_C2, :])
              + b_ref[B_DECONV1:B_DECONV1 + 1, :D_D1]).astype(bf16)  # (tb, 1024)
    img_ref[...] = jax.nn.sigmoid(
        dot(d, w256_ref[R_DECONV2:R_DECONV2 + D_D1, :])
        + b_ref[B_DECONV2:B_DECONV2 + 1, :D_IMG])                    # (tb, 256) f32

    # ---- MADE head (autoregressive masks folded into the weights at init)
    m = jnp.maximum(dot(fb, w64_ref[R_MADE1:R_MADE1 + LATENT, :MH1])
                    + b_ref[B_MADE1:B_MADE1 + 1, :MH1], 0.0).astype(bf16)
    m = jnp.maximum(dot(m, w64_ref[R_MADE2:R_MADE2 + MH1, :MH2])
                    + b_ref[B_MADE2:B_MADE2 + 1, :MH2], 0.0).astype(bf16)
    made_ref[...] = (dot(m, w64_ref[R_MADE3:R_MADE3 + MH2, :NOUT])
                     + b_ref[B_MADE3:B_MADE3 + 1, :NOUT])            # (tb, 64) f32


def drmade_forward(params, x, *, tile_b=128):
    """DRMADE forward.  Returns (output, features, output_image) like the
    PyTorch module, computed by a single fused pallas_call gridded over batch.
    tile_b is the per-program batch tile (raise on v6e/v5e for huge batches;
    128 keeps >=2 grid programs -- i.e. both v7x TensorCores -- once B >= 256)."""
    B = x.shape[0]
    x_flat = x.reshape(B, D_IN).astype(jnp.bfloat16)   # NCHW flatten (torch order)

    tb = max(1, min(tile_b, B))
    n_tiles = (B + tb - 1) // tb
    Bp = n_tiles * tb
    if Bp != B:
        x_flat = jnp.pad(x_flat, ((0, Bp - B), (0, 0)))

    made, feat, img = pl.pallas_call(
        _drmade_fused_kernel,
        out_shape=(jax.ShapeDtypeStruct((Bp, NOUT), jnp.float32),
                   jax.ShapeDtypeStruct((Bp, LATENT), jnp.float32),
                   jax.ShapeDtypeStruct((Bp, D_IMG), jnp.float32)),
        grid=(n_tiles,),
        in_specs=[
            pl.BlockSpec((tb, D_IN), lambda i: (i, 0)),
            # Weight/bias slabs: constant index_map -> DMA'd once, VMEM-resident.
            pl.BlockSpec((N_W1024, W1024_W), lambda i: (0, 0)),
            pl.BlockSpec((N_W512, W512_W), lambda i: (0, 0)),
            pl.BlockSpec((N_W256, W256_W), lambda i: (0, 0)),
            pl.BlockSpec((N_W64, W64_W), lambda i: (0, 0)),
            pl.BlockSpec((N_BIAS_ROWS, 1024), lambda i: (0, 0)),
        ],
        out_specs=(pl.BlockSpec((tb, NOUT), lambda i: (i, 0)),
                   pl.BlockSpec((tb, LATENT), lambda i: (i, 0)),
                   pl.BlockSpec((tb, D_IMG), lambda i: (i, 0))),
        compiler_params=pltpu.CompilerParams(
            dimension_semantics=("parallel",),
            vmem_limit_bytes=32 * 1024 * 1024),
    )(x_flat, params["w1024"], params["w512"], params["w256"],
      params["w64"], params["bias"])

    if Bp != B:
        made, feat, img = made[:B], feat[:B], img[:B]
    return made, feat, img.reshape(B, C_IN, H_IN, W_IN)


# ----------------------------------------------------------------------------
# Init-time "matricization" of conv / transposed-conv layers (numpy, once).
# Flatten order is NCHW (channel-major), matching torch.flatten of activations.
# ----------------------------------------------------------------------------
def _conv2d_as_matrix(w_oihw, H, W, stride, pad):
    """nn.Conv2d(weight (O,I,kh,kw), stride, pad) as a dense (I*H*W, O*Ho*Wo)
    matrix M so that flat_out = flat_in @ M (zero-padding folded in)."""
    w = np.asarray(w_oihw, np.float32)
    outC, inC, kh, kw = w.shape
    Ho = (H + 2 * pad - kh) // stride + 1
    Wo = (W + 2 * pad - kw) // stride + 1
    mat = np.zeros((inC * H * W, outC * Ho * Wo), np.float32)
    ci, co = np.arange(inC), np.arange(outC)
    for m in range(Ho):
        for n in range(Wo):
            for ky in range(kh):
                iy = m * stride - pad + ky
                if not 0 <= iy < H:
                    continue
                for kx in range(kw):
                    ix = n * stride - pad + kx
                    if not 0 <= ix < W:
                        continue
                    rows = ci * (H * W) + iy * W + ix
                    cols = co * (Ho * Wo) + m * Wo + n
                    mat[np.ix_(rows, cols)] += w[:, :, ky, kx].T
    return mat


def _convtranspose2d_as_matrix(w_iokk, H, W, stride, pad):
    """nn.ConvTranspose2d(weight (I,O,kh,kw), stride, pad) as a dense
    (I*H*W, O*Ho*Wo) matrix.  Exact by construction: ConvTranspose2d is the
    adjoint of the Conv2d that shares the same weight tensor, so the matrix is
    the transpose of that conv's matrix on the (larger) output grid."""
    inC, outC, kh, kw = w_iokk.shape
    Ho = (H - 1) * stride - 2 * pad + kh
    Wo = (W - 1) * stride - 2 * pad + kw
    mc = _conv2d_as_matrix(w_iokk, Ho, Wo, stride, pad)   # (O*Ho*Wo, I*H*W)
    assert mc.shape == (outC * Ho * Wo, inC * H * W)
    return mc.T                                           # (I*H*W, O*Ho*Wo)


def _made_masks(nin, hidden, nout):
    degrees = [np.arange(nin)]
    for h in hidden:
        degrees.append(np.arange(h) % max(1, nin - 1))
    masks = [(degrees[l][:, None] <= degrees[l + 1][None, :]).astype(np.float32)
             for l in range(len(hidden))]
    out_mask = (degrees[-1][:, None] < degrees[0][None, :]).astype(np.float32)
    masks.append(np.concatenate([out_mask] * (nout // nin), axis=1))
    return masks


def init_params(key):
    ks = iter(jax.random.split(key, 18))

    def nrm(shape, fan_in):
        return np.asarray(jax.random.normal(next(ks), shape, jnp.float32)) \
            * np.sqrt(2.0 / fan_in)

    def bias(n):
        return np.asarray(jax.random.normal(next(ks), (n,), jnp.float32)) * 0.1

    raw = {
        "conv1_w": nrm((ENC_CH[0], C_IN, 5, 5), C_IN * 25), "conv1_b": bias(ENC_CH[0]),
        "conv2_w": nrm((ENC_CH[1], ENC_CH[0], 5, 5), ENC_CH[0] * 25), "conv2_b": bias(ENC_CH[1]),
        "enc_fc_w": nrm((D_C2, LATENT), D_C2), "enc_fc_b": bias(LATENT),
        "dec_fc_w": nrm((LATENT, D_C2), LATENT), "dec_fc_b": bias(D_C2),
        "deconv1_w": nrm((ENC_CH[1], ENC_CH[0], 4, 4), ENC_CH[1] * 4), "deconv1_b": bias(ENC_CH[0]),
        "deconv2_w": nrm((ENC_CH[0], C_IN, 4, 4), ENC_CH[0] * 4), "deconv2_b": bias(C_IN),
        "made_w1": nrm((LATENT, MH1), LATENT), "made_b1": bias(MH1),
        "made_w2": nrm((MH1, MH2), MH1), "made_b2": bias(MH2),
        "made_w3": nrm((MH2, NOUT), MH2), "made_b3": bias(NOUT),
    }
    m1, m2, m3 = _made_masks(LATENT, list(MADE_HIDDEN), NOUT)
    raw["m1"], raw["m2"], raw["m3"] = m1, m2, m3

    # Matricized conv / deconv weights (NCHW flatten order).
    conv1_m = _conv2d_as_matrix(raw["conv1_w"], H_IN, W_IN, 2, 2)           # (256, 1024)
    conv2_m = _conv2d_as_matrix(raw["conv2_w"], H2, W2, 2, 2)               # (1024, 512)
    deconv1_m = _convtranspose2d_as_matrix(raw["deconv1_w"], H4, W4, 2, 1)  # (512, 1024)
    deconv2_m = _convtranspose2d_as_matrix(raw["deconv2_w"], H2, W2, 2, 1)  # (1024, 256)

    def pack(mats, width, offsets, rows):
        slab = np.zeros((rows, width), np.float32)
        r = 0
        for mat, off in zip(mats, offsets):
            assert r == off and mat.shape[1] <= width
            slab[r:r + mat.shape[0], :mat.shape[1]] = mat
            r += mat.shape[0]
        assert r == rows
        return jnp.asarray(slab, jnp.bfloat16)

    w1024 = pack([conv1_m, deconv1_m], W1024_W, (R_CONV1, R_DECONV1), N_W1024)
    w512 = pack([conv2_m, raw["dec_fc_w"]], W512_W, (R_CONV2, R_DECFC), N_W512)
    w256 = pack([deconv2_m], W256_W, (R_DECONV2,), N_W256)
    w64 = pack([raw["enc_fc_w"], raw["made_w1"] * m1,
                raw["made_w2"] * m2, raw["made_w3"] * m3],
               W64_W, (R_ENCFC, R_MADE1, R_MADE2, R_MADE3), N_W64)

    bias_slab = np.zeros((N_BIAS_ROWS, 1024), np.float32)
    bias_slab[B_CONV1, :D_C1] = np.repeat(raw["conv1_b"], H2 * W2)
    bias_slab[B_CONV2, :D_C2] = np.repeat(raw["conv2_b"], H4 * W4)
    bias_slab[B_ENCFC, :LATENT] = raw["enc_fc_b"]
    bias_slab[B_DECFC, :D_C2] = raw["dec_fc_b"]
    bias_slab[B_DECONV1, :D_D1] = np.repeat(raw["deconv1_b"], H2 * W2)
    bias_slab[B_DECONV2, :D_IMG] = np.repeat(raw["deconv2_b"], H_IN * W_IN)
    bias_slab[B_MADE1, :MH1] = raw["made_b1"]
    bias_slab[B_MADE2, :MH2] = raw["made_b2"]
    bias_slab[B_MADE3, :NOUT] = raw["made_b3"]

    params = {"w1024": w1024, "w512": w512, "w256": w256, "w64": w64,
              "bias": jnp.asarray(bias_slab)}
    return params, raw


# ----------------------------------------------------------------------------
# Pure-XLA f32 reference (independent of the matricization) for validation.
# ----------------------------------------------------------------------------
def _convtranspose2d_ref(x, w, stride, pad):
    """nn.ConvTranspose2d(x; w) (no bias) via the VJP of the paired Conv2d."""
    cin, cout, k, _ = w.shape
    B, _, H, W = x.shape
    Ho = (H - 1) * stride - 2 * pad + k
    Wo = (W - 1) * stride - 2 * pad + k

    def paired_conv(y):
        return jax.lax.conv_general_dilated(
            y, w, window_strides=(stride, stride),
            padding=((pad, pad), (pad, pad)),
            dimension_numbers=("NCHW", "OIHW", "NCHW"))

    _, vjp = jax.vjp(paired_conv, jnp.zeros((B, cout, Ho, Wo), x.dtype))
    return vjp(x)[0]


def drmade_forward_ref(raw, x):
    lrelu = lambda v: jnp.where(v >= 0, v, 0.01 * v)
    conv = lambda h, w, p: jax.lax.conv_general_dilated(
        h, jnp.asarray(w), (2, 2), ((p, p), (p, p)),
        dimension_numbers=("NCHW", "OIHW", "NCHW"))

    h = lrelu(conv(x, raw["conv1_w"], 2) + raw["conv1_b"][None, :, None, None])
    h = lrelu(conv(h, raw["conv2_w"], 2) + raw["conv2_b"][None, :, None, None])
    feat = jnp.tanh(h.reshape(h.shape[0], -1) @ raw["enc_fc_w"] + raw["enc_fc_b"])

    d = lrelu(feat @ raw["dec_fc_w"] + raw["dec_fc_b"])
    d = d.reshape(-1, ENC_CH[1], H4, W4)
    d = lrelu(_convtranspose2d_ref(d, jnp.asarray(raw["deconv1_w"]), 2, 1)
              + raw["deconv1_b"][None, :, None, None])
    img = jax.nn.sigmoid(_convtranspose2d_ref(d, jnp.asarray(raw["deconv2_w"]), 2, 1)
                         + raw["deconv2_b"][None, :, None, None])

    m = jnp.maximum(feat @ (raw["made_w1"] * raw["m1"]) + raw["made_b1"], 0.0)
    m = jnp.maximum(m @ (raw["made_w2"] * raw["m2"]) + raw["made_b2"], 0.0)
    out = m @ (raw["made_w3"] * raw["m3"]) + raw["made_b3"]
    return out, feat, img


# ----------------------------------------------------------------------------
if __name__ == "__main__":
    key = jax.random.PRNGKey(0)
    k_params, k_x = jax.random.split(key)
    params, raw = init_params(k_params)

    B = 2
    x = jax.random.uniform(k_x, (B,) + IN_SHAPE, dtype=jnp.float32)   # NCHW input

    fwd = jax.jit(drmade_forward)
    output, features, output_image = fwd(params, x)
    jax.block_until_ready((output, features, output_image))

    assert output.shape == (B, NOUT)
    assert features.shape == (B, LATENT)
    assert output_image.shape == (B,) + IN_SHAPE
    assert bool(jnp.all((output_image >= 0.0) & (output_image <= 1.0)))

    # End-to-end numerical cross-check against the pure-XLA f32 reference
    # (covers conv/deconv matricization, slab offsets, biases, MADE masks,
    # activations and output layout; tolerance covers the bf16 kernel path).
    ref_out, ref_feat, ref_img = jax.jit(drmade_forward_ref)(raw, x)
    np.testing.assert_allclose(np.asarray(features), np.asarray(ref_feat),
                               rtol=5e-2, atol=3e-2)
    np.testing.assert_allclose(np.asarray(output), np.asarray(ref_out),
                               rtol=5e-2, atol=3e-2)
    np.testing.assert_allclose(np.asarray(output_image), np.asarray(ref_img),
                               rtol=5e-2, atol=3e-2)

    print("KERNEL_OK")
</pallas_src>

<mosaic_0001>
module attributes {stable_mosaic.version = 11 : i64} {
  func.func @_drmade_fused_kernel(%arg0: i32, %arg1: memref<2x256xbf16, #tpu.memory_space<vmem>>, %arg2: memref<768x1024xbf16, #tpu.memory_space<vmem>>, %arg3: memref<1056x512xbf16, #tpu.memory_space<vmem>>, %arg4: memref<1024x256xbf16, #tpu.memory_space<vmem>>, %arg5: memref<672x64xbf16, #tpu.memory_space<vmem>>, %arg6: memref<9x1024xf32, #tpu.memory_space<vmem>>, %arg7: memref<2x64xf32, #tpu.memory_space<vmem>>, %arg8: memref<2x32xf32, #tpu.memory_space<vmem>>, %arg9: memref<2x256xf32, #tpu.memory_space<vmem>>) attributes {dimension_semantics = [#tpu.dimension_semantics<parallel>], iteration_bounds = array<i64: 1>, scalar_prefetch = 0 : i64, scratch_operands = 0 : i64, tpu.core_type = #tpu.core_type<tc>, window_params = [{transform_indices = @transform_0, window_bounds = array<i64: 2, 256>}, {pipeline_mode = #tpu.pipeline_mode<synchronous>, transform_indices = @transform_1, window_bounds = array<i64: 768, 1024>}, {pipeline_mode = #tpu.pipeline_mode<synchronous>, transform_indices = @transform_2, window_bounds = array<i64: 1056, 512>}, {pipeline_mode = #tpu.pipeline_mode<synchronous>, transform_indices = @transform_3, window_bounds = array<i64: 1024, 256>}, {pipeline_mode = #tpu.pipeline_mode<synchronous>, transform_indices = @transform_4, window_bounds = array<i64: 672, 64>}, {pipeline_mode = #tpu.pipeline_mode<synchronous>, transform_indices = @transform_5, window_bounds = array<i64: 9, 1024>}, {transform_indices = @transform_6, window_bounds = array<i64: 2, 64>}, {transform_indices = @transform_7, window_bounds = array<i64: 2, 32>}, {transform_indices = @transform_8, window_bounds = array<i64: 2, 256>}]} {
    %c0 = arith.constant 0 : index
    %c0_0 = arith.constant 0 : index
    %0 = vector.load %arg1[%c0, %c0_0] : memref<2x256xbf16, #tpu.memory_space<vmem>>, vector<2x256xbf16>
    %c0_1 = arith.constant 0 : index
    %c0_2 = arith.constant 0 : index
    %1 = vector.load %arg2[%c0_1, %c0_2] : memref<768x1024xbf16, #tpu.memory_space<vmem>>, vector<256x1024xbf16>
    %cst = arith.constant dense<0.000000e+00> : vector<2x1024xf32>
    %2 = tpu.matmul %0, %1, %cst {dimension_numbers = #tpu.dot_dimension_numbers<[1], [0], [0], [1], [0, 0, 1, 1], [], []>} : vector<2x256xbf16>, vector<256x1024xbf16>, vector<2x1024xf32> -> vector<2x1024xf32>
    %c0_3 = arith.constant 0 : index
    %c0_4 = arith.constant 0 : index
    %3 = vector.load %arg6[%c0_3, %c0_4] : memref<9x1024xf32, #tpu.memory_space<vmem>>, vector<1x1024xf32>
    %4 = vector.broadcast %3 : vector<1x1024xf32> to vector<2x1024xf32>
    %5 = arith.addf %2, %4 : vector<2x1024xf32>
    %cst_5 = arith.constant 0.000000e+00 : f32
    %6 = vector.broadcast %cst_5 : f32 to vector<2x1024xf32>
    %7 = arith.cmpf oge, %5, %6 : vector<2x1024xf32>
    %cst_6 = arith.constant 0.00999999977 : f32
    %8 = vector.broadcast %cst_6 : f32 to vector<2x1024xf32>
    %9 = arith.mulf %8, %5 : vector<2x1024xf32>
    %10 = arith.select %7, %5, %9 : vector<2x1024xi1>, vector<2x1024xf32>
    %11 = arith.truncf %10 : vector<2x1024xf32> to vector<2x1024xbf16>
    %c0_7 = arith.constant 0 : index
    %c0_8 = arith.constant 0 : index
    %12 = vector.load %arg3[%c0_7, %c0_8] : memref<1056x512xbf16, #tpu.memory_space<vmem>>, vector<1024x512xbf16>
    %cst_9 = arith.constant dense<0.000000e+00> : vector<2x512xf32>
    %13 = tpu.matmul %11, %12, %cst_9 {dimension_numbers = #tpu.dot_dimension_numbers<[1], [0], [0], [1], [0, 0, 1, 1], [], []>} : vector<2x1024xbf16>, vector<1024x512xbf16>, vector<2x512xf32> -> vector<2x512xf32>
    %c1 = arith.constant 1 : index
    %c0_10 = arith.constant 0 : index
    %14 = vector.load %arg6[%c1, %c0_10] : memref<9x1024xf32, #tpu.memory_space<vmem>>, vector<1x512xf32>
    %15 = vector.broadcast %14 : vector<1x512xf32> to vector<2x512xf32>
    %16 = arith.addf %13, %15 : vector<2x512xf32>
    %cst_11 = arith.constant 0.000000e+00 : f32
    %17 = vector.broadcast %cst_11 : f32 to vector<2x512xf32>
    %18 = arith.cmpf oge, %16, %17 : vector<2x512xf32>
    %cst_12 = arith.constant 0.00999999977 : f32
    %19 = vector.broadcast %cst_12 : f32 to vector<2x512xf32>
    %20 = arith.mulf %19, %16 : vector<2x512xf32>
    %21 = arith.select %18, %16, %20 : vector<2x512xi1>, vector<2x512xf32>
    %22 = arith.truncf %21 : vector<2x512xf32> to vector<2x512xbf16>
    %c0_13 = arith.constant 0 : index
    %c0_14 = arith.constant 0 : index
    %23 = vector.load %arg5[%c0_13, %c0_14] : memref<672x64xbf16, #tpu.memory_space<vmem>>, vector<512x32xbf16>
    %cst_15 = arith.constant dense<0.000000e+00> : vector<2x32xf32>
    %24 = tpu.matmul %22, %23, %cst_15 {dimension_numbers = #tpu.dot_dimension_numbers<[1], [0], [0], [1], [0, 0, 1, 1], [], []>} : vector<2x512xbf16>, vector<512x32xbf16>, vector<2x32xf32> -> vector<2x32xf32>
    %c2 = arith.constant 2 : index
    %c0_16 = arith.constant 0 : index
    %25 = vector.load %arg6[%c2, %c0_16] : memref<9x1024xf32, #tpu.memory_space<vmem>>, vector<1x32xf32>
    %26 = vector.broadcast %25 : vector<1x32xf32> to vector<2x32xf32>
    %27 = arith.addf %24, %26 : vector<2x32xf32>
    %28 = math.tanh %27 : vector<2x32xf32>
    %c0_17 = arith.constant 0 : index
    %c0_18 = arith.constant 0 : index
    %29 = vector.load %arg8[%c0_17, %c0_18] : memref<2x32xf32, #tpu.memory_space<vmem>>, vector<2x32xf32>
    tpu.vector_store %arg8[%c0_17, %c0_18], %28 {strides = array<i32>} : memref<2x32xf32, #tpu.memory_space<vmem>>, vector<2x32xf32>,
    %30 = arith.truncf %28 : vector<2x32xf32> to vector<2x32xbf16>
    %c1024 = arith.constant 1024 : index
    %c0_19 = arith.constant 0 : index
    %31 = vector.load %arg3[%c1024, %c0_19] : memref<1056x512xbf16, #tpu.memory_space<vmem>>, vector<32x512xbf16>
    %cst_20 = arith.constant dense<0.000000e+00> : vector<2x512xf32>
    %32 = tpu.matmul %30, %31, %cst_20 {dimension_numbers = #tpu.dot_dimension_numbers<[1], [0], [0], [1], [0, 0, 1, 1], [], []>} : vector<2x32xbf16>, vector<32x512xbf16>, vector<2x512xf32> -> vector<2x512xf32>
    %c3 = arith.constant 3 : index
    %c0_21 = arith.constant 0 : index
    %33 = vector.load %arg6[%c3, %c0_21] : memref<9x1024xf32, #tpu.memory_space<vmem>>, vector<1x512xf32>
    %34 = vector.broadcast %33 : vector<1x512xf32> to vector<2x512xf32>
    %35 = arith.addf %32, %34 : vector<2x512xf32>
    %cst_22 = arith.constant 0.000000e+00 : f32
    %36 = vector.broadcast %cst_22 : f32 to vector<2x512xf32>
    %37 = arith.cmpf oge, %35, %36 : vector<2x512xf32>
    %cst_23 = arith.constant 0.00999999977 : f32
    %38 = vector.broadcast %cst_23 : f32 to vector<2x512xf32>
    %39 = arith.mulf %38, %35 : vector<2x512xf32>
    %40 = arith.select %37, %35, %39 : vector<2x512xi1>, vector<2x512xf32>
    %41 = arith.truncf %40 : vector<2x512xf32> to vector<2x512xbf16>
    %c256 = arith.constant 256 : index
    %c0_24 = arith.constant 0 : index
    %42 = vector.load %arg2[%c256, %c0_24] : memref<768x1024xbf16, #tpu.memory_space<vmem>>, vector<512x1024xbf16>
    %cst_25 = arith.constant dense<0.000000e+00> : vector<2x1024xf32>
    %43 = tpu.matmul %41, %42, %cst_25 {dimension_numbers = #tpu.dot_dimension_numbers<[1], [0], [0], [1], [0, 0, 1, 1], [], []>} : vector<2x512xbf16>, vector<512x1024xbf16>, vector<2x1024xf32> -> vector<2x1024xf32>
    %c4 = arith.constant 4 : index
    %c0_26 = arith.constant 0 : index
    %44 = vector.load %arg6[%c4, %c0_26] : memref<9x1024xf32, #tpu.memory_space<vmem>>, vector<1x1024xf32>
    %45 = vector.broadcast %44 : vector<1x1024xf32> to vector<2x1024xf32>
    %46 = arith.addf %43, %45 : vector<2x1024xf32>
    %cst_27 = arith.constant 0.000000e+00 : f32
    %47 = vector.broadcast %cst_27 : f32 to vector<2x1024xf32>
    %48 = arith.cmpf oge, %46, %47 : vector<2x1024xf32>
    %cst_28 = arith.constant 0.00999999977 : f32
    %49 = vector.broadcast %cst_28 : f32 to vector<2x1024xf32>
    %50 = arith.mulf %49, %46 : vector<2x1024xf32>
    %51 = arith.select %48, %46, %50 : vector<2x1024xi1>, vector<2x1024xf32>
    %52 = arith.truncf %51 : vector<2x1024xf32> to vector<2x1024xbf16>
    %c0_29 = arith.constant 0 : index
    %c0_30 = arith.constant 0 : index
    %53 = vector.load %arg4[%c0_29, %c0_30] : memref<1024x256xbf16, #tpu.memory_space<vmem>>, vector<1024x256xbf16>
    %cst_31 = arith.constant dense<0.000000e+00> : vector<2x256xf32>
    %54 = tpu.matmul %52, %53, %cst_31 {dimension_numbers = #tpu.dot_dimension_numbers<[1], [0], [0], [1], [0, 0, 1, 1], [], []>} : vector<2x1024xbf16>, vector<1024x256xbf16>, vector<2x256xf32> -> vector<2x256xf32>
    %c5 = arith.constant 5 : index
    %c0_32 = arith.constant 0 : index
    %55 = vector.load %arg6[%c5, %c0_32] : memref<9x1024xf32, #tpu.memory_space<vmem>>, vector<1x256xf32>
    %56 = vector.broadcast %55 : vector<1x256xf32> to vector<2x256xf32>
    %57 = arith.addf %54, %56 : vector<2x256xf32>
    %58 = arith.negf %57 : vector<2x256xf32>
    %59 = math.exp %58 : vector<2x256xf32>
    %cst_33 = arith.constant 1.000000e+00 : f32
    %60 = vector.broadcast %cst_33 : f32 to vector<2x256xf32>
    %61 = arith.addf %60, %59 : vector<2x256xf32>
    %62 = arith.divf %60, %61 : vector<2x256xf32>
    %c0_34 = arith.constant 0 : index
    %c0_35 = arith.constant 0 : index
    %63 = vector.load %arg9[%c0_34, %c0_35] : memref<2x256xf32, #tpu.memory_space<vmem>>, vector<2x256xf32>
    tpu.vector_store %arg9[%c0_34, %c0_35], %62 {strides = array<i32>} : memref<2x256xf32, #tpu.memory_space<vmem>>, vector<2x256xf32>,
    %c512 = arith.constant 512 : index
    %c0_36 = arith.constant 0 : index
    %64 = vector.load %arg5[%c512, %c0_36] : memref<672x64xbf16, #tpu.memory_space<vmem>>, vector<32x64xbf16>
    %cst_37 = arith.constant dense<0.000000e+00> : vector<2x64xf32>
    %65 = tpu.matmul %30, %64, %cst_37 {dimension_numbers = #tpu.dot_dimension_numbers<[1], [0], [0], [1], [0, 0, 1, 1], [], []>} : vector<2x32xbf16>, vector<32x64xbf16>, vector<2x64xf32> -> vector<2x64xf32>
    %c6 = arith.constant 6 : index
    %c0_38 = arith.constant 0 : index
    %66 = vector.load %arg6[%c6, %c0_38] : memref<9x1024xf32, #tpu.memory_space<vmem>>, vector<1x64xf32>
    %67 = vector.broadcast %66 : vector<1x64xf32> to vector<2x64xf32>
    %68 = arith.addf %65, %67 : vector<2x64xf32>
    %cst_39 = arith.constant 0.000000e+00 : f32
    %69 = vector.broadcast %cst_39 : f32 to vector<2x64xf32>
    %70 = arith.maximumf %68, %69 : vector<2x64xf32>
    %71 = arith.truncf %70 : vector<2x64xf32> to vector<2x64xbf16>
    %c544 = arith.constant 544 : index
    %c0_40 = arith.constant 0 : index
    %72 = vector.load %arg5[%c544, %c0_40] : memref<672x64xbf16, #tpu.memory_space<vmem>>, vector<64x64xbf16>
    %cst_41 = arith.constant dense<0.000000e+00> : vector<2x64xf32>
    %73 = tpu.matmul %71, %72, %cst_41 {dimension_numbers = #tpu.dot_dimension_numbers<[1], [0], [0], [1], [0, 0, 1, 1], [], []>} : vector<2x64xbf16>, vector<64x64xbf16>, vector<2x64xf32> -> vector<2x64xf32>
    %c7 = arith.constant 7 : index
    %c0_42 = arith.constant 0 : index
    %74 = vector.load %arg6[%c7, %c0_42] : memref<9x1024xf32, #tpu.memory_space<vmem>>, vector<1x64xf32>
    %75 = vector.broadcast %74 : vector<1x64xf32> to vector<2x64xf32>
    %76 = arith.addf %73, %75 : vector<2x64xf32>
    %cst_43 = arith.constant 0.000000e+00 : f32
    %77 = vector.broadcast %cst_43 : f32 to vector<2x64xf32>
    %78 = arith.maximumf %76, %77 : vector<2x64xf32>
    %79 = arith.truncf %78 : vector<2x64xf32> to vector<2x64xbf16>
    %c608 = arith.constant 608 : index
    %c0_44 = arith.constant 0 : index
    %80 = vector.load %arg5[%c608, %c0_44] : memref<672x64xbf16, #tpu.memory_space<vmem>>, vector<64x64xbf16>
    %cst_45 = arith.constant dense<0.000000e+00> : vector<2x64xf32>
    %81 = tpu.matmul %79, %80, %cst_45 {dimension_numbers = #tpu.dot_dimension_numbers<[1], [0], [0], [1], [0, 0, 1, 1], [], []>} : vector<2x64xbf16>, vector<64x64xbf16>, vector<2x64xf32> -> vector<2x64xf32>
    %c8 = arith.constant 8 : index
    %c0_46 = arith.constant 0 : index
    %82 = vector.load %arg6[%c8, %c0_46] : memref<9x1024xf32, #tpu.memory_space<vmem>>, vector<1x64xf32>
    %83 = vector.broadcast %82 : vector<1x64xf32> to vector<2x64xf32>
    %84 = arith.addf %81, %83 : vector<2x64xf32>
    %c0_47 = arith.constant 0 : index
    %c0_48 = arith.constant 0 : index
    %85 = vector.load %arg7[%c0_47, %c0_48] : memref<2x64xf32, #tpu.memory_space<vmem>>, vector<2x64xf32>
    tpu.vector_store %arg7[%c0_47, %c0_48], %84 {strides = array<i32>} : memref<2x64xf32, #tpu.memory_space<vmem>>, vector<2x64xf32>,
    return
  }
  func.func @transform_0(%arg0: i32) -> (i32, i32) {
    %c0_i32 = arith.constant 0 : i32
    %c0_i32_0 = arith.constant 0 : i32
    return %arg0, %c0_i32 : i32, i32
  }
  func.func @transform_1(%arg0: i32) -> (i32, i32) {
    %c0_i32 = arith.constant 0 : i32
    %c0_i32_0 = arith.constant 0 : i32
    %c0_i32_1 = arith.constant 0 : i32
    return %c0_i32, %c0_i32_0 : i32, i32
  }
  func.func @transform_2(%arg0: i32) -> (i32, i32) {
    %c0_i32 = arith.constant 0 : i32
    %c0_i32_0 = arith.constant 0 : i32
    %c0_i32_1 = arith.constant 0 : i32
    return %c0_i32, %c0_i32_0 : i32, i32
  }
  func.func @transform_3(%arg0: i32) -> (i32, i32) {
    %c0_i32 = arith.constant 0 : i32
    %c0_i32_0 = arith.constant 0 : i32
    %c0_i32_1 = arith.constant 0 : i32
    return %c0_i32, %c0_i32_0 : i32, i32
  }
  func.func @transform_4(%arg0: i32) -> (i32, i32) {
    %c0_i32 = arith.constant 0 : i32
    %c0_i32_0 = arith.constant 0 : i32
    %c0_i32_1 = arith.constant 0 : i32
    return %c0_i32, %c0_i32_0 : i32, i32
  }
  func.func @transform_5(%arg0: i32) -> (i32, i32) {
    %c0_i32 = arith.constant 0 : i32
    %c0_i32_0 = arith.constant 0 : i32
    %c0_i32_1 = arith.constant 0 : i32
    return %c0_i32, %c0_i32_0 : i32, i32
  }
  func.func @transform_6(%arg0: i32) -> (i32, i32) {
    %c0_i32 = arith.constant 0 : i32
    %c0_i32_0 = arith.constant 0 : i32
    return %arg0, %c0_i32 : i32, i32
  }
  func.func @transform_7(%arg0: i32) -> (i32, i32) {
    %c0_i32 = arith.constant 0 : i32
    %c0_i32_0 = arith.constant 0 : i32
    return %arg0, %c0_i32 : i32, i32
  }
  func.func @transform_8(%arg0: i32) -> (i32, i32) {
    %c0_i32 = arith.constant 0 : i32
    %c0_i32_0 = arith.constant 0 : i32
    return %arg0, %c0_i32 : i32, i32
  }
}

</mosaic_0001>

<llo_original>
// kernel: drmade_forward.1
$region0: #{drmade_forward.1}
  #allocation0 [shape = 'u32[]', space=smem, size = 0x4, offset = 0x4, fixed_abs, tag = 'smem constant byte address 0x4 - core index']
  #allocation1 [shape = 'u32[144,128]{1,0:T(1,128)}', space=vmem, size = 0x12000, scoped, tag = 'internal scratch']
  %s0 = inlined_call_operand.vmem [shape: bf16[2,256], index: 0, kind: input, shape index: {}]
  %s1 = inlined_call_operand.hbm [shape: bf16[768,1024], index: 1, kind: input, shape index: {}]
  %s2 = inlined_call_operand.hbm [shape: bf16[1056,512], index: 2, kind: input, shape index: {}]
  %s3 = inlined_call_operand.hbm [shape: bf16[1024,256], index: 3, kind: input, shape index: {}]
  %s4 = inlined_call_operand.vmem [shape: bf16[672,64], index: 4, kind: input, shape index: {}]
  %s5 = inlined_call_operand.hbm [shape: f32[9,1024], index: 5, kind: input, shape index: {}]
  %s6 = inlined_call_operand.hbm [shape: f32[2,64], index: 6, kind: output, shape index: {0}]
  %s7 = inlined_call_operand.hbm [shape: f32[2,32], index: 7, kind: output, shape index: {1}]
  %s8 = inlined_call_operand.vmem [shape: f32[2,256], index: 8, kind: output, shape index: {2}]
  %9 = xla_tuple %s6, %s7, %s8
  %s10 = sld [smem:[#allocation0]]
  $region66: #{drmade_forward.1} parent=0
    _
  %s12 = ssub.s32 1, %s10
  %s13 = scalar_select 0, %s12, %s10
  $region1: #{drmade_forward.1} parent=0
    #allocation2 [shape = 'u8[1572864]{0}', space=vmem, size = 0x180000, scoped, tag = 'input window, operand 1, single buffered']
    #allocation3 [shape = 's32[1]{0}', space=sflag, size = 0x4, scoped, tag = 'scoped memory for drmade_forward.1']
    #allocation4 [shape = 's32[1]{0}', space=sflag, size = 0x4, scoped, tag = 'scoped memory for drmade_forward.1']
    #allocation5 [shape = 'u8[1081344]{0}', space=vmem, size = 0x108000, scoped, tag = 'input window, operand 2, single buffered']
    #allocation6 [shape = 's32[1]{0}', space=sflag, size = 0x4, scoped, tag = 'scoped memory for drmade_forward.1']
    #allocation7 [shape = 'u8[524288]{0}', space=vmem, size = 0x80000, scoped, tag = 'input window, operand 3, single buffered']
    #allocation8 [shape = 'u8[65536]{0}', space=vmem, size = 0x10000, scoped, tag = 'input window, operand 5, single buffered']
    #allocation9 [shape = 's32[1]{0}', space=sflag, size = 0x4, scoped, tag = 'scoped memory for drmade_forward.1']
    #allocation10 [shape = 'u8[1024]{0}', space=vmem, size = 0x400, scoped, tag = 'output window, operand 0, single buffered']
    #allocation11 [shape = 'u8[1024]{0}', space=vmem, size = 0x400, scoped, tag = 'output window, operand 1, single buffered']
    #allocation12 [shape = 's32[1]{0}', space=sflag, size = 0x4, scoped, tag = 'scoped memory for drmade_forward.1']
    %14 = vsyncpa [#allocation3], 0
    %15 = vsyncpa [#allocation6], 0
    %16 = vsyncpa [#allocation9], 0
    %17 = vsyncpa [#allocation4], 0
    %18 = vsyncpa [#allocation12], 0
    // Predicated region
    $region2: #{drmade_forward.1} parent=1 // pred_check
      _
    $region3: #{drmade_forward.1} parent=1 // pred_check_branch
      %20 = sbr.rel (0) target = $region5
    $region4: #{drmade_forward.1} parent=1 // pred_region
      _
    $region5: #{drmade_forward.1} parent=1 // pred_fallthru
      _
    // Predicated region
    $region6: #{drmade_forward.1} parent=1 // pred_check
      _
    $region7: #{drmade_forward.1} parent=1 // pred_check_branch
      %22 = sbr.rel (0) target = $region9
    $region8: #{drmade_forward.1} parent=1 // pred_region
      %s24 = ssub.s32 49152, 49152
      %25 = vsyncadd [#allocation3], %s24
      %s26 = sshll.u32 [#allocation2], 4
      %s27 = int_to_ptr.vmem [resolvable:$true] %s26
      %32 = dma.hbm_to_vmem [thread:$0]  %s1, 49152, %s27, [#allocation3], 512, 512, 32
    $region9: #{drmade_forward.1} parent=1 // pred_fallthru
      _
    // Predicated region
    $region10: #{drmade_forward.1} parent=1 // pred_check
      _
    $region11: #{drmade_forward.1} parent=1 // pred_check_branch
      %34 = sbr.rel (0) target = $region13
    $region12: #{drmade_forward.1} parent=1 // pred_region
      %s36 = ssub.s32 33792, 33792
      %37 = vsyncadd [#allocation6], %s36
      %s38 = sshll.u32 [#allocation5], 4
      %s39 = int_to_ptr.vmem [resolvable:$true] %s38
      %44 = dma.hbm_to_vmem [thread:$0]  %s2, 33792, %s39, [#allocation6], 256, 256, 16
    $region13: #{drmade_forward.1} parent=1 // pred_fallthru
      _
    // Predicated region
    $region14: #{drmade_forward.1} parent=1 // pred_check
      _
    $region15: #{drmade_forward.1} parent=1 // pred_check_branch
      %46 = sbr.rel (0) target = $region17
    $region16: #{drmade_forward.1} parent=1 // pred_region
      %s48 = ssub.s32 16384, 16384
      %49 = vsyncadd [#allocation6], %s48
      %s50 = sshll.u32 [#allocation7], 4
      %s51 = int_to_ptr.vmem [resolvable:$true] %s50
      %56 = dma.hbm_to_vmem [thread:$0]  %s3, 16384, %s51, [#allocation6], 128, 128, 8
    $region17: #{drmade_forward.1} parent=1 // pred_fallthru
      _
    // Predicated region
    $region18: #{drmade_forward.1} parent=1 // pred_check
      _
    $region19: #{drmade_forward.1} parent=1 // pred_check_branch
      %58 = sbr.rel (0) target = $region21
    $region20: #{drmade_forward.1} parent=1 // pred_region
      _
    $region21: #{drmade_forward.1} parent=1 // pred_fallthru
      _
    // Predicated region
    $region22: #{drmade_forward.1} parent=1 // pred_check
      _
    $region23: #{drmade_forward.1} parent=1 // pred_check_branch
      %60 = sbr.rel (0) target = $region25
    $region24: #{drmade_forward.1} parent=1 // pred_region
      %s62 = ssub.s32 2048, 2048
      %63 = vsyncadd [#allocation9], %s62
      %s64 = sshll.u32 [#allocation8], 4
      %s65 = int_to_ptr.vmem [resolvable:$true] %s64
      %70 = dma.hbm_to_vmem [thread:$0]  %s5, 2048, %s65, [#allocation9], 1024, 1024, 64
    $region25: #{drmade_forward.1} parent=1 // pred_fallthru
      _
    // Predicated region
    $region26: #{drmade_forward.1} parent=1 // pred_check
      _
    $region27: #{drmade_forward.1} parent=1 // pred_check_branch
      %72 = sbr.rel (0) target = $region29
    $region28: #{drmade_forward.1} parent=1 // pred_region
      %73 = dma.done [#allocation3], 49152
    $region29: #{drmade_forward.1} parent=1 // pred_fallthru
      _
    // Predicated region
    $region30: #{drmade_forward.1} parent=1 // pred_check
      _
    $region31: #{drmade_forward.1} parent=1 // pred_check_branch
      %75 = sbr.rel (0) target = $region33
    $region32: #{drmade_forward.1} parent=1 // pred_region
      %76 = dma.done [#allocation6], 33792
    $region33: #{drmade_forward.1} parent=1 // pred_fallthru
      _
    // Predicated region
    $region34: #{drmade_forward.1} parent=1 // pred_check
      _
    $region35: #{drmade_forward.1} parent=1 // pred_check_branch
      %78 = sbr.rel (0) target = $region37
    $region36: #{drmade_forward.1} parent=1 // pred_region
      %79 = dma.done [#allocation6], 16384
    $region37: #{drmade_forward.1} parent=1 // pred_fallthru
      _
    // Predicated region
    $region38: #{drmade_forward.1} parent=1 // pred_check
      _
    $region39: #{drmade_forward.1} parent=1 // pred_check_branch
      %81 = sbr.rel (0) target = $region41
    $region40: #{drmade_forward.1} parent=1 // pred_region
      %82 = dma.done [#allocation9], 2048
    $region41: #{drmade_forward.1} parent=1 // pred_fallthru
      _
    %v84 = vld [vmem:[%s0] sm:$0x3]
    %v85 = vld [vmem:[#allocation2] sm:$0xff]
    %v86 = vld [vmem:[#allocation2 + $0x8] sm:$0xff]
    %v87 = vld [vmem:[#allocation2 + $0x10] sm:$0xff]
    %v88 = vld [vmem:[#allocation2 + $0x18] sm:$0xff]
    %v89 = vld [vmem:[#allocation2 + $0x20] sm:$0xff]
    %v90 = vld [vmem:[#allocation2 + $0x28] sm:$0xff]
    %v91 = vld [vmem:[#allocation2 + $0x30] sm:$0xff]
    %v92 = vld [vmem:[#allocation2 + $0x38] sm:$0xff]
    %v93 = vld [vmem:[#allocation2 + $0x40] sm:$0xff]
    %v94 = vld [vmem:[#allocation2 + $0x48] sm:$0xff]
    %v95 = vld [vmem:[#allocation2 + $0x50] sm:$0xff]
    %v96 = vld [vmem:[#allocation2 + $0x58] sm:$0xff]
    %v97 = vld [vmem:[#allocation2 + $0x60] sm:$0xff]
    %v98 = vld [vmem:[#allocation2 + $0x68] sm:$0xff]
    %v99 = vld [vmem:[#allocation2 + $0x70] sm:$0xff]
    %v100 = vld [vmem:[#allocation2 + $0x78] sm:$0xff]
    %v101 = vld [vmem:[#allocation2 + $0x80] sm:$0xff]
    %v102 = vld [vmem:[#allocation2 + $0x88] sm:$0xff]
    %v103 = vld [vmem:[#allocation2 + $0x90] sm:$0xff]
    %v104 = vld [vmem:[#allocation2 + $0x98] sm:$0xff]
    %v105 = vld [vmem:[#allocation2 + $0xa0] sm:$0xff]
    %v106 = vld [vmem:[#allocation2 + $0xa8] sm:$0xff]
    %v107 = vld [vmem:[#allocation2 + $0xb0] sm:$0xff]
    %v108 = vld [vmem:[#allocation2 + $0xb8] sm:$0xff]
    %v109 = vld [vmem:[#allocation2 + $0xc0] sm:$0xff]
    %v110 = vld [vmem:[#allocation2 + $0xc8] sm:$0xff]
    %v111 = vld [vmem:[#allocation2 + $0xd0] sm:$0xff]
    %v112 = vld [vmem:[#allocation2 + $0xd8] sm:$0xff]
    %v113 = vld [vmem:[#allocation2 + $0xe0] sm:$0xff]
    %v114 = vld [vmem:[#allocation2 + $0xe8] sm:$0xff]
    %v115 = vld [vmem:[#allocation2 + $0xf0] sm:$0xff]
    %v116 = vld [vmem:[#allocation2 + $0xf8] sm:$0xff]
    %v117 = vld [vmem:[#allocation2 + $0x100] sm:$0xff]
    %v118 = vld [vmem:[#allocation2 + $0x108] sm:$0xff]
    %v119 = vld [vmem:[#allocation2 + $0x110] sm:$0xff]
    %v120 = vld [vmem:[#allocation2 + $0x118] sm:$0xff]
    %v121 = vld [vmem:[#allocation2 + $0x120] sm:$0xff]
    %v122 = vld [vmem:[#allocation2 + $0x128] sm:$0xff]
    %v123 = vld [vmem:[#allocation2 + $0x130] sm:$0xff]
    %v124 = vld [vmem:[#allocation2 + $0x138] sm:$0xff]
    %v125 = vld [vmem:[#allocation2 + $0x140] sm:$0xff]
    %v126 = vld [vmem:[#allocation2 + $0x148] sm:$0xff]
    %v127 = vld [vmem:[#allocation2 + $0x150] sm:$0xff]
    %v128 = vld [vmem:[#allocation2 + $0x158] sm:$0xff]
    %v129 = vld [vmem:[#allocation2 + $0x160] sm:$0xff]
    %v130 = vld [vmem:[#allocation2 + $0x168] sm:$0xff]
    %v131 = vld [vmem:[#allocation2 + $0x170] sm:$0xff]
    %v132 = vld [vmem:[#allocation2 + $0x178] sm:$0xff]
    %v133 = vld [vmem:[#allocation2 + $0x180] sm:$0xff]
    %v134 = vld [vmem:[#allocation2 + $0x188] sm:$0xff]
    %v135 = vld [vmem:[#allocation2 + $0x190] sm:$0xff]
    %v136 = vld [vmem:[#allocation2 + $0x198] sm:$0xff]
    %v137 = vld [vmem:[#allocation2 + $0x1a0] sm:$0xff]
    %v138 = vld [vmem:[#allocation2 + $0x1a8] sm:$0xff]
    %v139 = vld [vmem:[#allocation2 + $0x1b0] sm:$0xff]
    %v140 = vld [vmem:[#allocation2 + $0x1b8] sm:$0xff]
    %v141 = vld [vmem:[#allocation2 + $0x1c0] sm:$0xff]
    %v142 = vld [vmem:[#allocation2 + $0x1c8] sm:$0xff]
    %v143 = vld [vmem:[#allocation2 + $0x1d0] sm:$0xff]
    %v144 = vld [vmem:[#allocation2 + $0x1d8] sm:$0xff]
    %v145 = vld [vmem:[#allocation2 + $0x1e0] sm:$0xff]
    %v146 = vld [vmem:[#allocation2 + $0x1e8] sm:$0xff]
    %v147 = vld [vmem:[#allocation2 + $0x1f0] sm:$0xff]
    %v148 = vld [vmem:[#allocation2 + $0x1f8] sm:$0xff]
    %v149 = vld [vmem:[#allocation2 + $0x200] sm:$0xff]
    %v150 = vld [vmem:[#allocation2 + $0x208] sm:$0xff]
    %v151 = vld [vmem:[#allocation2 + $0x210] sm:$0xff]
    %v152 = vld [vmem:[#allocation2 + $0x218] sm:$0xff]
    %v153 = vld [vmem:[#allocation2 + $0x220] sm:$0xff]
    %v154 = vld [vmem:[#allocation2 + $0x228] sm:$0xff]
    %v155 = vld [vmem:[#allocation2 + $0x230] sm:$0xff]
    %v156 = vld [vmem:[#allocation2 + $0x238] sm:$0xff]
    %v157 = vld [vmem:[#allocation2 + $0x240] sm:$0xff]
    %v158 = vld [vmem:[#allocation2 + $0x248] sm:$0xff]
    %v159 = vld [vmem:[#allocation2 + $0x250] sm:$0xff]
    %v160 = vld [vmem:[#allocation2 + $0x258] sm:$0xff]
    %v161 = vld [vmem:[#allocation2 + $0x260] sm:$0xff]
    %v162 = vld [vmem:[#allocation2 + $0x268] sm:$0xff]
    %v163 = vld [vmem:[#allocation2 + $0x270] sm:$0xff]
    %v164 = vld [vmem:[#allocation2 + $0x278] sm:$0xff]
    %v165 = vld [vmem:[#allocation2 + $0x280] sm:$0xff]
    %v166 = vld [vmem:[#allocation2 + $0x288] sm:$0xff]
    %v167 = vld [vmem:[#allocation2 + $0x290] sm:$0xff]
    %v168 = vld [vmem:[#allocation2 + $0x298] sm:$0xff]
    %v169 = vld [vmem:[#allocation2 + $0x2a0] sm:$0xff]
    %v170 = vld [vmem:[#allocation2 + $0x2a8] sm:$0xff]
    %v171 = vld [vmem:[#allocation2 + $0x2b0] sm:$0xff]
    %v172 = vld [vmem:[#allocation2 + $0x2b8] sm:$0xff]
    %v173 = vld [vmem:[#allocation2 + $0x2c0] sm:$0xff]
    %v174 = vld [vmem:[#allocation2 + $0x2c8] sm:$0xff]
    %v175 = vld [vmem:[#allocation2 + $0x2d0] sm:$0xff]
    %v176 = vld [vmem:[#allocation2 + $0x2d8] sm:$0xff]
    %v177 = vld [vmem:[#allocation2 + $0x2e0] sm:$0xff]
    %v178 = vld [vmem:[#allocation2 + $0x2e8] sm:$0xff]
    %v179 = vld [vmem:[#allocation2 + $0x2f0] sm:$0xff]
    %v180 = vld [vmem:[#allocation2 + $0x2f8] sm:$0xff]
    %v181 = vld [vmem:[#allocation2 + $0x300] sm:$0xff]
    %v182 = vld [vmem:[#allocation2 + $0x308] sm:$0xff]
    %v183 = vld [vmem:[#allocation2 + $0x310] sm:$0xff]
    %v184 = vld [vmem:[#allocation2 + $0x318] sm:$0xff]
    %v185 = vld [vmem:[#allocation2 + $0x320] sm:$0xff]
    %v186 = vld [vmem:[#allocation2 + $0x328] sm:$0xff]
    %v187 = vld [vmem:[#allocation2 + $0x330] sm:$0xff]
    %v188 = vld [vmem:[#allocation2 + $0x338] sm:$0xff]
    %v189 = vld [vmem:[#allocation2 + $0x340] sm:$0xff]
    %v190 = vld [vmem:[#allocation2 + $0x348] sm:$0xff]
    %v191 = vld [vmem:[#allocation2 + $0x350] sm:$0xff]
    %v192 = vld [vmem:[#allocation2 + $0x358] sm:$0xff]
    %v193 = vld [vmem:[#allocation2 + $0x360] sm:$0xff]
    %v194 = vld [vmem:[#allocation2 + $0x368] sm:$0xff]
    %v195 = vld [vmem:[#allocation2 + $0x370] sm:$0xff]
    %v196 = vld [vmem:[#allocation2 + $0x378] sm:$0xff]
    %v197 = vld [vmem:[#allocation2 + $0x380] sm:$0xff]
    %v198 = vld [vmem:[#allocation2 + $0x388] sm:$0xff]
    %v199 = vld [vmem:[#allocation2 + $0x390] sm:$0xff]
    %v200 = vld [vmem:[#allocation2 + $0x398] sm:$0xff]
    %v201 = vld [vmem:[#allocation2 + $0x3a0] sm:$0xff]
    %v202 = vld [vmem:[#allocation2 + $0x3a8] sm:$0xff]
    %v203 = vld [vmem:[#allocation2 + $0x3b0] sm:$0xff]
    %v204 = vld [vmem:[#allocation2 + $0x3b8] sm:$0xff]
    %v205 = vld [vmem:[#allocation2 + $0x3c0] sm:$0xff]
    %v206 = vld [vmem:[#allocation2 + $0x3c8] sm:$0xff]
    %v207 = vld [vmem:[#allocation2 + $0x3d0] sm:$0xff]
    %v208 = vld [vmem:[#allocation2 + $0x3d8] sm:$0xff]
    %v209 = vld [vmem:[#allocation2 + $0x3e0] sm:$0xff]
    %v210 = vld [vmem:[#allocation2 + $0x3e8] sm:$0xff]
    %v211 = vld [vmem:[#allocation2 + $0x3f0] sm:$0xff]
    %v212 = vld [vmem:[#allocation2 + $0x3f8] sm:$0xff]
    %v213 = vld [vmem:[#allocation8] ss:$8 sm:$0xf]
    %v214 = vld [vmem:[#allocation8] ss:$8 sm:$0xf0]
    %v215 = vor.u32 %v213, %v214
    %v217 = vlaneseq
    %v218 = vshrl.u32 %v217, 7
    %v219 = vsub.s32 0, %v218
    %v220 = vrot.slane %v215, %v219
    %v221 = vlaneseq
    %v222 = vshrl.u32 %v221, 7
    %v223 = vsub.s32 1, %v222
    %v224 = vrot.slane %v215, %v223
    %v225 = vlaneseq
    %v226 = vshrl.u32 %v225, 7
    %v227 = vsub.s32 2, %v226
    %v228 = vrot.slane %v215, %v227
    %v229 = vlaneseq
    %v230 = vshrl.u32 %v229, 7
    %v231 = vsub.s32 3, %v230
    %v232 = vrot.slane %v215, %v231
    %v233 = vlaneseq
    %v234 = vshrl.u32 %v233, 7
    %v235 = vsub.s32 4, %v234
    %v236 = vrot.slane %v215, %v235
    %v237 = vlaneseq
    %v238 = vshrl.u32 %v237, 7
    %v239 = vsub.s32 5, %v238
    %v240 = vrot.slane %v215, %v239
    %v241 = vlaneseq
    %v242 = vshrl.u32 %v241, 7
    %v243 = vsub.s32 6, %v242
    %v244 = vrot.slane %v215, %v243
    %v245 = vlaneseq
    %v246 = vshrl.u32 %v245, 7
    %v247 = vsub.s32 7, %v246
    %v248 = vrot.slane %v215, %v247
    %v259 = vunpack.c.l.s4 1966171168
    %v260 = vunpack.c.0.s8 %v259
    %v261 = vlaneseq
    %v262 = vshrl.u32 %v261, 7
    %v263 = vsub.s32 %v260, %v262
    %v264 = vrot.slane %v84, %v263
    %v265 = vcombine.high %v264, %v264
    %v267 = vunpack.c.l.s4 1966171168
    %v268 = vunpack.c.0.s8 %v267
    %v269 = vlaneseq
    %v270 = vshrl.u32 %v269, 7
    %v271 = vsub.s32 %v268, %v270
    %v272 = vrot.slane %v264, %v271
    %v274 = vunpack.c.l.s4 1966171168
    %v275 = vunpack.c.0.s8 %v274
    %v276 = vlaneseq
    %v277 = vshrl.u32 %v276, 7
    %v278 = vsub.s32 %v275, %v277
    %v279 = vrot.slane %v265, %v278
    %v410 = vunpack.c.l.b16 %v85
    %v411 = vunpack.c.h.b16 %v85
    %v412 = vunpack.c.l.b16 %v86
    %v413 = vunpack.c.h.b16 %v86
    %v414 = vunpack.c.l.b16 %v87
    %v415 = vunpack.c.h.b16 %v87
    %v416 = vunpack.c.l.b16 %v88
    %v417 = vunpack.c.h.b16 %v88
    %v418 = vunpack.c.l.b16 %v89
    %v419 = vunpack.c.h.b16 %v89
    %v420 = vunpack.c.l.b16 %v90
    %v421 = vunpack.c.h.b16 %v90
    %v422 = vunpack.c.l.b16 %v91
    %v423 = vunpack.c.h.b16 %v91
    %v424 = vunpack.c.l.b16 %v92
    %v425 = vunpack.c.h.b16 %v92
    %v426 = vunpack.c.l.b16 %v93
    %v427 = vunpack.c.h.b16 %v93
    %v428 = vunpack.c.l.b16 %v94
    %v429 = vunpack.c.h.b16 %v94
    %v430 = vunpack.c.l.b16 %v95
    %v431 = vunpack.c.h.b16 %v95
    %v432 = vunpack.c.l.b16 %v96
    %v433 = vunpack.c.h.b16 %v96
    %v434 = vunpack.c.l.b16 %v97
    %v435 = vunpack.c.h.b16 %v97
    %v436 = vunpack.c.l.b16 %v98
    %v437 = vunpack.c.h.b16 %v98
    %v438 = vunpack.c.l.b16 %v99
    %v439 = vunpack.c.h.b16 %v99
    %v440 = vunpack.c.l.b16 %v100
    %v441 = vunpack.c.h.b16 %v100
    %v442 = vunpack.c.l.b16 %v101
    %v443 = vunpack.c.h.b16 %v101
    %v444 = vunpack.c.l.b16 %v102
    %v445 = vunpack.c.h.b16 %v102
    %v446 = vunpack.c.l.b16 %v103
    %v447 = vunpack.c.h.b16 %v103
    %v448 = vunpack.c.l.b16 %v104
    %v449 = vunpack.c.h.b16 %v104
    %v450 = vunpack.c.l.b16 %v105
    %v451 = vunpack.c.h.b16 %v105
    %v452 = vunpack.c.l.b16 %v106
    %v453 = vunpack.c.h.b16 %v106
    %v454 = vunpack.c.l.b16 %v107
    %v455 = vunpack.c.h.b16 %v107
    %v456 = vunpack.c.l.b16 %v108
    %v457 = vunpack.c.h.b16 %v108
    %v458 = vunpack.c.l.b16 %v109
    %v459 = vunpack.c.h.b16 %v109
    %v460 = vunpack.c.l.b16 %v110
    %v461 = vunpack.c.h.b16 %v110
    %v462 = vunpack.c.l.b16 %v111
    %v463 = vunpack.c.h.b16 %v111
    %v464 = vunpack.c.l.b16 %v112
    %v465 = vunpack.c.h.b16 %v112
    %v466 = vunpack.c.l.b16 %v113
    %v467 = vunpack.c.h.b16 %v113
    %v468 = vunpack.c.l.b16 %v114
    %v469 = vunpack.c.h.b16 %v114
    %v470 = vunpack.c.l.b16 %v115
    %v471 = vunpack.c.h.b16 %v115
    %v472 = vunpack.c.l.b16 %v116
    %v473 = vunpack.c.h.b16 %v116
    %v474 = vunpack.c.l.b16 %v117
    %v475 = vunpack.c.h.b16 %v117
    %v476 = vunpack.c.l.b16 %v118
    %v477 = vunpack.c.h.b16 %v118
    %v478 = vunpack.c.l.b16 %v119
    %v479 = vunpack.c.h.b16 %v119
    %v480 = vunpack.c.l.b16 %v120
    %v481 = vunpack.c.h.b16 %v120
    %v482 = vunpack.c.l.b16 %v121
    %v483 = vunpack.c.h.b16 %v121
    %v484 = vunpack.c.l.b16 %v122
    %v485 = vunpack.c.h.b16 %v122
    %v486 = vunpack.c.l.b16 %v123
    %v487 = vunpack.c.h.b16 %v123
    %v488 = vunpack.c.l.b16 %v124
    %v489 = vunpack.c.h.b16 %v124
    %v490 = vunpack.c.l.b16 %v125
    %v491 = vunpack.c.h.b16 %v125
    %v492 = vunpack.c.l.b16 %v126
    %v493 = vunpack.c.h.b16 %v126
    %v494 = vunpack.c.l.b16 %v127
    %v495 = vunpack.c.h.b16 %v127
    %v496 = vunpack.c.l.b16 %v128
    %v497 = vunpack.c.h.b16 %v128
    %v498 = vunpack.c.l.b16 %v129
    %v499 = vunpack.c.h.b16 %v129
    %v500 = vunpack.c.l.b16 %v130
    %v501 = vunpack.c.h.b16 %v130
    %v502 = vunpack.c.l.b16 %v131
    %v503 = vunpack.c.h.b16 %v131
    %v504 = vunpack.c.l.b16 %v132
    %v505 = vunpack.c.h.b16 %v132
    %v506 = vunpack.c.l.b16 %v133
    %v507 = vunpack.c.h.b16 %v133
    %v508 = vunpack.c.l.b16 %v134
    %v509 = vunpack.c.h.b16 %v134
    %v510 = vunpack.c.l.b16 %v135
    %v511 = vunpack.c.h.b16 %v135
    %v512 = vunpack.c.l.b16 %v136
    %v513 = vunpack.c.h.b16 %v136
    %v514 = vunpack.c.l.b16 %v137
    %v515 = vunpack.c.h.b16 %v137
    %v516 = vunpack.c.l.b16 %v138
    %v517 = vunpack.c.h.b16 %v138
    %v518 = vunpack.c.l.b16 %v139
    %v519 = vunpack.c.h.b16 %v139
    %v520 = vunpack.c.l.b16 %v140
    %v521 = vunpack.c.h.b16 %v140
    %v522 = vunpack.c.l.b16 %v141
    %v523 = vunpack.c.h.b16 %v141
    %v524 = vunpack.c.l.b16 %v142
    %v525 = vunpack.c.h.b16 %v142
    %v526 = vunpack.c.l.b16 %v143
    %v527 = vunpack.c.h.b16 %v143
    %v528 = vunpack.c.l.b16 %v144
    %v529 = vunpack.c.h.b16 %v144
    %v530 = vunpack.c.l.b16 %v145
    %v531 = vunpack.c.h.b16 %v145
    %v532 = vunpack.c.l.b16 %v146
    %v533 = vunpack.c.h.b16 %v146
    %v534 = vunpack.c.l.b16 %v147
    %v535 = vunpack.c.h.b16 %v147
    %v536 = vunpack.c.l.b16 %v148
    %v537 = vunpack.c.h.b16 %v148
    %v538 = vunpack.c.l.b16 %v149
    %v539 = vunpack.c.h.b16 %v149
    %v540 = vunpack.c.l.b16 %v150
    %v541 = vunpack.c.h.b16 %v150
    %v542 = vunpack.c.l.b16 %v151
    %v543 = vunpack.c.h.b16 %v151
    %v544 = vunpack.c.l.b16 %v152
    %v545 = vunpack.c.h.b16 %v152
    %v546 = vunpack.c.l.b16 %v153
    %v547 = vunpack.c.h.b16 %v153
    %v548 = vunpack.c.l.b16 %v154
    %v549 = vunpack.c.h.b16 %v154
    %v550 = vunpack.c.l.b16 %v155
    %v551 = vunpack.c.h.b16 %v155
    %v552 = vunpack.c.l.b16 %v156
    %v553 = vunpack.c.h.b16 %v156
    %v554 = vunpack.c.l.b16 %v157
    %v555 = vunpack.c.h.b16 %v157
    %v556 = vunpack.c.l.b16 %v158
    %v557 = vunpack.c.h.b16 %v158
    %v558 = vunpack.c.l.b16 %v159
    %v559 = vunpack.c.h.b16 %v159
    %v560 = vunpack.c.l.b16 %v160
    %v561 = vunpack.c.h.b16 %v160
    %v562 = vunpack.c.l.b16 %v161
    %v563 = vunpack.c.h.b16 %v161
    %v564 = vunpack.c.l.b16 %v162
    %v565 = vunpack.c.h.b16 %v162
    %v566 = vunpack.c.l.b16 %v163
    %v567 = vunpack.c.h.b16 %v163
    %v568 = vunpack.c.l.b16 %v164
    %v569 = vunpack.c.h.b16 %v164
    %v570 = vunpack.c.l.b16 %v165
    %v571 = vunpack.c.h.b16 %v165
    %v572 = vunpack.c.l.b16 %v166
    %v573 = vunpack.c.h.b16 %v166
    %v574 = vunpack.c.l.b16 %v167
    %v575 = vunpack.c.h.b16 %v167
    %v576 = vunpack.c.l.b16 %v168
    %v577 = vunpack.c.h.b16 %v168
    %v578 = vunpack.c.l.b16 %v169
    %v579 = vunpack.c.h.b16 %v169
    %v580 = vunpack.c.l.b16 %v170
    %v581 = vunpack.c.h.b16 %v170
    %v582 = vunpack.c.l.b16 %v171
    %v583 = vunpack.c.h.b16 %v171
    %v584 = vunpack.c.l.b16 %v172
    %v585 = vunpack.c.h.b16 %v172
    %v586 = vunpack.c.l.b16 %v173
    %v587 = vunpack.c.h.b16 %v173
    %v588 = vunpack.c.l.b16 %v174
    %v589 = vunpack.c.h.b16 %v174
    %v590 = vunpack.c.l.b16 %v175
    %v591 = vunpack.c.h.b16 %v175
    %v592 = vunpack.c.l.b16 %v176
    %v593 = vunpack.c.h.b16 %v176
    %v594 = vunpack.c.l.b16 %v177
    %v595 = vunpack.c.h.b16 %v177
    %v596 = vunpack.c.l.b16 %v178
    %v597 = vunpack.c.h.b16 %v178
    %v598 = vunpack.c.l.b16 %v179
    %v599 = vunpack.c.h.b16 %v179
    %v600 = vunpack.c.l.b16 %v180
    %v601 = vunpack.c.h.b16 %v180
    %v602 = vunpack.c.l.b16 %v181
    %v603 = vunpack.c.h.b16 %v181
    %v604 = vunpack.c.l.b16 %v182
    %v605 = vunpack.c.h.b16 %v182
    %v606 = vunpack.c.l.b16 %v183
    %v607 = vunpack.c.h.b16 %v183
    %v608 = vunpack.c.l.b16 %v184
    %v609 = vunpack.c.h.b16 %v184
    %v610 = vunpack.c.l.b16 %v185
    %v611 = vunpack.c.h.b16 %v185
    %v612 = vunpack.c.l.b16 %v186
    %v613 = vunpack.c.h.b16 %v186
    %v614 = vunpack.c.l.b16 %v187
    %v615 = vunpack.c.h.b16 %v187
    %v616 = vunpack.c.l.b16 %v188
    %v617 = vunpack.c.h.b16 %v188
    %v618 = vunpack.c.l.b16 %v189
    %v619 = vunpack.c.h.b16 %v189
    %v620 = vunpack.c.l.b16 %v190
    %v621 = vunpack.c.h.b16 %v190
    %v622 = vunpack.c.l.b16 %v191
    %v623 = vunpack.c.h.b16 %v191
    %v624 = vunpack.c.l.b16 %v192
    %v625 = vunpack.c.h.b16 %v192
    %v626 = vunpack.c.l.b16 %v193
    %v627 = vunpack.c.h.b16 %v193
    %v628 = vunpack.c.l.b16 %v194
    %v629 = vunpack.c.h.b16 %v194
    %v630 = vunpack.c.l.b16 %v195
    %v631 = vunpack.c.h.b16 %v195
    %v632 = vunpack.c.l.b16 %v196
    %v633 = vunpack.c.h.b16 %v196
    %v634 = vunpack.c.l.b16 %v197
    %v635 = vunpack.c.h.b16 %v197
    %v636 = vunpack.c.l.b16 %v198
    %v637 = vunpack.c.h.b16 %v198
    %v638 = vunpack.c.l.b16 %v199
    %v639 = vunpack.c.h.b16 %v199
    %v640 = vunpack.c.l.b16 %v200
    %v641 = vunpack.c.h.b16 %v200
    %v642 = vunpack.c.l.b16 %v201
    %v643 = vunpack.c.h.b16 %v201
    %v644 = vunpack.c.l.b16 %v202
    %v645 = vunpack.c.h.b16 %v202
    %v646 = vunpack.c.l.b16 %v203
    %v647 = vunpack.c.h.b16 %v203
    %v648 = vunpack.c.l.b16 %v204
    %v649 = vunpack.c.h.b16 %v204
    %v650 = vunpack.c.l.b16 %v205
    %v651 = vunpack.c.h.b16 %v205
    %v652 = vunpack.c.l.b16 %v206
    %v653 = vunpack.c.h.b16 %v206
    %v654 = vunpack.c.l.b16 %v207
    %v655 = vunpack.c.h.b16 %v207
    %v656 = vunpack.c.l.b16 %v208
    %v657 = vunpack.c.h.b16 %v208
    %v658 = vunpack.c.l.b16 %v209
    %v659 = vunpack.c.h.b16 %v209
    %v660 = vunpack.c.l.b16 %v210
    %v661 = vunpack.c.h.b16 %v210
    %v662 = vunpack.c.l.b16 %v211
    %v663 = vunpack.c.h.b16 %v211
    %v664 = vunpack.c.l.b16 %v212
    %v665 = vunpack.c.h.b16 %v212
    %v666 = vpack.c.b16 %v418, %v410
    %v667 = vpack.c.b16 %v419, %v411
    %v668 = vpack.c.b16 %v420, %v412
    %v669 = vpack.c.b16 %v421, %v413
    %v670 = vpack.c.b16 %v422, %v414
    %v671 = vpack.c.b16 %v423, %v415
    %v672 = vpack.c.b16 %v424, %v416
    %v673 = vpack.c.b16 %v425, %v417
    %v674 = vpack.c.b16 %v434, %v426
    %v675 = vpack.c.b16 %v435, %v427
    %v676 = vpack.c.b16 %v436, %v428
    %v677 = vpack.c.b16 %v437, %v429
    %v678 = vpack.c.b16 %v438, %v430
    %v679 = vpack.c.b16 %v439, %v431
    %v680 = vpack.c.b16 %v440, %v432
    %v681 = vpack.c.b16 %v441, %v433
    %v682 = vpack.c.b16 %v450, %v442
    %v683 = vpack.c.b16 %v451, %v443
    %v684 = vpack.c.b16 %v452, %v444
    %v685 = vpack.c.b16 %v453, %v445
    %v686 = vpack.c.b16 %v454, %v446
    %v687 = vpack.c.b16 %v455, %v447
    %v688 = vpack.c.b16 %v456, %v448
    %v689 = vpack.c.b16 %v457, %v449
    %v690 = vpack.c.b16 %v466, %v458
    %v691 = vpack.c.b16 %v467, %v459
    %v692 = vpack.c.b16 %v468, %v460
    %v693 = vpack.c.b16 %v469, %v461
    %v694 = vpack.c.b16 %v470, %v462
    %v695 = vpack.c.b16 %v471, %v463
    %v696 = vpack.c.b16 %v472, %v464
    %v697 = vpack.c.b16 %v473, %v465
    %v698 = vpack.c.b16 %v482, %v474
    %v699 = vpack.c.b16 %v483, %v475
    %v700 = vpack.c.b16 %v484, %v476
    %v701 = vpack.c.b16 %v485, %v477
    %v702 = vpack.c.b16 %v486, %v478
    %v703 = vpack.c.b16 %v487, %v479
    %v704 = vpack.c.b16 %v488, %v480
    %v705 = vpack.c.b16 %v489, %v481
    %v706 = vpack.c.b16 %v498, %v490
    %v707 = vpack.c.b16 %v499, %v491
    %v708 = vpack.c.b16 %v500, %v492
    %v709 = vpack.c.b16 %v501, %v493
    %v710 = vpack.c.b16 %v502, %v494
    %v711 = vpack.c.b16 %v503, %v495
    %v712 = vpack.c.b16 %v504, %v496
    %v713 = vpack.c.b16 %v505, %v497
    %v714 = vpack.c.b16 %v514, %v506
    %v715 = vpack.c.b16 %v515, %v507
    %v716 = vpack.c.b16 %v516, %v508
    %v717 = vpack.c.b16 %v517, %v509
    %v718 = vpack.c.b16 %v518, %v510
    %v719 = vpack.c.b16 %v519, %v511
    %v720 = vpack.c.b16 %v520, %v512
    %v721 = vpack.c.b16 %v521, %v513
    %v722 = vpack.c.b16 %v530, %v522
    %v723 = vpack.c.b16 %v531, %v523
    %v724 = vpack.c.b16 %v532, %v524
    %v725 = vpack.c.b16 %v533, %v525
    %v726 = vpack.c.b16 %v534, %v526
    %v727 = vpack.c.b16 %v535, %v527
    %v728 = vpack.c.b16 %v536, %v528
    %v729 = vpack.c.b16 %v537, %v529
    %v730 = vpack.c.b16 %v546, %v538
    %v731 = vpack.c.b16 %v547, %v539
    %v732 = vpack.c.b16 %v548, %v540
    %v733 = vpack.c.b16 %v549, %v541
    %v734 = vpack.c.b16 %v550, %v542
    %v735 = vpack.c.b16 %v551, %v543
    %v736 = vpack.c.b16 %v552, %v544
    %v737 = vpack.c.b16 %v553, %v545
    %v738 = vpack.c.b16 %v562, %v554
    %v739 = vpack.c.b16 %v563, %v555
    %v740 = vpack.c.b16 %v564, %v556
    %v741 = vpack.c.b16 %v565, %v557
    %v742 = vpack.c.b16 %v566, %v558
    %v743 = vpack.c.b16 %v567, %v559
    %v744 = vpack.c.b16 %v568, %v560
    %v745 = vpack.c.b16 %v569, %v561
    %v746 = vpack.c.b16 %v578, %v570
    %v747 = vpack.c.b16 %v579, %v571
    %v748 = vpack.c.b16 %v580, %v572
    %v749 = vpack.c.b16 %v581, %v573
    %v750 = vpack.c.b16 %v582, %v574
    %v751 = vpack.c.b16 %v583, %v575
    %v752 = vpack.c.b16 %v584, %v576
    %v753 = vpack.c.b16 %v585, %v577
    %v754 = vpack.c.b16 %v594, %v586
    %v755 = vpack.c.b16 %v595, %v587
    %v756 = vpack.c.b16 %v596, %v588
    %v757 = vpack.c.b16 %v597, %v589
    %v758 = vpack.c.b16 %v598, %v590
    %v759 = vpack.c.b16 %v599, %v591
    %v760 = vpack.c.b16 %v600, %v592
    %v761 = vpack.c.b16 %v601, %v593
    %v762 = vpack.c.b16 %v610, %v602
    %v763 = vpack.c.b16 %v611, %v603
    %v764 = vpack.c.b16 %v612, %v604
    %v765 = vpack.c.b16 %v613, %v605
    %v766 = vpack.c.b16 %v614, %v606
    %v767 = vpack.c.b16 %v615, %v607
    %v768 = vpack.c.b16 %v616, %v608
    %v769 = vpack.c.b16 %v617, %v609
    %v770 = vpack.c.b16 %v626, %v618
    %v771 = vpack.c.b16 %v627, %v619
    %v772 = vpack.c.b16 %v628, %v620
    %v773 = vpack.c.b16 %v629, %v621
    %v774 = vpack.c.b16 %v630, %v622
    %v775 = vpack.c.b16 %v631, %v623
    %v776 = vpack.c.b16 %v632, %v624
    %v777 = vpack.c.b16 %v633, %v625
    %v778 = vpack.c.b16 %v642, %v634
    %v779 = vpack.c.b16 %v643, %v635
    %v780 = vpack.c.b16 %v644, %v636
    %v781 = vpack.c.b16 %v645, %v637
    %v782 = vpack.c.b16 %v646, %v638
    %v783 = vpack.c.b16 %v647, %v639
    %v784 = vpack.c.b16 %v648, %v640
    %v785 = vpack.c.b16 %v649, %v641
    %v786 = vpack.c.b16 %v658, %v650
    %v787 = vpack.c.b16 %v659, %v651
    %v788 = vpack.c.b16 %v660, %v652
    %v789 = vpack.c.b16 %v661, %v653
    %v790 = vpack.c.b16 %v662, %v654
    %v791 = vpack.c.b16 %v663, %v655
    %v792 = vpack.c.b16 %v664, %v656
    %v793 = vpack.c.b16 %v665, %v657
    %922 = vmatprep.subr.bf16.mxu0 %v723
    %923 = vmatpush1.bf16.msra.mxu0 %v722
    %924 = vmatprep.subr.bf16.mxu0 %v715
    %925 = vmatpush1.bf16.msra.mxu0 %v714
    %926 = vmatprep.subr.bf16.mxu0 %v707
    %927 = vmatpush1.bf16.msra.mxu0 %v706
    %928 = vmatprep.subr.bf16.mxu0 %v699
    %929 = vmatpush1.bf16.msra.mxu0 %v698
    %930 = vmatprep.subr.bf16.mxu0 %v691
    %931 = vmatpush1.bf16.msra.mxu0 %v690
    %932 = vmatprep.subr.bf16.mxu0 %v683
    %933 = vmatpush1.bf16.msra.mxu0 %v682
    %934 = vmatprep.subr.bf16.mxu0 %v675
    %935 = vmatpush1.bf16.msra.mxu0 %v674
    %936 = vmatprep.subr.bf16.mxu0 %v667
    %937 = vmatpush1.bf16.msra.mxu0 %v666
    %938 = vmatprep.subr.bf16.mxu0 %v787
    %939 = vmatpush2.bf16.msra.mxu0 %v786
    %940 = vmatprep.subr.bf16.mxu0 %v779
    %941 = vmatpush2.bf16.msra.mxu0 %v778
    %942 = vmatprep.subr.bf16.mxu0 %v771
    %943 = vmatpush2.bf16.msra.mxu0 %v770
    %944 = vmatprep.subr.bf16.mxu0 %v763
    %945 = vmatpush2.bf16.msra.mxu0 %v762
    %946 = vmatprep.subr.bf16.mxu0 %v755
    %947 = vmatpush2.bf16.msra.mxu0 %v754
    %948 = vmatprep.subr.bf16.mxu0 %v747
    %949 = vmatpush2.bf16.msra.mxu0 %v746
    %950 = vmatprep.subr.bf16.mxu0 %v739
    %951 = vmatpush2.bf16.msra.mxu0 %v738
    %952 = vmatprep.subr.bf16.mxu0 %v731
    %953 = vmatpush2.bf16.msra.mxu0 %v730
    %954 = vmatprep.mubr.bf16.mxu0 %v279
    %955 = vmatmul.mubr.bf16.gmra.mxu0 %v272
    %v956 = vpop.f32.mrf.mxu0
    %v957 = vadd.f32 %v220, %v956
    %v958 = vpop.f32.mrf.mxu0
    %v959 = vadd.f32 %v224, %v958
    %v960 = vpop.f32.mrf.mxu0
    %v961 = vpop.f32.mrf.mxu0
    %962 = vdwg.mxu0
    %963 = vmatprep.subr.bf16.mxu0 %v725
    %964 = vmatpush1.bf16.msra.mxu0 %v724
    %965 = vmatprep.subr.bf16.mxu0 %v717
    %966 = vmatpush1.bf16.msra.mxu0 %v716
    %967 = vmatprep.subr.bf16.mxu0 %v709
    %968 = vmatpush1.bf16.msra.mxu0 %v708
    %969 = vmatprep.subr.bf16.mxu0 %v701
    %970 = vmatpush1.bf16.msra.mxu0 %v700
    %971 = vmatprep.subr.bf16.mxu0 %v693
    %972 = vmatpush1.bf16.msra.mxu0 %v692
    %973 = vmatprep.subr.bf16.mxu0 %v685
    %974 = vmatpush1.bf16.msra.mxu0 %v684
    %975 = vmatprep.subr.bf16.mxu0 %v677
    %976 = vmatpush1.bf16.msra.mxu0 %v676
    %977 = vmatprep.subr.bf16.mxu0 %v669
    %978 = vmatpush1.bf16.msra.mxu0 %v668
    %979 = vmatprep.subr.bf16.mxu0 %v789
    %980 = vmatpush2.bf16.msra.mxu0 %v788
    %981 = vmatprep.subr.bf16.mxu0 %v781
    %982 = vmatpush2.bf16.msra.mxu0 %v780
    %983 = vmatprep.subr.bf16.mxu0 %v773
    %984 = vmatpush2.bf16.msra.mxu0 %v772
    %985 = vmatprep.subr.bf16.mxu0 %v765
    %986 = vmatpush2.bf16.msra.mxu0 %v764
    %987 = vmatprep.subr.bf16.mxu0 %v757
    %988 = vmatpush2.bf16.msra.mxu0 %v756
    %989 = vmatprep.subr.bf16.mxu0 %v749
    %990 = vmatpush2.bf16.msra.mxu0 %v748
    %991 = vmatprep.subr.bf16.mxu0 %v741
    %992 = vmatpush2.bf16.msra.mxu0 %v740
    %993 = vmatprep.subr.bf16.mxu0 %v733
    %994 = vmatpush2.bf16.msra.mxu0 %v732
    %995 = vmatprep.mubr.bf16.mxu0 %v279
    %996 = vmatmul.mubr.bf16.gmra.mxu0 %v272
    %v997 = vpop.f32.mrf.mxu0
    %v998 = vadd.f32 %v228, %v997
    %v999 = vpop.f32.mrf.mxu0
    %v1000 = vadd.f32 %v232, %v999
    %v1001 = vpop.f32.mrf.mxu0
    %v1002 = vpop.f32.mrf.mxu0
    %1003 = vdwg.mxu0
    %1004 = vmatprep.subr.bf16.mxu0 %v727
    %1005 = vmatpush1.bf16.msra.mxu0 %v726
    %1006 = vmatprep.subr.bf16.mxu0 %v719
    %1007 = vmatpush1.bf16.msra.mxu0 %v718
    %1008 = vmatprep.subr.bf16.mxu0 %v711
    %1009 = vmatpush1.bf16.msra.mxu0 %v710
    %1010 = vmatprep.subr.bf16.mxu0 %v703
    %1011 = vmatpush1.bf16.msra.mxu0 %v702
    %1012 = vmatprep.subr.bf16.mxu0 %v695
    %1013 = vmatpush1.bf16.msra.mxu0 %v694
    %1014 = vmatprep.subr.bf16.mxu0 %v687
    %1015 = vmatpush1.bf16.msra.mxu0 %v686
    %1016 = vmatprep.subr.bf16.mxu0 %v679
    %1017 = vmatpush1.bf16.msra.mxu0 %v678
    %1018 = vmatprep.subr.bf16.mxu0 %v671
    %1019 = vmatpush1.bf16.msra.mxu0 %v670
    %1020 = vmatprep.subr.bf16.mxu0 %v791
    %1021 = vmatpush2.bf16.msra.mxu0 %v790
    %1022 = vmatprep.subr.bf16.mxu0 %v783
    %1023 = vmatpush2.bf16.msra.mxu0 %v782
    %1024 = vmatprep.subr.bf16.mxu0 %v775
    %1025 = vmatpush2.bf16.msra.mxu0 %v774
    %1026 = vmatprep.subr.bf16.mxu0 %v767
    %1027 = vmatpush2.bf16.msra.mxu0 %v766
    %1028 = vmatprep.subr.bf16.mxu0 %v759
    %1029 = vmatpush2.bf16.msra.mxu0 %v758
    %1030 = vmatprep.subr.bf16.mxu0 %v751
    %1031 = vmatpush2.bf16.msra.mxu0 %v750
    %1032 = vmatprep.subr.bf16.mxu0 %v743
    %1033 = vmatpush2.bf16.msra.mxu0 %v742
    %1034 = vmatprep.subr.bf16.mxu0 %v735
    %1035 = vmatpush2.bf16.msra.mxu0 %v734
    %1036 = vmatprep.mubr.bf16.mxu0 %v279
    %1037 = vmatmul.mubr.bf16.gmra.mxu0 %v272
    %v1038 = vpop.f32.mrf.mxu0
    %v1039 = vadd.f32 %v236, %v1038
    %v1040 = vpop.f32.mrf.mxu0
    %v1041 = vadd.f32 %v240, %v1040
    %v1042 = vpop.f32.mrf.mxu0
    %v1043 = vpop.f32.mrf.mxu0
    %1044 = vdwg.mxu0
    %1045 = vmatprep.subr.bf16.mxu0 %v729
    %1046 = vmatpush1.bf16.msra.mxu0 %v728
    %1047 = vmatprep.subr.bf16.mxu0 %v721
    %1048 = vmatpush1.bf16.msra.mxu0 %v720
    %1049 = vmatprep.subr.bf16.mxu0 %v713
    %1050 = vmatpush1.bf16.msra.mxu0 %v712
    %1051 = vmatprep.subr.bf16.mxu0 %v705
    %1052 = vmatpush1.bf16.msra.mxu0 %v704
    %1053 = vmatprep.subr.bf16.mxu0 %v697
    %1054 = vmatpush1.bf16.msra.mxu0 %v696
    %1055 = vmatprep.subr.bf16.mxu0 %v689
    %1056 = vmatpush1.bf16.msra.mxu0 %v688
    %1057 = vmatprep.subr.bf16.mxu0 %v681
    %1058 = vmatpush1.bf16.msra.mxu0 %v680
    %1059 = vmatprep.subr.bf16.mxu0 %v673
    %1060 = vmatpush1.bf16.msra.mxu0 %v672
    %1061 = vmatprep.subr.bf16.mxu0 %v793
    %1062 = vmatpush2.bf16.msra.mxu0 %v792
    %1063 = vmatprep.subr.bf16.mxu0 %v785
    %1064 = vmatpush2.bf16.msra.mxu0 %v784
    %1065 = vmatprep.subr.bf16.mxu0 %v777
    %1066 = vmatpush2.bf16.msra.mxu0 %v776
    %1067 = vmatprep.subr.bf16.mxu0 %v769
    %1068 = vmatpush2.bf16.msra.mxu0 %v768
    %1069 = vmatprep.subr.bf16.mxu0 %v761
    %1070 = vmatpush2.bf16.msra.mxu0 %v760
    %1071 = vmatprep.subr.bf16.mxu0 %v753
    %1072 = vmatpush2.bf16.msra.mxu0 %v752
    %1073 = vmatprep.subr.bf16.mxu0 %v745
    %1074 = vmatpush2.bf16.msra.mxu0 %v744
    %1075 = vmatprep.subr.bf16.mxu0 %v737
    %1076 = vmatpush2.bf16.msra.mxu0 %v736
    %1077 = vmatprep.mubr.bf16.mxu0 %v279
    %1078 = vmatmul.mubr.bf16.gmra.mxu0 %v272
    %v1079 = vpop.f32.mrf.mxu0
    %v1080 = vadd.f32 %v244, %v1079
    %v1081 = vpop.f32.mrf.mxu0
    %v1082 = vadd.f32 %v248, %v1081
    %v1083 = vpop.f32.mrf.mxu0
    %v1084 = vpop.f32.mrf.mxu0
    %1085 = vdwg.mxu0
    %vm1086 = vcmp.ge.f32.partialorder %v957, 0.0
    %vm1087 = vcmp.ge.f32.partialorder %v959, 0.0
    %vm1088 = vcmp.ge.f32.partialorder %v998, 0.0
    %vm1089 = vcmp.ge.f32.partialorder %v1000, 0.0
    %vm1090 = vcmp.ge.f32.partialorder %v1039, 0.0
    %vm1091 = vcmp.ge.f32.partialorder %v1041, 0.0
    %vm1092 = vcmp.ge.f32.partialorder %v1080, 0.0
    %vm1093 = vcmp.ge.f32.partialorder %v1082, 0.0
    %v1094 = vmul.f32 %v957, 0.01
    %v1095 = vmul.f32 %v959, 0.01
    %v1096 = vmul.f32 %v998, 0.01
    %v1097 = vmul.f32 %v1000, 0.01
    %v1098 = vmul.f32 %v1039, 0.01
    %v1099 = vmul.f32 %v1041, 0.01
    %v1100 = vmul.f32 %v1080, 0.01
    %v1101 = vmul.f32 %v1082, 0.01
    %v1102 = vsel %vm1086, %v957, %v1094
    %v1103 = vsel %vm1087, %v959, %v1095
    %v1104 = vsel %vm1088, %v998, %v1096
    %v1105 = vsel %vm1089, %v1000, %v1097
    %v1106 = vsel %vm1090, %v1039, %v1098
    %v1107 = vsel %vm1091, %v1041, %v1099
    %v1108 = vsel %vm1092, %v1080, %v1100
    %v1109 = vsel %vm1093, %v1082, %v1101
    %v1110 = vpack.c.bf16 %v1102, %v1102
    %v1111 = vpack.c.bf16 %v1103, %v1103
    %v1112 = vpack.c.bf16 %v1104, %v1104
    %v1113 = vpack.c.bf16 %v1105, %v1105
    %v1114 = vpack.c.bf16 %v1106, %v1106
    %v1115 = vpack.c.bf16 %v1107, %v1107
    %v1116 = vpack.c.bf16 %v1108, %v1108
    %v1117 = vpack.c.bf16 %v1109, %v1109
    %v1118 = vld [vmem:[#allocation5] sm:$0xff]
    %v1119 = vld [vmem:[#allocation5 + $0x8] sm:$0xff]
    %v1120 = vld [vmem:[#allocation5 + $0x10] sm:$0xff]
    %v1121 = vld [vmem:[#allocation5 + $0x18] sm:$0xff]
    %v1122 = vld [vmem:[#allocation5 + $0x20] sm:$0xff]
    %v1123 = vld [vmem:[#allocation5 + $0x28] sm:$0xff]
    %v1124 = vld [vmem:[#allocation5 + $0x30] sm:$0xff]
    %v1125 = vld [vmem:[#allocation5 + $0x38] sm:$0xff]
    %v1126 = vld [vmem:[#allocation5 + $0x40] sm:$0xff]
    %v1127 = vld [vmem:[#allocation5 + $0x48] sm:$0xff]
    %v1128 = vld [vmem:[#allocation5 + $0x50] sm:$0xff]
    %v1129 = vld [vmem:[#allocation5 + $0x58] sm:$0xff]
    %v1130 = vld [vmem:[#allocation5 + $0x60] sm:$0xff]
    %v1131 = vld [vmem:[#allocation5 + $0x68] sm:$0xff]
    %v1132 = vld [vmem:[#allocation5 + $0x70] sm:$0xff]
    %v1133 = vld [vmem:[#allocation5 + $0x78] sm:$0xff]
    %v1134 = vld [vmem:[#allocation5 + $0x80] sm:$0xff]
    %v1135 = vld [vmem:[#allocation5 + $0x88] sm:$0xff]
    %v1136 = vld [vmem:[#allocation5 + $0x90] sm:$0xff]
    %v1137 = vld [vmem:[#allocation5 + $0x98] sm:$0xff]
    %v1138 = vld [vmem:[#allocation5 + $0xa0] sm:$0xff]
    %v1139 = vld [vmem:[#allocation5 + $0xa8] sm:$0xff]
    %v1140 = vld [vmem:[#allocation5 + $0xb0] sm:$0xff]
    %v1141 = vld [vmem:[#allocation5 + $0xb8] sm:$0xff]
    %v1142 = vld [vmem:[#allocation5 + $0xc0] sm:$0xff]
    %v1143 = vld [vmem:[#allocation5 + $0xc8] sm:$0xff]
    %v1144 = vld [vmem:[#allocation5 + $0xd0] sm:$0xff]
    %v1145 = vld [vmem:[#allocation5 + $0xd8] sm:$0xff]
    %v1146 = vld [vmem:[#allocation5 + $0xe0] sm:$0xff]
    %v1147 = vld [vmem:[#allocation5 + $0xe8] sm:$0xff]
    %v1148 = vld [vmem:[#allocation5 + $0xf0] sm:$0xff]
    %v1149 = vld [vmem:[#allocation5 + $0xf8] sm:$0xff]
    %v1150 = vld [vmem:[#allocation5 + $0x100] sm:$0xff]
    %v1151 = vld [vmem:[#allocation5 + $0x108] sm:$0xff]
    %v1152 = vld [vmem:[#allocation5 + $0x110] sm:$0xff]
    %v1153 = vld [vmem:[#allocation5 + $0x118] sm:$0xff]
    %v1154 = vld [vmem:[#allocation5 + $0x120] sm:$0xff]
    %v1155 = vld [vmem:[#allocation5 + $0x128] sm:$0xff]
    %v1156 = vld [vmem:[#allocation5 + $0x130] sm:$0xff]
    %v1157 = vld [vmem:[#allocation5 + $0x138] sm:$0xff]
    %v1158 = vld [vmem:[#allocation5 + $0x140] sm:$0xff]
    %v1159 = vld [vmem:[#allocation5 + $0x148] sm:$0xff]
    %v1160 = vld [vmem:[#allocation5 + $0x150] sm:$0xff]
    %v1161 = vld [vmem:[#allocation5 + $0x158] sm:$0xff]
    %v1162 = vld [vmem:[#allocation5 + $0x160] sm:$0xff]
    %v1163 = vld [vmem:[#allocation5 + $0x168] sm:$0xff]
    %v1164 = vld [vmem:[#allocation5 + $0x170] sm:$0xff]
    %v1165 = vld [vmem:[#allocation5 + $0x178] sm:$0xff]
    %v1166 = vld [vmem:[#allocation5 + $0x180] sm:$0xff]
    %v1167 = vld [vmem:[#allocation5 + $0x188] sm:$0xff]
    %v1168 = vld [vmem:[#allocation5 + $0x190] sm:$0xff]
    %v1169 = vld [vmem:[#allocation5 + $0x198] sm:$0xff]
    %v1170 = vld [vmem:[#allocation5 + $0x1a0] sm:$0xff]
    %v1171 = vld [vmem:[#allocation5 + $0x1a8] sm:$0xff]
    %v1172 = vld [vmem:[#allocation5 + $0x1b0] sm:$0xff]
    %v1173 = vld [vmem:[#allocation5 + $0x1b8] sm:$0xff]
    %v1174 = vld [vmem:[#allocation5 + $0x1c0] sm:$0xff]
    %v1175 = vld [vmem:[#allocation5 + $0x1c8] sm:$0xff]
    %v1176 = vld [vmem:[#allocation5 + $0x1d0] sm:$0xff]
    %v1177 = vld [vmem:[#allocation5 + $0x1d8] sm:$0xff]
    %v1178 = vld [vmem:[#allocation5 + $0x1e0] sm:$0xff]
    %v1179 = vld [vmem:[#allocation5 + $0x1e8] sm:$0xff]
    %v1180 = vld [vmem:[#allocation5 + $0x1f0] sm:$0xff]
    %v1181 = vld [vmem:[#allocation5 + $0x1f8] sm:$0xff]
    %v1182 = vld [vmem:[#allocation5 + $0x200] sm:$0xff]
    %v1183 = vld [vmem:[#allocation5 + $0x208] sm:$0xff]
    %v1184 = vld [vmem:[#allocation5 + $0x210] sm:$0xff]
    %v1185 = vld [vmem:[#allocation5 + $0x218] sm:$0xff]
    %v1186 = vld [vmem:[#allocation5 + $0x220] sm:$0xff]
    %v1187 = vld [vmem:[#allocation5 + $0x228] sm:$0xff]
    %v1188 = vld [vmem:[#allocation5 + $0x230] sm:$0xff]
    %v1189 = vld [vmem:[#allocation5 + $0x238] sm:$0xff]
    %v1190 = vld [vmem:[#allocation5 + $0x240] sm:$0xff]
    %v1191 = vld [vmem:[#allocation5 + $0x248] sm:$0xff]
    %v1192 = vld [vmem:[#allocation5 + $0x250] sm:$0xff]
    %v1193 = vld [vmem:[#allocation5 + $0x258] sm:$0xff]
    %v1194 = vld [vmem:[#allocation5 + $0x260] sm:$0xff]
    %v1195 = vld [vmem:[#allocation5 + $0x268] sm:$0xff]
    %v1196 = vld [vmem:[#allocation5 + $0x270] sm:$0xff]
    %v1197 = vld [vmem:[#allocation5 + $0x278] sm:$0xff]
    %v1198 = vld [vmem:[#allocation5 + $0x280] sm:$0xff]
    %v1199 = vld [vmem:[#allocation5 + $0x288] sm:$0xff]
    %v1200 = vld [vmem:[#allocation5 + $0x290] sm:$0xff]
    %v1201 = vld [vmem:[#allocation5 + $0x298] sm:$0xff]
    %v1202 = vld [vmem:[#allocation5 + $0x2a0] sm:$0xff]
    %v1203 = vld [vmem:[#allocation5 + $0x2a8] sm:$0xff]
    %v1204 = vld [vmem:[#allocation5 + $0x2b0] sm:$0xff]
    %v1205 = vld [vmem:[#allocation5 + $0x2b8] sm:$0xff]
    %v1206 = vld [vmem:[#allocation5 + $0x2c0] sm:$0xff]
    %v1207 = vld [vmem:[#allocation5 + $0x2c8] sm:$0xff]
    %v1208 = vld [vmem:[#allocation5 + $0x2d0] sm:$0xff]
    %v1209 = vld [vmem:[#allocation5 + $0x2d8] sm:$0xff]
    %v1210 = vld [vmem:[#allocation5 + $0x2e0] sm:$0xff]
    %v1211 = vld [vmem:[#allocation5 + $0x2e8] sm:$0xff]
    %v1212 = vld [vmem:[#allocation5 + $0x2f0] sm:$0xff]
    %v1213 = vld [vmem:[#allocation5 + $0x2f8] sm:$0xff]
    %v1214 = vld [vmem:[#allocation5 + $0x300] sm:$0xff]
    %v1215 = vld [vmem:[#allocation5 + $0x308] sm:$0xff]
    %v1216 = vld [vmem:[#allocation5 + $0x310] sm:$0xff]
    %v1217 = vld [vmem:[#allocation5 + $0x318] sm:$0xff]
    %v1218 = vld [vmem:[#allocation5 + $0x320] sm:$0xff]
    %v1219 = vld [vmem:[#allocation5 + $0x328] sm:$0xff]
    %v1220 = vld [vmem:[#allocation5 + $0x330] sm:$0xff]
    %v1221 = vld [vmem:[#allocation5 + $0x338] sm:$0xff]
    %v1222 = vld [vmem:[#allocation5 + $0x340] sm:$0xff]
    %v1223 = vld [vmem:[#allocation5 + $0x348] sm:$0xff]
    %v1224 = vld [vmem:[#allocation5 + $0x350] sm:$0xff]
    %v1225 = vld [vmem:[#allocation5 + $0x358] sm:$0xff]
    %v1226 = vld [vmem:[#allocation5 + $0x360] sm:$0xff]
    %v1227 = vld [vmem:[#allocation5 + $0x368] sm:$0xff]
    %v1228 = vld [vmem:[#allocation5 + $0x370] sm:$0xff]
    %v1229 = vld [vmem:[#allocation5 + $0x378] sm:$0xff]
    %v1230 = vld [vmem:[#allocation5 + $0x380] sm:$0xff]
    %v1231 = vld [vmem:[#allocation5 + $0x388] sm:$0xff]
    %v1232 = vld [vmem:[#allocation5 + $0x390] sm:$0xff]
    %v1233 = vld [vmem:[#allocation5 + $0x398] sm:$0xff]
    %v1234 = vld [vmem:[#allocation5 + $0x3a0] sm:$0xff]
    %v1235 = vld [vmem:[#allocation5 + $0x3a8] sm:$0xff]
    %v1236 = vld [vmem:[#allocation5 + $0x3b0] sm:$0xff]
    %v1237 = vld [vmem:[#allocation5 + $0x3b8] sm:$0xff]
    %v1238 = vld [vmem:[#allocation5 + $0x3c0] sm:$0xff]
    %v1239 = vld [vmem:[#allocation5 + $0x3c8] sm:$0xff]
    %v1240 = vld [vmem:[#allocation5 + $0x3d0] sm:$0xff]
    %v1241 = vld [vmem:[#allocation5 + $0x3d8] sm:$0xff]
    %v1242 = vld [vmem:[#allocation5 + $0x3e0] sm:$0xff]
    %v1243 = vld [vmem:[#allocation5 + $0x3e8] sm:$0xff]
    %v1244 = vld [vmem:[#allocation5 + $0x3f0] sm:$0xff]
    %v1245 = vld [vmem:[#allocation5 + $0x3f8] sm:$0xff]
    %v1246 = vld [vmem:[#allocation5 + $0x400] sm:$0xff]
    %v1247 = vld [vmem:[#allocation5 + $0x408] sm:$0xff]
    %v1248 = vld [vmem:[#allocation5 + $0x410] sm:$0xff]
    %v1249 = vld [vmem:[#allocation5 + $0x418] sm:$0xff]
    %v1250 = vld [vmem:[#allocation5 + $0x420] sm:$0xff]
    %v1251 = vld [vmem:[#allocation5 + $0x428] sm:$0xff]
    %v1252 = vld [vmem:[#allocation5 + $0x430] sm:$0xff]
    %v1253 = vld [vmem:[#allocation5 + $0x438] sm:$0xff]
    %v1254 = vld [vmem:[#allocation5 + $0x440] sm:$0xff]
    %v1255 = vld [vmem:[#allocation5 + $0x448] sm:$0xff]
    %v1256 = vld [vmem:[#allocation5 + $0x450] sm:$0xff]
    %v1257 = vld [vmem:[#allocation5 + $0x458] sm:$0xff]
    %v1258 = vld [vmem:[#allocation5 + $0x460] sm:$0xff]
    %v1259 = vld [vmem:[#allocation5 + $0x468] sm:$0xff]
    %v1260 = vld [vmem:[#allocation5 + $0x470] sm:$0xff]
    %v1261 = vld [vmem:[#allocation5 + $0x478] sm:$0xff]
    %v1262 = vld [vmem:[#allocation5 + $0x480] sm:$0xff]
    %v1263 = vld [vmem:[#allocation5 + $0x488] sm:$0xff]
    %v1264 = vld [vmem:[#allocation5 + $0x490] sm:$0xff]
    %v1265 = vld [vmem:[#allocation5 + $0x498] sm:$0xff]
    %v1266 = vld [vmem:[#allocation5 + $0x4a0] sm:$0xff]
    %v1267 = vld [vmem:[#allocation5 + $0x4a8] sm:$0xff]
    %v1268 = vld [vmem:[#allocation5 + $0x4b0] sm:$0xff]
    %v1269 = vld [vmem:[#allocation5 + $0x4b8] sm:$0xff]
    %v1270 = vld [vmem:[#allocation5 + $0x4c0] sm:$0xff]
    %v1271 = vld [vmem:[#allocation5 + $0x4c8] sm:$0xff]
    %v1272 = vld [vmem:[#allocation5 + $0x4d0] sm:$0xff]
    %v1273 = vld [vmem:[#allocation5 + $0x4d8] sm:$0xff]
    %v1274 = vld [vmem:[#allocation5 + $0x4e0] sm:$0xff]
    %v1275 = vld [vmem:[#allocation5 + $0x4e8] sm:$0xff]
    %v1276 = vld [vmem:[#allocation5 + $0x4f0] sm:$0xff]
    %v1277 = vld [vmem:[#allocation5 + $0x4f8] sm:$0xff]
    %v1278 = vld [vmem:[#allocation5 + $0x500] sm:$0xff]
    %v1279 = vld [vmem:[#allocation5 + $0x508] sm:$0xff]
    %v1280 = vld [vmem:[#allocation5 + $0x510] sm:$0xff]
    %v1281 = vld [vmem:[#allocation5 + $0x518] sm:$0xff]
    %v1282 = vld [vmem:[#allocation5 + $0x520] sm:$0xff]
    %v1283 = vld [vmem:[#allocation5 + $0x528] sm:$0xff]
    %v1284 = vld [vmem:[#allocation5 + $0x530] sm:$0xff]
    %v1285 = vld [vmem:[#allocation5 + $0x538] sm:$0xff]
    %v1286 = vld [vmem:[#allocation5 + $0x540] sm:$0xff]
    %v1287 = vld [vmem:[#allocation5 + $0x548] sm:$0xff]
    %v1288 = vld [vmem:[#allocation5 + $0x550] sm:$0xff]
    %v1289 = vld [vmem:[#allocation5 + $0x558] sm:$0xff]
    %v1290 = vld [vmem:[#allocation5 + $0x560] sm:$0xff]
    %v1291 = vld [vmem:[#allocation5 + $0x568] sm:$0xff]
    %v1292 = vld [vmem:[#allocation5 + $0x570] sm:$0xff]
    %v1293 = vld [vmem:[#allocation5 + $0x578] sm:$0xff]
    %v1294 = vld [vmem:[#allocation5 + $0x580] sm:$0xff]
    %v1295 = vld [vmem:[#allocation5 + $0x588] sm:$0xff]
    %v1296 = vld [vmem:[#allocation5 + $0x590] sm:$0xff]
    %v1297 = vld [vmem:[#allocation5 + $0x598] sm:$0xff]
    %v1298 = vld [vmem:[#allocation5 + $0x5a0] sm:$0xff]
    %v1299 = vld [vmem:[#allocation5 + $0x5a8] sm:$0xff]
    %v1300 = vld [vmem:[#allocation5 + $0x5b0] sm:$0xff]
    %v1301 = vld [vmem:[#allocation5 + $0x5b8] sm:$0xff]
    %v1302 = vld [vmem:[#allocation5 + $0x5c0] sm:$0xff]
    %v1303 = vld [vmem:[#allocation5 + $0x5c8] sm:$0xff]
    %v1304 = vld [vmem:[#allocation5 + $0x5d0] sm:$0xff]
    %v1305 = vld [vmem:[#allocation5 + $0x5d8] sm:$0xff]
    %v1306 = vld [vmem:[#allocation5 + $0x5e0] sm:$0xff]
    %v1307 = vld [vmem:[#allocation5 + $0x5e8] sm:$0xff]
    %v1308 = vld [vmem:[#allocation5 + $0x5f0] sm:$0xff]
    %v1309 = vld [vmem:[#allocation5 + $0x5f8] sm:$0xff]
    %v1310 = vld [vmem:[#allocation5 + $0x600] sm:$0xff]
    %v1311 = vld [vmem:[#allocation5 + $0x608] sm:$0xff]
    %v1312 = vld [vmem:[#allocation5 + $0x610] sm:$0xff]
    %v1313 = vld [vmem:[#allocation5 + $0x618] sm:$0xff]
    %v1314 = vld [vmem:[#allocation5 + $0x620] sm:$0xff]
    %v1315 = vld [vmem:[#allocation5 + $0x628] sm:$0xff]
    %v1316 = vld [vmem:[#allocation5 + $0x630] sm:$0xff]
    %v1317 = vld [vmem:[#allocation5 + $0x638] sm:$0xff]
    %v1318 = vld [vmem:[#allocation5 + $0x640] sm:$0xff]
    %v1319 = vld [vmem:[#allocation5 + $0x648] sm:$0xff]
    %v1320 = vld [vmem:[#allocation5 + $0x650] sm:$0xff]
    %v1321 = vld [vmem:[#allocation5 + $0x658] sm:$0xff]
    %v1322 = vld [vmem:[#allocation5 + $0x660] sm:$0xff]
    %v1323 = vld [vmem:[#allocation5 + $0x668] sm:$0xff]
    %v1324 = vld [vmem:[#allocation5 + $0x670] sm:$0xff]
    %v1325 = vld [vmem:[#allocation5 + $0x678] sm:$0xff]
    %v1326 = vld [vmem:[#allocation5 + $0x680] sm:$0xff]
    %v1327 = vld [vmem:[#allocation5 + $0x688] sm:$0xff]
    %v1328 = vld [vmem:[#allocation5 + $0x690] sm:$0xff]
    %v1329 = vld [vmem:[#allocation5 + $0x698] sm:$0xff]
    %v1330 = vld [vmem:[#allocation5 + $0x6a0] sm:$0xff]
    %v1331 = vld [vmem:[#allocation5 + $0x6a8] sm:$0xff]
    %v1332 = vld [vmem:[#allocation5 + $0x6b0] sm:$0xff]
    %v1333 = vld [vmem:[#allocation5 + $0x6b8] sm:$0xff]
    %v1334 = vld [vmem:[#allocation5 + $0x6c0] sm:$0xff]
    %v1335 = vld [vmem:[#allocation5 + $0x6c8] sm:$0xff]
    %v1336 = vld [vmem:[#allocation5 + $0x6d0] sm:$0xff]
    %v1337 = vld [vmem:[#allocation5 + $0x6d8] sm:$0xff]
    %v1338 = vld [vmem:[#allocation5 + $0x6e0] sm:$0xff]
    %v1339 = vld [vmem:[#allocation5 + $0x6e8] sm:$0xff]
    %v1340 = vld [vmem:[#allocation5 + $0x6f0] sm:$0xff]
    %v1341 = vld [vmem:[#allocation5 + $0x6f8] sm:$0xff]
    %v1342 = vld [vmem:[#allocation5 + $0x700] sm:$0xff]
    %v1343 = vld [vmem:[#allocation5 + $0x708] sm:$0xff]
    %v1344 = vld [vmem:[#allocation5 + $0x710] sm:$0xff]
    %v1345 = vld [vmem:[#allocation5 + $0x718] sm:$0xff]
    %v1346 = vld [vmem:[#allocation5 + $0x720] sm:$0xff]
    %v1347 = vld [vmem:[#allocation5 + $0x728] sm:$0xff]
    %v1348 = vld [vmem:[#allocation5 + $0x730] sm:$0xff]
    %v1349 = vld [vmem:[#allocation5 + $0x738] sm:$0xff]
    %v1350 = vld [vmem:[#allocation5 + $0x740] sm:$0xff]
    %v1351 = vld [vmem:[#allocation5 + $0x748] sm:$0xff]
    %v1352 = vld [vmem:[#allocation5 + $0x750] sm:$0xff]
    %v1353 = vld [vmem:[#allocation5 + $0x758] sm:$0xff]
    %v1354 = vld [vmem:[#allocation5 + $0x760] sm:$0xff]
    %v1355 = vld [vmem:[#allocation5 + $0x768] sm:$0xff]
    %v1356 = vld [vmem:[#allocation5 + $0x770] sm:$0xff]
    %v1357 = vld [vmem:[#allocation5 + $0x778] sm:$0xff]
    %v1358 = vld [vmem:[#allocation5 + $0x780] sm:$0xff]
    %v1359 = vld [vmem:[#allocation5 + $0x788] sm:$0xff]
    %v1360 = vld [vmem:[#allocation5 + $0x790] sm:$0xff]
    %v1361 = vld [vmem:[#allocation5 + $0x798] sm:$0xff]
    %v1362 = vld [vmem:[#allocation5 + $0x7a0] sm:$0xff]
    %v1363 = vld [vmem:[#allocation5 + $0x7a8] sm:$0xff]
    %v1364 = vld [vmem:[#allocation5 + $0x7b0] sm:$0xff]
    %v1365 = vld [vmem:[#allocation5 + $0x7b8] sm:$0xff]
    %v1366 = vld [vmem:[#allocation5 + $0x7c0] sm:$0xff]
    %v1367 = vld [vmem:[#allocation5 + $0x7c8] sm:$0xff]
    %v1368 = vld [vmem:[#allocation5 + $0x7d0] sm:$0xff]
    %v1369 = vld [vmem:[#allocation5 + $0x7d8] sm:$0xff]
    %v1370 = vld [vmem:[#allocation5 + $0x7e0] sm:$0xff]
    %v1371 = vld [vmem:[#allocation5 + $0x7e8] sm:$0xff]
    %v1372 = vld [vmem:[#allocation5 + $0x7f0] sm:$0xff]
    %v1373 = vld [vmem:[#allocation5 + $0x7f8] sm:$0xff]
    %s1374 = scalar_lea.vmem [#allocation8], 1
    %v1375 = vld [vmem:[%s1374] ss:$8 sm:$0xf]
    %v1377 = vlaneseq
    %v1378 = vshrl.u32 %v1377, 7
    %v1379 = vsub.s32 0, %v1378
    %v1380 = vrot.slane %v1375, %v1379
    %v1381 = vlaneseq
    %v1382 = vshrl.u32 %v1381, 7
    %v1383 = vsub.s32 1, %v1382
    %v1384 = vrot.slane %v1375, %v1383
    %v1385 = vlaneseq
    %v1386 = vshrl.u32 %v1385, 7
    %v1387 = vsub.s32 2, %v1386
    %v1388 = vrot.slane %v1375, %v1387
    %v1389 = vlaneseq
    %v1390 = vshrl.u32 %v1389, 7
    %v1391 = vsub.s32 3, %v1390
    %v1392 = vrot.slane %v1375, %v1391
    %v1653 = vunpack.c.l.b16 %v1118
    %v1654 = vunpack.c.h.b16 %v1118
    %v1655 = vunpack.c.l.b16 %v1119
    %v1656 = vunpack.c.h.b16 %v1119
    %v1657 = vunpack.c.l.b16 %v1120
    %v1658 = vunpack.c.h.b16 %v1120
    %v1659 = vunpack.c.l.b16 %v1121
    %v1660 = vunpack.c.h.b16 %v1121
    %v1661 = vunpack.c.l.b16 %v1122
    %v1662 = vunpack.c.h.b16 %v1122
    %v1663 = vunpack.c.l.b16 %v1123
    %v1664 = vunpack.c.h.b16 %v1123
    %v1665 = vunpack.c.l.b16 %v1124
    %v1666 = vunpack.c.h.b16 %v1124
    %v1667 = vunpack.c.l.b16 %v1125
    %v1668 = vunpack.c.h.b16 %v1125
    %v1669 = vunpack.c.l.b16 %v1126
    %v1670 = vunpack.c.h.b16 %v1126
    %v1671 = vunpack.c.l.b16 %v1127
    %v1672 = vunpack.c.h.b16 %v1127
    %v1673 = vunpack.c.l.b16 %v1128
    %v1674 = vunpack.c.h.b16 %v1128
    %v1675 = vunpack.c.l.b16 %v1129
    %v1676 = vunpack.c.h.b16 %v1129
    %v1677 = vunpack.c.l.b16 %v1130
    %v1678 = vunpack.c.h.b16 %v1130
    %v1679 = vunpack.c.l.b16 %v1131
    %v1680 = vunpack.c.h.b16 %v1131
    %v1681 = vunpack.c.l.b16 %v1132
    %v1682 = vunpack.c.h.b16 %v1132
    %v1683 = vunpack.c.l.b16 %v1133
    %v1684 = vunpack.c.h.b16 %v1133
    %v1685 = vunpack.c.l.b16 %v1134
    %v1686 = vunpack.c.h.b16 %v1134
    %v1687 = vunpack.c.l.b16 %v1135
    %v1688 = vunpack.c.h.b16 %v1135
    %v1689 = vunpack.c.l.b16 %v1136
    %v1690 = vunpack.c.h.b16 %v1136
    %v1691 = vunpack.c.l.b16 %v1137
    %v1692 = vunpack.c.h.b16 %v1137
    %v1693 = vunpack.c.l.b16 %v1138
    %v1694 = vunpack.c.h.b16 %v1138
    %v1695 = vunpack.c.l.b16 %v1139
    %v1696 = vunpack.c.h.b16 %v1139
    %v1697 = vunpack.c.l.b16 %v1140
    %v1698 = vunpack.c.h.b16 %v1140
    %v1699 = vunpack.c.l.b16 %v1141
    %v1700 = vunpack.c.h.b16 %v1141
    %v1701 = vunpack.c.l.b16 %v1142
    %v1702 = vunpack.c.h.b16 %v1142
    %v1703 = vunpack.c.l.b16 %v1143
    %v1704 = vunpack.c.h.b16 %v1143
    %v1705 = vunpack.c.l.b16 %v1144
    %v1706 = vunpack.c.h.b16 %v1144
    %v1707 = vunpack.c.l.b16 %v1145
    %v1708 = vunpack.c.h.b16 %v1145
    %v1709 = vunpack.c.l.b16 %v1146
    %v1710 = vunpack.c.h.b16 %v1146
    %v1711 = vunpack.c.l.b16 %v1147
    %v1712 = vunpack.c.h.b16 %v1147
    %v1713 = vunpack.c.l.b16 %v1148
    %v1714 = vunpack.c.h.b16 %v1148
    %v1715 = vunpack.c.l.b16 %v1149
    %v1716 = vunpack.c.h.b16 %v1149
    %v1717 = vunpack.c.l.b16 %v1150
    %v1718 = vunpack.c.h.b16 %v1150
    %v1719 = vunpack.c.l.b16 %v1151
    %v1720 = vunpack.c.h.b16 %v1151
    %v1721 = vunpack.c.l.b16 %v1152
    %v1722 = vunpack.c.h.b16 %v1152
    %v1723 = vunpack.c.l.b16 %v1153
    %v1724 = vunpack.c.h.b16 %v1153
    %v1725 = vunpack.c.l.b16 %v1154
    %v1726 = vunpack.c.h.b16 %v1154
    %v1727 = vunpack.c.l.b16 %v1155
    %v1728 = vunpack.c.h.b16 %v1155
    %v1729 = vunpack.c.l.b16 %v1156
    %v1730 = vunpack.c.h.b16 %v1156
    %v1731 = vunpack.c.l.b16 %v1157
    %v1732 = vunpack.c.h.b16 %v1157
    %v1733 = vunpack.c.l.b16 %v1158
    %v1734 = vunpack.c.h.b16 %v1158
    %v1735 = vunpack.c.l.b16 %v1159
    %v1736 = vunpack.c.h.b16 %v1159
    %v1737 = vunpack.c.l.b16 %v1160
    %v1738 = vunpack.c.h.b16 %v1160
    %v1739 = vunpack.c.l.b16 %v1161
    %v1740 = vunpack.c.h.b16 %v1161
    %v1741 = vunpack.c.l.b16 %v1162
    %v1742 = vunpack.c.h.b16 %v1162
    %v1743 = vunpack.c.l.b16 %v1163
    %v1744 = vunpack.c.h.b16 %v1163
    %v1745 = vunpack.c.l.b16 %v1164
    %v1746 = vunpack.c.h.b16 %v1164
    %v1747 = vunpack.c.l.b16 %v1165
    %v1748 = vunpack.c.h.b16 %v1165
    %v1749 = vunpack.c.l.b16 %v1166
    %v1750 = vunpack.c.h.b16 %v1166
    %v1751 = vunpack.c.l.b16 %v1167
    %v1752 = vunpack.c.h.b16 %v1167
    %v1753 = vunpack.c.l.b16 %v1168
    %v1754 = vunpack.c.h.b16 %v1168
    %v1755 = vunpack.c.l.b16 %v1169
    %v1756 = vunpack.c.h.b16 %v1169
    %v1757 = vunpack.c.l.b16 %v1170
    %v1758 = vunpack.c.h.b16 %v1170
    %v1759 = vunpack.c.l.b16 %v1171
    %v1760 = vunpack.c.h.b16 %v1171
    %v1761 = vunpack.c.l.b16 %v1172
    %v1762 = vunpack.c.h.b16 %v1172
    %v1763 = vunpack.c.l.b16 %v1173
    %v1764 = vunpack.c.h.b16 %v1173
    %v1765 = vunpack.c.l.b16 %v1174
    %v1766 = vunpack.c.h.b16 %v1174
    %v1767 = vunpack.c.l.b16 %v1175
    %v1768 = vunpack.c.h.b16 %v1175
    %v1769 = vunpack.c.l.b16 %v1176
    %v1770 = vunpack.c.h.b16 %v1176
    %v1771 = vunpack.c.l.b16 %v1177
    %v1772 = vunpack.c.h.b16 %v1177
    %v1773 = vunpack.c.l.b16 %v1178
    %v1774 = vunpack.c.h.b16 %v1178
    %v1775 = vunpack.c.l.b16 %v1179
    %v1776 = vunpack.c.h.b16 %v1179
    %v1777 = vunpack.c.l.b16 %v1180
    %v1778 = vunpack.c.h.b16 %v1180
    %v1779 = vunpack.c.l.b16 %v1181
    %v1780 = vunpack.c.h.b16 %v1181
    %v1781 = vunpack.c.l.b16 %v1182
    %v1782 = vunpack.c.h.b16 %v1182
    %v1783 = vunpack.c.l.b16 %v1183
    %v1784 = vunpack.c.h.b16 %v1183
    %v1785 = vunpack.c.l.b16 %v1184
    %v1786 = vunpack.c.h.b16 %v1184
    %v1787 = vunpack.c.l.b16 %v1185
    %v1788 = vunpack.c.h.b16 %v1185
    %v1789 = vunpack.c.l.b16 %v1186
    %v1790 = vunpack.c.h.b16 %v1186
    %v1791 = vunpack.c.l.b16 %v1187
    %v1792 = vunpack.c.h.b16 %v1187
    %v1793 = vunpack.c.l.b16 %v1188
    %v1794 = vunpack.c.h.b16 %v1188
    %v1795 = vunpack.c.l.b16 %v1189
    %v1796 = vunpack.c.h.b16 %v1189
    %v1797 = vunpack.c.l.b16 %v1190
    %v1798 = vunpack.c.h.b16 %v1190
    %v1799 = vunpack.c.l.b16 %v1191
    %v1800 = vunpack.c.h.b16 %v1191
    %v1801 = vunpack.c.l.b16 %v1192
    %v1802 = vunpack.c.h.b16 %v1192
    %v1803 = vunpack.c.l.b16 %v1193
    %v1804 = vunpack.c.h.b16 %v1193
    %v1805 = vunpack.c.l.b16 %v1194
    %v1806 = vunpack.c.h.b16 %v1194
    %v1807 = vunpack.c.l.b16 %v1195
    %v1808 = vunpack.c.h.b16 %v1195
    %v1809 = vunpack.c.l.b16 %v1196
    %v1810 = vunpack.c.h.b16 %v1196
    %v1811 = vunpack.c.l.b16 %v1197
    %v1812 = vunpack.c.h.b16 %v1197
    %v1813 = vunpack.c.l.b16 %v1198
    %v1814 = vunpack.c.h.b16 %v1198
    %v1815 = vunpack.c.l.b16 %v1199
    %v1816 = vunpack.c.h.b16 %v1199
    %v1817 = vunpack.c.l.b16 %v1200
    %v1818 = vunpack.c.h.b16 %v1200
    %v1819 = vunpack.c.l.b16 %v1201
    %v1820 = vunpack.c.h.b16 %v1201
    %v1821 = vunpack.c.l.b16 %v1202
    %v1822 = vunpack.c.h.b16 %v1202
    %v1823 = vunpack.c.l.b16 %v1203
    %v1824 = vunpack.c.h.b16 %v1203
    %v1825 = vunpack.c.l.b16 %v1204
    %v1826 = vunpack.c.h.b16 %v1204
    %v1827 = vunpack.c.l.b16 %v1205
    %v1828 = vunpack.c.h.b16 %v1205
    %v1829 = vunpack.c.l.b16 %v1206
    %v1830 = vunpack.c.h.b16 %v1206
    %v1831 = vunpack.c.l.b16 %v1207
    %v1832 = vunpack.c.h.b16 %v1207
    %v1833 = vunpack.c.l.b16 %v1208
    %v1834 = vunpack.c.h.b16 %v1208
    %v1835 = vunpack.c.l.b16 %v1209
    %v1836 = vunpack.c.h.b16 %v1209
    %v1837 = vunpack.c.l.b16 %v1210
    %v1838 = vunpack.c.h.b16 %v1210
    %v1839 = vunpack.c.l.b16 %v1211
    %v1840 = vunpack.c.h.b16 %v1211
    %v1841 = vunpack.c.l.b16 %v1212
    %v1842 = vunpack.c.h.b16 %v1212
    %v1843 = vunpack.c.l.b16 %v1213
    %v1844 = vunpack.c.h.b16 %v1213
    %v1845 = vunpack.c.l.b16 %v1214
    %v1846 = vunpack.c.h.b16 %v1214
    %v1847 = vunpack.c.l.b16 %v1215
    %v1848 = vunpack.c.h.b16 %v1215
    %v1849 = vunpack.c.l.b16 %v1216
    %v1850 = vunpack.c.h.b16 %v1216
    %v1851 = vunpack.c.l.b16 %v1217
    %v1852 = vunpack.c.h.b16 %v1217
    %v1853 = vunpack.c.l.b16 %v1218
    %v1854 = vunpack.c.h.b16 %v1218
    %v1855 = vunpack.c.l.b16 %v1219
    %v1856 = vunpack.c.h.b16 %v1219
    %v1857 = vunpack.c.l.b16 %v1220
    %v1858 = vunpack.c.h.b16 %v1220
    %v1859 = vunpack.c.l.b16 %v1221
    %v1860 = vunpack.c.h.b16 %v1221
    %v1861 = vunpack.c.l.b16 %v1222
    %v1862 = vunpack.c.h.b16 %v1222
    %v1863 = vunpack.c.l.b16 %v1223
    %v1864 = vunpack.c.h.b16 %v1223
    %v1865 = vunpack.c.l.b16 %v1224
    %v1866 = vunpack.c.h.b16 %v1224
    %v1867 = vunpack.c.l.b16 %v1225
    %v1868 = vunpack.c.h.b16 %v1225
    %v1869 = vunpack.c.l.b16 %v1226
    %v1870 = vunpack.c.h.b16 %v1226
    %v1871 = vunpack.c.l.b16 %v1227
    %v1872 = vunpack.c.h.b16 %v1227
    %v1873 = vunpack.c.l.b16 %v1228
    %v1874 = vunpack.c.h.b16 %v1228
    %v1875 = vunpack.c.l.b16 %v1229
    %v1876 = vunpack.c.h.b16 %v1229
    %v1877 = vunpack.c.l.b16 %v1230
    %v1878 = vunpack.c.h.b16 %v1230
    %v1879 = vunpack.c.l.b16 %v1231
    %v1880 = vunpack.c.h.b16 %v1231
    %v1881 = vunpack.c.l.b16 %v1232
    %v1882 = vunpack.c.h.b16 %v1232
    %v1883 = vunpack.c.l.b16 %v1233
    %v1884 = vunpack.c.h.b16 %v1233
    %v1885 = vunpack.c.l.b16 %v1234
    %v1886 = vunpack.c.h.b16 %v1234
    %v1887 = vunpack.c.l.b16 %v1235
    %v1888 = vunpack.c.h.b16 %v1235
    %v1889 = vunpack.c.l.b16 %v1236
    %v1890 = vunpack.c.h.b16 %v1236
    %v1891 = vunpack.c.l.b16 %v1237
    %v1892 = vunpack.c.h.b16 %v1237
    %v1893 = vunpack.c.l.b16 %v1238
    %v1894 = vunpack.c.h.b16 %v1238
    %v1895 = vunpack.c.l.b16 %v1239
    %v1896 = vunpack.c.h.b16 %v1239
    %v1897 = vunpack.c.l.b16 %v1240
    %v1898 = vunpack.c.h.b16 %v1240
    %v1899 = vunpack.c.l.b16 %v1241
    %v1900 = vunpack.c.h.b16 %v1241
    %v1901 = vunpack.c.l.b16 %v1242
    %v1902 = vunpack.c.h.b16 %v1242
    %v1903 = vunpack.c.l.b16 %v1243
    %v1904 = vunpack.c.h.b16 %v1243
    %v1905 = vunpack.c.l.b16 %v1244
    %v1906 = vunpack.c.h.b16 %v1244
    %v1907 = vunpack.c.l.b16 %v1245
    %v1908 = vunpack.c.h.b16 %v1245
    %v1909 = vunpack.c.l.b16 %v1246
    %v1910 = vunpack.c.h.b16 %v1246
    %v1911 = vunpack.c.l.b16 %v1247
    %v1912 = vunpack.c.h.b16 %v1247
    %v1913 = vunpack.c.l.b16 %v1248
    %v1914 = vunpack.c.h.b16 %v1248
    %v1915 = vunpack.c.l.b16 %v1249
    %v1916 = vunpack.c.h.b16 %v1249
    %v1917 = vunpack.c.l.b16 %v1250
    %v1918 = vunpack.c.h.b16 %v1250
    %v1919 = vunpack.c.l.b16 %v1251
    %v1920 = vunpack.c.h.b16 %v1251
    %v1921 = vunpack.c.l.b16 %v1252
    %v1922 = vunpack.c.h.b16 %v1252
    %v1923 = vunpack.c.l.b16 %v1253
    %v1924 = vunpack.c.h.b16 %v1253
    %v1925 = vunpack.c.l.b16 %v1254
    %v1926 = vunpack.c.h.b16 %v1254
    %v1927 = vunpack.c.l.b16 %v1255
    %v1928 = vunpack.c.h.b16 %v1255
    %v1929 = vunpack.c.l.b16 %v1256
    %v1930 = vunpack.c.h.b16 %v1256
    %v1931 = vunpack.c.l.b16 %v1257
    %v1932 = vunpack.c.h.b16 %v1257
    %v1933 = vunpack.c.l.b16 %v1258
    %v1934 = vunpack.c.h.b16 %v1258
    %v1935 = vunpack.c.l.b16 %v1259
    %v1936 = vunpack.c.h.b16 %v1259
    %v1937 = vunpack.c.l.b16 %v1260
    %v1938 = vunpack.c.h.b16 %v1260
    %v1939 = vunpack.c.l.b16 %v1261
    %v1940 = vunpack.c.h.b16 %v1261
    %v1941 = vunpack.c.l.b16 %v1262
    %v1942 = vunpack.c.h.b16 %v1262
    %v1943 = vunpack.c.l.b16 %v1263
    %v1944 = vunpack.c.h.b16 %v1263
    %v1945 = vunpack.c.l.b16 %v1264
    %v1946 = vunpack.c.h.b16 %v1264
    %v1947 = vunpack.c.l.b16 %v1265
    %v1948 = vunpack.c.h.b16 %v1265
    %v1949 = vunpack.c.l.b16 %v1266
    %v1950 = vunpack.c.h.b16 %v1266
    %v1951 = vunpack.c.l.b16 %v1267
    %v1952 = vunpack.c.h.b16 %v1267
    %v1953 = vunpack.c.l.b16 %v1268
    %v1954 = vunpack.c.h.b16 %v1268
    %v1955 = vunpack.c.l.b16 %v1269
    %v1956 = vunpack.c.h.b16 %v1269
    %v1957 = vunpack.c.l.b16 %v1270
    %v1958 = vunpack.c.h.b16 %v1270
    %v1959 = vunpack.c.l.b16 %v1271
    %v1960 = vunpack.c.h.b16 %v1271
    %v1961 = vunpack.c.l.b16 %v1272
    %v1962 = vunpack.c.h.b16 %v1272
    %v1963 = vunpack.c.l.b16 %v1273
    %v1964 = vunpack.c.h.b16 %v1273
    %v1965 = vunpack.c.l.b16 %v1274
    %v1966 = vunpack.c.h.b16 %v1274
    %v1967 = vunpack.c.l.b16 %v1275
    %v1968 = vunpack.c.h.b16 %v1275
    %v1969 = vunpack.c.l.b16 %v1276
    %v1970 = vunpack.c.h.b16 %v1276
    %v1971 = vunpack.c.l.b16 %v1277
    %v1972 = vunpack.c.h.b16 %v1277
    %v1973 = vunpack.c.l.b16 %v1278
    %v1974 = vunpack.c.h.b16 %v1278
    %v1975 = vunpack.c.l.b16 %v1279
    %v1976 = vunpack.c.h.b16 %v1279
    %v1977 = vunpack.c.l.b16 %v1280
    %v1978 = vunpack.c.h.b16 %v1280
    %v1979 = vunpack.c.l.b16 %v1281
    %v1980 = vunpack.c.h.b16 %v1281
    %v1981 = vunpack.c.l.b16 %v1282
    %v1982 = vunpack.c.h.b16 %v1282
    %v1983 = vunpack.c.l.b16 %v1283
    %v1984 = vunpack.c.h.b16 %v1283
    %v1985 = vunpack.c.l.b16 %v1284
    %v1986 = vunpack.c.h.b16 %v1284
    %v1987 = vunpack.c.l.b16 %v1285
    %v1988 = vunpack.c.h.b16 %v1285
    %v1989 = vunpack.c.l.b16 %v1286
    %v1990 = vunpack.c.h.b16 %v1286
    %v1991 = vunpack.c.l.b16 %v1287
    %v1992 = vunpack.c.h.b16 %v1287
    %v1993 = vunpack.c.l.b16 %v1288
    %v1994 = vunpack.c.h.b16 %v1288
    %v1995 = vunpack.c.l.b16 %v1289
    %v1996 = vunpack.c.h.b16 %v1289
    %v1997 = vunpack.c.l.b16 %v1290
    %v1998 = vunpack.c.h.b16 %v1290
    %v1999 = vunpack.c.l.b16 %v1291
    %v2000 = vunpack.c.h.b16 %v1291
    %v2001 = vunpack.c.l.b16 %v1292
    %v2002 = vunpack.c.h.b16 %v1292
    %v2003 = vunpack.c.l.b16 %v1293
    %v2004 = vunpack.c.h.b16 %v1293
    %v2005 = vunpack.c.l.b16 %v1294
    %v2006 = vunpack.c.h.b16 %v1294
    %v2007 = vunpack.c.l.b16 %v1295
    %v2008 = vunpack.c.h.b16 %v1295
    %v2009 = vunpack.c.l.b16 %v1296
    %v2010 = vunpack.c.h.b16 %v1296
    %v2011 = vunpack.c.l.b16 %v1297
    %v2012 = vunpack.c.h.b16 %v1297
    %v2013 = vunpack.c.l.b16 %v1298
    %v2014 = vunpack.c.h.b16 %v1298
    %v2015 = vunpack.c.l.b16 %v1299
    %v2016 = vunpack.c.h.b16 %v1299
    %v2017 = vunpack.c.l.b16 %v1300
    %v2018 = vunpack.c.h.b16 %v1300
    %v2019 = vunpack.c.l.b16 %v1301
    %v2020 = vunpack.c.h.b16 %v1301
    %v2021 = vunpack.c.l.b16 %v1302
    %v2022 = vunpack.c.h.b16 %v1302
    %v2023 = vunpack.c.l.b16 %v1303
    %v2024 = vunpack.c.h.b16 %v1303
    %v2025 = vunpack.c.l.b16 %v1304
    %v2026 = vunpack.c.h.b16 %v1304
    %v2027 = vunpack.c.l.b16 %v1305
    %v2028 = vunpack.c.h.b16 %v1305
    %v2029 = vunpack.c.l.b16 %v1306
    %v2030 = vunpack.c.h.b16 %v1306
    %v2031 = vunpack.c.l.b16 %v1307
    %v2032 = vunpack.c.h.b16 %v1307
    %v2033 = vunpack.c.l.b16 %v1308
    %v2034 = vunpack.c.h.b16 %v1308
    %v2035 = vunpack.c.l.b16 %v1309
    %v2036 = vunpack.c.h.b16 %v1309
    %v2037 = vunpack.c.l.b16 %v1310
    %v2038 = vunpack.c.h.b16 %v1310
    %v2039 = vunpack.c.l.b16 %v1311
    %v2040 = vunpack.c.h.b16 %v1311
    %v2041 = vunpack.c.l.b16 %v1312
    %v2042 = vunpack.c.h.b16 %v1312
    %v2043 = vunpack.c.l.b16 %v1313
    %v2044 = vunpack.c.h.b16 %v1313
    %v2045 = vunpack.c.l.b16 %v1314
    %v2046 = vunpack.c.h.b16 %v1314
    %v2047 = vunpack.c.l.b16 %v1315
    %v2048 = vunpack.c.h.b16 %v1315
    %v2049 = vunpack.c.l.b16 %v1316
    %v2050 = vunpack.c.h.b16 %v1316
    %v2051 = vunpack.c.l.b16 %v1317
    %v2052 = vunpack.c.h.b16 %v1317
    %v2053 = vunpack.c.l.b16 %v1318
    %v2054 = vunpack.c.h.b16 %v1318
    %v2055 = vunpack.c.l.b16 %v1319
    %v2056 = vunpack.c.h.b16 %v1319
    %v2057 = vunpack.c.l.b16 %v1320
    %v2058 = vunpack.c.h.b16 %v1320
    %v2059 = vunpack.c.l.b16 %v1321
    %v2060 = vunpack.c.h.b16 %v1321
    %v2061 = vunpack.c.l.b16 %v1322
    %v2062 = vunpack.c.h.b16 %v1322
    %v2063 = vunpack.c.l.b16 %v1323
    %v2064 = vunpack.c.h.b16 %v1323
    %v2065 = vunpack.c.l.b16 %v1324
    %v2066 = vunpack.c.h.b16 %v1324
    %v2067 = vunpack.c.l.b16 %v1325
    %v2068 = vunpack.c.h.b16 %v1325
    %v2069 = vunpack.c.l.b16 %v1326
    %v2070 = vunpack.c.h.b16 %v1326
    %v2071 = vunpack.c.l.b16 %v1327
    %v2072 = vunpack.c.h.b16 %v1327
    %v2073 = vunpack.c.l.b16 %v1328
    %v2074 = vunpack.c.h.b16 %v1328
    %v2075 = vunpack.c.l.b16 %v1329
    %v2076 = vunpack.c.h.b16 %v1329
    %v2077 = vunpack.c.l.b16 %v1330
    %v2078 = vunpack.c.h.b16 %v1330
    %v2079 = vunpack.c.l.b16 %v1331
    %v2080 = vunpack.c.h.b16 %v1331
    %v2081 = vunpack.c.l.b16 %v1332
    %v2082 = vunpack.c.h.b16 %v1332
    %v2083 = vunpack.c.l.b16 %v1333
    %v2084 = vunpack.c.h.b16 %v1333
    %v2085 = vunpack.c.l.b16 %v1334
    %v2086 = vunpack.c.h.b16 %v1334
    %v2087 = vunpack.c.l.b16 %v1335
    %v2088 = vunpack.c.h.b16 %v1335
    %v2089 = vunpack.c.l.b16 %v1336
    %v2090 = vunpack.c.h.b16 %v1336
    %v2091 = vunpack.c.l.b16 %v1337
    %v2092 = vunpack.c.h.b16 %v1337
    %v2093 = vunpack.c.l.b16 %v1338
    %v2094 = vunpack.c.h.b16 %v1338
    %v2095 = vunpack.c.l.b16 %v1339
    %v2096 = vunpack.c.h.b16 %v1339
    %v2097 = vunpack.c.l.b16 %v1340
    %v2098 = vunpack.c.h.b16 %v1340
    %v2099 = vunpack.c.l.b16 %v1341
    %v2100 = vunpack.c.h.b16 %v1341
    %v2101 = vunpack.c.l.b16 %v1342
    %v2102 = vunpack.c.h.b16 %v1342
    %v2103 = vunpack.c.l.b16 %v1343
    %v2104 = vunpack.c.h.b16 %v1343
    %v2105 = vunpack.c.l.b16 %v1344
    %v2106 = vunpack.c.h.b16 %v1344
    %v2107 = vunpack.c.l.b16 %v1345
    %v2108 = vunpack.c.h.b16 %v1345
    %v2109 = vunpack.c.l.b16 %v1346
    %v2110 = vunpack.c.h.b16 %v1346
    %v2111 = vunpack.c.l.b16 %v1347
    %v2112 = vunpack.c.h.b16 %v1347
    %v2113 = vunpack.c.l.b16 %v1348
    %v2114 = vunpack.c.h.b16 %v1348
    %v2115 = vunpack.c.l.b16 %v1349
    %v2116 = vunpack.c.h.b16 %v1349
    %v2117 = vunpack.c.l.b16 %v1350
    %v2118 = vunpack.c.h.b16 %v1350
    %v2119 = vunpack.c.l.b16 %v1351
    %v2120 = vunpack.c.h.b16 %v1351
    %v2121 = vunpack.c.l.b16 %v1352
    %v2122 = vunpack.c.h.b16 %v1352
    %v2123 = vunpack.c.l.b16 %v1353
    %v2124 = vunpack.c.h.b16 %v1353
    %v2125 = vunpack.c.l.b16 %v1354
    %v2126 = vunpack.c.h.b16 %v1354
    %v2127 = vunpack.c.l.b16 %v1355
    %v2128 = vunpack.c.h.b16 %v1355
    %v2129 = vunpack.c.l.b16 %v1356
    %v2130 = vunpack.c.h.b16 %v1356
    %v2131 = vunpack.c.l.b16 %v1357
    %v2132 = vunpack.c.h.b16 %v1357
    %v2133 = vunpack.c.l.b16 %v1358
    %v2134 = vunpack.c.h.b16 %v1358
    %v2135 = vunpack.c.l.b16 %v1359
    %v2136 = vunpack.c.h.b16 %v1359
    %v2137 = vunpack.c.l.b16 %v1360
    %v2138 = vunpack.c.h.b16 %v1360
    %v2139 = vunpack.c.l.b16 %v1361
    %v2140 = vunpack.c.h.b16 %v1361
    %v2141 = vunpack.c.l.b16 %v1362
    %v2142 = vunpack.c.h.b16 %v1362
    %v2143 = vunpack.c.l.b16 %v1363
    %v2144 = vunpack.c.h.b16 %v1363
    %v2145 = vunpack.c.l.b16 %v1364
    %v2146 = vunpack.c.h.b16 %v1364
    %v2147 = vunpack.c.l.b16 %v1365
    %v2148 = vunpack.c.h.b16 %v1365
    %v2149 = vunpack.c.l.b16 %v1366
    %v2150 = vunpack.c.h.b16 %v1366
    %v2151 = vunpack.c.l.b16 %v1367
    %v2152 = vunpack.c.h.b16 %v1367
    %v2153 = vunpack.c.l.b16 %v1368
    %v2154 = vunpack.c.h.b16 %v1368
    %v2155 = vunpack.c.l.b16 %v1369
    %v2156 = vunpack.c.h.b16 %v1369
    %v2157 = vunpack.c.l.b16 %v1370
    %v2158 = vunpack.c.h.b16 %v1370
    %v2159 = vunpack.c.l.b16 %v1371
    %v2160 = vunpack.c.h.b16 %v1371
    %v2161 = vunpack.c.l.b16 %v1372
    %v2162 = vunpack.c.h.b16 %v1372
    %v2163 = vunpack.c.l.b16 %v1373
    %v2164 = vunpack.c.h.b16 %v1373
    %v2165 = vpack.c.b16 %v1657, %v1653
    %v2166 = vpack.c.b16 %v1658, %v1654
    %v2167 = vpack.c.b16 %v1659, %v1655
    %v2168 = vpack.c.b16 %v1660, %v1656
    %v2169 = vpack.c.b16 %v1665, %v1661
    %v2170 = vpack.c.b16 %v1666, %v1662
    %v2171 = vpack.c.b16 %v1667, %v1663
    %v2172 = vpack.c.b16 %v1668, %v1664
    %v2173 = vpack.c.b16 %v1673, %v1669
    %v2174 = vpack.c.b16 %v1674, %v1670
    %v2175 = vpack.c.b16 %v1675, %v1671
    %v2176 = vpack.c.b16 %v1676, %v1672
    %v2177 = vpack.c.b16 %v1681, %v1677
    %v2178 = vpack.c.b16 %v1682, %v1678
    %v2179 = vpack.c.b16 %v1683, %v1679
    %v2180 = vpack.c.b16 %v1684, %v1680
    %v2181 = vpack.c.b16 %v1689, %v1685
    %v2182 = vpack.c.b16 %v1690, %v1686
    %v2183 = vpack.c.b16 %v1691, %v1687
    %v2184 = vpack.c.b16 %v1692, %v1688
    %v2185 = vpack.c.b16 %v1697, %v1693
    %v2186 = vpack.c.b16 %v1698, %v1694
    %v2187 = vpack.c.b16 %v1699, %v1695
    %v2188 = vpack.c.b16 %v1700, %v1696
    %v2189 = vpack.c.b16 %v1705, %v1701
    %v2190 = vpack.c.b16 %v1706, %v1702
    %v2191 = vpack.c.b16 %v1707, %v1703
    %v2192 = vpack.c.b16 %v1708, %v1704
    %v2193 = vpack.c.b16 %v1713, %v1709
    %v2194 = vpack.c.b16 %v1714, %v1710
    %v2195 = vpack.c.b16 %v1715, %v1711
    %v2196 = vpack.c.b16 %v1716, %v1712
    %v2197 = vpack.c.b16 %v1721, %v1717
    %v2198 = vpack.c.b16 %v1722, %v1718
    %v2199 = vpack.c.b16 %v1723, %v1719
    %v2200 = vpack.c.b16 %v1724, %v1720
    %v2201 = vpack.c.b16 %v1729, %v1725
    %v2202 = vpack.c.b16 %v1730, %v1726
    %v2203 = vpack.c.b16 %v1731, %v1727
    %v2204 = vpack.c.b16 %v1732, %v1728
    %v2205 = vpack.c.b16 %v1737, %v1733
    %v2206 = vpack.c.b16 %v1738, %v1734
    %v2207 = vpack.c.b16 %v1739, %v1735
    %v2208 = vpack.c.b16 %v1740, %v1736
    %v2209 = vpack.c.b16 %v1745, %v1741
    %v2210 = vpack.c.b16 %v1746, %v1742
    %v2211 = vpack.c.b16 %v1747, %v1743
    %v2212 = vpack.c.b16 %v1748, %v1744
    %v2213 = vpack.c.b16 %v1753, %v1749
    %v2214 = vpack.c.b16 %v1754, %v1750
    %v2215 = vpack.c.b16 %v1755, %v1751
    %v2216 = vpack.c.b16 %v1756, %v1752
    %v2217 = vpack.c.b16 %v1761, %v1757
    %v2218 = vpack.c.b16 %v1762, %v1758
    %v2219 = vpack.c.b16 %v1763, %v1759
    %v2220 = vpack.c.b16 %v1764, %v1760
    %v2221 = vpack.c.b16 %v1769, %v1765
    %v2222 = vpack.c.b16 %v1770, %v1766
    %v2223 = vpack.c.b16 %v1771, %v1767
    %v2224 = vpack.c.b16 %v1772, %v1768
    %v2225 = vpack.c.b16 %v1777, %v1773
    %v2226 = vpack.c.b16 %v1778, %v1774
    %v2227 = vpack.c.b16 %v1779, %v1775
    %v2228 = vpack.c.b16 %v1780, %v1776
    %v2229 = vpack.c.b16 %v1785, %v1781
    %v2230 = vpack.c.b16 %v1786, %v1782
    %v2231 = vpack.c.b16 %v1787, %v1783
    %v2232 = vpack.c.b16 %v1788, %v1784
    %v2233 = vpack.c.b16 %v1793, %v1789
    %v2234 = vpack.c.b16 %v1794, %v1790
    %v2235 = vpack.c.b16 %v1795, %v1791
    %v2236 = vpack.c.b16 %v1796, %v1792
    %v2237 = vpack.c.b16 %v1801, %v1797
    %v2238 = vpack.c.b16 %v1802, %v1798
    %v2239 = vpack.c.b16 %v1803, %v1799
    %v2240 = vpack.c.b16 %v1804, %v1800
    %v2241 = vpack.c.b16 %v1809, %v1805
    %v2242 = vpack.c.b16 %v1810, %v1806
    %v2243 = vpack.c.b16 %v1811, %v1807
    %v2244 = vpack.c.b16 %v1812, %v1808
    %v2245 = vpack.c.b16 %v1817, %v1813
    %v2246 = vpack.c.b16 %v1818, %v1814
    %v2247 = vpack.c.b16 %v1819, %v1815
    %v2248 = vpack.c.b16 %v1820, %v1816
    %v2249 = vpack.c.b16 %v1825, %v1821
    %v2250 = vpack.c.b16 %v1826, %v1822
    %v2251 = vpack.c.b16 %v1827, %v1823
    %v2252 = vpack.c.b16 %v1828, %v1824
    %v2253 = vpack.c.b16 %v1833, %v1829
    %v2254 = vpack.c.b16 %v1834, %v1830
    %v2255 = vpack.c.b16 %v1835, %v1831
    %v2256 = vpack.c.b16 %v1836, %v1832
    %v2257 = vpack.c.b16 %v1841, %v1837
    %v2258 = vpack.c.b16 %v1842, %v1838
    %v2259 = vpack.c.b16 %v1843, %v1839
    %v2260 = vpack.c.b16 %v1844, %v1840
    %v2261 = vpack.c.b16 %v1849, %v1845
    %v2262 = vpack.c.b16 %v1850, %v1846
    %v2263 = vpack.c.b16 %v1851, %v1847
    %v2264 = vpack.c.b16 %v1852, %v1848
    %v2265 = vpack.c.b16 %v1857, %v1853
    %v2266 = vpack.c.b16 %v1858, %v1854
    %v2267 = vpack.c.b16 %v1859, %v1855
    %v2268 = vpack.c.b16 %v1860, %v1856
    %v2269 = vpack.c.b16 %v1865, %v1861
    %v2270 = vpack.c.b16 %v1866, %v1862
    %v2271 = vpack.c.b16 %v1867, %v1863
    %v2272 = vpack.c.b16 %v1868, %v1864
    %v2273 = vpack.c.b16 %v1873, %v1869
    %v2274 = vpack.c.b16 %v1874, %v1870
    %v2275 = vpack.c.b16 %v1875, %v1871
    %v2276 = vpack.c.b16 %v1876, %v1872
    %v2277 = vpack.c.b16 %v1881, %v1877
    %v2278 = vpack.c.b16 %v1882, %v1878
    %v2279 = vpack.c.b16 %v1883, %v1879
    %v2280 = vpack.c.b16 %v1884, %v1880
    %v2281 = vpack.c.b16 %v1889, %v1885
    %v2282 = vpack.c.b16 %v1890, %v1886
    %v2283 = vpack.c.b16 %v1891, %v1887
    %v2284 = vpack.c.b16 %v1892, %v1888
    %v2285 = vpack.c.b16 %v1897, %v1893
    %v2286 = vpack.c.b16 %v1898, %v1894
    %v2287 = vpack.c.b16 %v1899, %v1895
    %v2288 = vpack.c.b16 %v1900, %v1896
    %v2289 = vpack.c.b16 %v1905, %v1901
    %v2290 = vpack.c.b16 %v1906, %v1902
    %v2291 = vpack.c.b16 %v1907, %v1903
    %v2292 = vpack.c.b16 %v1908, %v1904
    %v2293 = vpack.c.b16 %v1913, %v1909
    %v2294 = vpack.c.b16 %v1914, %v1910
    %v2295 = vpack.c.b16 %v1915, %v1911
    %v2296 = vpack.c.b16 %v1916, %v1912
    %v2297 = vpack.c.b16 %v1921, %v1917
    %v2298 = vpack.c.b16 %v1922, %v1918
    %v2299 = vpack.c.b16 %v1923, %v1919
    %v2300 = vpack.c.b16 %v1924, %v1920
    %v2301 = vpack.c.b16 %v1929, %v1925
    %v2302 = vpack.c.b16 %v1930, %v1926
    %v2303 = vpack.c.b16 %v1931, %v1927
    %v2304 = vpack.c.b16 %v1932, %v1928
    %v2305 = vpack.c.b16 %v1937, %v1933
    %v2306 = vpack.c.b16 %v1938, %v1934
    %v2307 = vpack.c.b16 %v1939, %v1935
    %v2308 = vpack.c.b16 %v1940, %v1936
    %v2309 = vpack.c.b16 %v1945, %v1941
    %v2310 = vpack.c.b16 %v1946, %v1942
    %v2311 = vpack.c.b16 %v1947, %v1943
    %v2312 = vpack.c.b16 %v1948, %v1944
    %v2313 = vpack.c.b16 %v1953, %v1949
    %v2314 = vpack.c.b16 %v1954, %v1950
    %v2315 = vpack.c.b16 %v1955, %v1951
    %v2316 = vpack.c.b16 %v1956, %v1952
    %v2317 = vpack.c.b16 %v1961, %v1957
    %v2318 = vpack.c.b16 %v1962, %v1958
    %v2319 = vpack.c.b16 %v1963, %v1959
    %v2320 = vpack.c.b16 %v1964, %v1960
    %v2321 = vpack.c.b16 %v1969, %v1965
    %v2322 = vpack.c.b16 %v1970, %v1966
    %v2323 = vpack.c.b16 %v1971, %v1967
    %v2324 = vpack.c.b16 %v1972, %v1968
    %v2325 = vpack.c.b16 %v1977, %v1973
    %v2326 = vpack.c.b16 %v1978, %v1974
    %v2327 = vpack.c.b16 %v1979, %v1975
    %v2328 = vpack.c.b16 %v1980, %v1976
    %v2329 = vpack.c.b16 %v1985, %v1981
    %v2330 = vpack.c.b16 %v1986, %v1982
    %v2331 = vpack.c.b16 %v1987, %v1983
    %v2332 = vpack.c.b16 %v1988, %v1984
    %v2333 = vpack.c.b16 %v1993, %v1989
    %v2334 = vpack.c.b16 %v1994, %v1990
    %v2335 = vpack.c.b16 %v1995, %v1991
    %v2336 = vpack.c.b16 %v1996, %v1992
    %v2337 = vpack.c.b16 %v2001, %v1997
    %v2338 = vpack.c.b16 %v2002, %v1998
    %v2339 = vpack.c.b16 %v2003, %v1999
    %v2340 = vpack.c.b16 %v2004, %v2000
    %v2341 = vpack.c.b16 %v2009, %v2005
    %v2342 = vpack.c.b16 %v2010, %v2006
    %v2343 = vpack.c.b16 %v2011, %v2007
    %v2344 = vpack.c.b16 %v2012, %v2008
    %v2345 = vpack.c.b16 %v2017, %v2013
    %v2346 = vpack.c.b16 %v2018, %v2014
    %v2347 = vpack.c.b16 %v2019, %v2015
    %v2348 = vpack.c.b16 %v2020, %v2016
    %v2349 = vpack.c.b16 %v2025, %v2021
    %v2350 = vpack.c.b16 %v2026, %v2022
    %v2351 = vpack.c.b16 %v2027, %v2023
    %v2352 = vpack.c.b16 %v2028, %v2024
    %v2353 = vpack.c.b16 %v2033, %v2029
    %v2354 = vpack.c.b16 %v2034, %v2030
    %v2355 = vpack.c.b16 %v2035, %v2031
    %v2356 = vpack.c.b16 %v2036, %v2032
    %v2357 = vpack.c.b16 %v2041, %v2037
    %v2358 = vpack.c.b16 %v2042, %v2038
    %v2359 = vpack.c.b16 %v2043, %v2039
    %v2360 = vpack.c.b16 %v2044, %v2040
    %v2361 = vpack.c.b16 %v2049, %v2045
    %v2362 = vpack.c.b16 %v2050, %v2046
    %v2363 = vpack.c.b16 %v2051, %v2047
    %v2364 = vpack.c.b16 %v2052, %v2048
    %v2365 = vpack.c.b16 %v2057, %v2053
    %v2366 = vpack.c.b16 %v2058, %v2054
    %v2367 = vpack.c.b16 %v2059, %v2055
    %v2368 = vpack.c.b16 %v2060, %v2056
    %v2369 = vpack.c.b16 %v2065, %v2061
    %v2370 = vpack.c.b16 %v2066, %v2062
    %v2371 = vpack.c.b16 %v2067, %v2063
    %v2372 = vpack.c.b16 %v2068, %v2064
    %v2373 = vpack.c.b16 %v2073, %v2069
    %v2374 = vpack.c.b16 %v2074, %v2070
    %v2375 = vpack.c.b16 %v2075, %v2071
    %v2376 = vpack.c.b16 %v2076, %v2072
    %v2377 = vpack.c.b16 %v2081, %v2077
    %v2378 = vpack.c.b16 %v2082, %v2078
    %v2379 = vpack.c.b16 %v2083, %v2079
    %v2380 = vpack.c.b16 %v2084, %v2080
    %v2381 = vpack.c.b16 %v2089, %v2085
    %v2382 = vpack.c.b16 %v2090, %v2086
    %v2383 = vpack.c.b16 %v2091, %v2087
    %v2384 = vpack.c.b16 %v2092, %v2088
    %v2385 = vpack.c.b16 %v2097, %v2093
    %v2386 = vpack.c.b16 %v2098, %v2094
    %v2387 = vpack.c.b16 %v2099, %v2095
    %v2388 = vpack.c.b16 %v2100, %v2096
    %v2389 = vpack.c.b16 %v2105, %v2101
    %v2390 = vpack.c.b16 %v2106, %v2102
    %v2391 = vpack.c.b16 %v2107, %v2103
    %v2392 = vpack.c.b16 %v2108, %v2104
    %v2393 = vpack.c.b16 %v2113, %v2109
    %v2394 = vpack.c.b16 %v2114, %v2110
    %v2395 = vpack.c.b16 %v2115, %v2111
    %v2396 = vpack.c.b16 %v2116, %v2112
    %v2397 = vpack.c.b16 %v2121, %v2117
    %v2398 = vpack.c.b16 %v2122, %v2118
    %v2399 = vpack.c.b16 %v2123, %v2119
    %v2400 = vpack.c.b16 %v2124, %v2120
    %v2401 = vpack.c.b16 %v2129, %v2125
    %v2402 = vpack.c.b16 %v2130, %v2126
    %v2403 = vpack.c.b16 %v2131, %v2127
    %v2404 = vpack.c.b16 %v2132, %v2128
    %v2405 = vpack.c.b16 %v2137, %v2133
    %v2406 = vpack.c.b16 %v2138, %v2134
    %v2407 = vpack.c.b16 %v2139, %v2135
    %v2408 = vpack.c.b16 %v2140, %v2136
    %v2409 = vpack.c.b16 %v2145, %v2141
    %v2410 = vpack.c.b16 %v2146, %v2142
    %v2411 = vpack.c.b16 %v2147, %v2143
    %v2412 = vpack.c.b16 %v2148, %v2144
    %v2413 = vpack.c.b16 %v2153, %v2149
    %v2414 = vpack.c.b16 %v2154, %v2150
    %v2415 = vpack.c.b16 %v2155, %v2151
    %v2416 = vpack.c.b16 %v2156, %v2152
    %v2417 = vpack.c.b16 %v2161, %v2157
    %v2418 = vpack.c.b16 %v2162, %v2158
    %v2419 = vpack.c.b16 %v2163, %v2159
    %v2420 = vpack.c.b16 %v2164, %v2160
    %2677 = vmatprep.subr.bf16.mxu0 %v2194
    %2678 = vmatpush1.bf16.msra.mxu0 %v2193
    %2679 = vmatprep.subr.bf16.mxu0 %v2190
    %2680 = vmatpush1.bf16.msra.mxu0 %v2189
    %2681 = vmatprep.subr.bf16.mxu0 %v2186
    %2682 = vmatpush1.bf16.msra.mxu0 %v2185
    %2683 = vmatprep.subr.bf16.mxu0 %v2182
    %2684 = vmatpush1.bf16.msra.mxu0 %v2181
    %2685 = vmatprep.subr.bf16.mxu0 %v2178
    %2686 = vmatpush1.bf16.msra.mxu0 %v2177
    %2687 = vmatprep.subr.bf16.mxu0 %v2174
    %2688 = vmatpush1.bf16.msra.mxu0 %v2173
    %2689 = vmatprep.subr.bf16.mxu0 %v2170
    %2690 = vmatpush1.bf16.msra.mxu0 %v2169
    %2691 = vmatprep.subr.bf16.mxu0 %v2166
    %2692 = vmatpush1.bf16.msra.mxu0 %v2165
    %2693 = vmatprep.subr.bf16.mxu0 %v2226
    %2694 = vmatpush2.bf16.msra.mxu0 %v2225
    %2695 = vmatprep.subr.bf16.mxu0 %v2222
    %2696 = vmatpush2.bf16.msra.mxu0 %v2221
    %2697 = vmatprep.subr.bf16.mxu0 %v2218
    %2698 = vmatpush2.bf16.msra.mxu0 %v2217
    %2699 = vmatprep.subr.bf16.mxu0 %v2214
    %2700 = vmatpush2.bf16.msra.mxu0 %v2213
    %2701 = vmatprep.subr.bf16.mxu0 %v2210
    %2702 = vmatpush2.bf16.msra.mxu0 %v2209
    %2703 = vmatprep.subr.bf16.mxu0 %v2206
    %2704 = vmatpush2.bf16.msra.mxu0 %v2205
    %2705 = vmatprep.subr.bf16.mxu0 %v2202
    %2706 = vmatpush2.bf16.msra.mxu0 %v2201
    %2707 = vmatprep.subr.bf16.mxu0 %v2198
    %2708 = vmatpush2.bf16.msra.mxu0 %v2197
    %2709 = vmatprep.mubr.bf16.mxu0 %v1111
    %2710 = vmatmul.mubr.bf16.gmra.mxu0 %v1110
    %v2711 = vpop.f32.mrf.mxu0
    %v2712 = vadd.f32 %v1380, %v2711
    %v2713 = vpop.f32.mrf.mxu0
    %v2714 = vadd.f32 %v1384, %v2713
    %v2715 = vpop.f32.mrf.mxu0
    %v2716 = vpop.f32.mrf.mxu0
    %2717 = vdwg.mxu0
    %2718 = vmatprep.subr.bf16.mxu0 %v2258
    %2719 = vmatpush1.bf16.msra.mxu0 %v2257
    %2720 = vmatprep.subr.bf16.mxu0 %v2254
    %2721 = vmatpush1.bf16.msra.mxu0 %v2253
    %2722 = vmatprep.subr.bf16.mxu0 %v2250
    %2723 = vmatpush1.bf16.msra.mxu0 %v2249
    %2724 = vmatprep.subr.bf16.mxu0 %v2246
    %2725 = vmatpush1.bf16.msra.mxu0 %v2245
    %2726 = vmatprep.subr.bf16.mxu0 %v2242
    %2727 = vmatpush1.bf16.msra.mxu0 %v2241
    %2728 = vmatprep.subr.bf16.mxu0 %v2238
    %2729 = vmatpush1.bf16.msra.mxu0 %v2237
    %2730 = vmatprep.subr.bf16.mxu0 %v2234
    %2731 = vmatpush1.bf16.msra.mxu0 %v2233
    %2732 = vmatprep.subr.bf16.mxu0 %v2230
    %2733 = vmatpush1.bf16.msra.mxu0 %v2229
    %2734 = vmatprep.subr.bf16.mxu0 %v2290
    %2735 = vmatpush2.bf16.msra.mxu0 %v2289
    %2736 = vmatprep.subr.bf16.mxu0 %v2286
    %2737 = vmatpush2.bf16.msra.mxu0 %v2285
    %2738 = vmatprep.subr.bf16.mxu0 %v2282
    %2739 = vmatpush2.bf16.msra.mxu0 %v2281
    %2740 = vmatprep.subr.bf16.mxu0 %v2278
    %2741 = vmatpush2.bf16.msra.mxu0 %v2277
    %2742 = vmatprep.subr.bf16.mxu0 %v2274
    %2743 = vmatpush2.bf16.msra.mxu0 %v2273
    %2744 = vmatprep.subr.bf16.mxu0 %v2270
    %2745 = vmatpush2.bf16.msra.mxu0 %v2269
    %2746 = vmatprep.subr.bf16.mxu0 %v2266
    %2747 = vmatpush2.bf16.msra.mxu0 %v2265
    %2748 = vmatprep.subr.bf16.mxu0 %v2262
    %2749 = vmatpush2.bf16.msra.mxu0 %v2261
    %2750 = vmatprep.mubr.bf16.mxu0 %v1113
    %2751 = vmatmul.mubr.bf16.gmra.mxu0 %v1112
    %v2752 = vpop.f32.mrf.mxu0
    %v2753 = vadd.f32 %v2712, %v2752
    %v2754 = vpop.f32.mrf.mxu0
    %v2755 = vadd.f32 %v2714, %v2754
    %v2756 = vpop.f32.mrf.mxu0
    %v2757 = vpop.f32.mrf.mxu0
    %2758 = vdwg.mxu0
    %2759 = vmatprep.subr.bf16.mxu0 %v2322
    %2760 = vmatpush1.bf16.msra.mxu0 %v2321
    %2761 = vmatprep.subr.bf16.mxu0 %v2318
    %2762 = vmatpush1.bf16.msra.mxu0 %v2317
    %2763 = vmatprep.subr.bf16.mxu0 %v2314
    %2764 = vmatpush1.bf16.msra.mxu0 %v2313
    %2765 = vmatprep.subr.bf16.mxu0 %v2310
    %2766 = vmatpush1.bf16.msra.mxu0 %v2309
    %2767 = vmatprep.subr.bf16.mxu0 %v2306
    %2768 = vmatpush1.bf16.msra.mxu0 %v2305
    %2769 = vmatprep.subr.bf16.mxu0 %v2302
    %2770 = vmatpush1.bf16.msra.mxu0 %v2301
    %2771 = vmatprep.subr.bf16.mxu0 %v2298
    %2772 = vmatpush1.bf16.msra.mxu0 %v2297
    %2773 = vmatprep.subr.bf16.mxu0 %v2294
    %2774 = vmatpush1.bf16.msra.mxu0 %v2293
    %2775 = vmatprep.subr.bf16.mxu0 %v2354
    %2776 = vmatpush2.bf16.msra.mxu0 %v2353
    %2777 = vmatprep.subr.bf16.mxu0 %v2350
    %2778 = vmatpush2.bf16.msra.mxu0 %v2349
    %2779 = vmatprep.subr.bf16.mxu0 %v2346
    %2780 = vmatpush2.bf16.msra.mxu0 %v2345
    %2781 = vmatprep.subr.bf16.mxu0 %v2342
    %2782 = vmatpush2.bf16.msra.mxu0 %v2341
    %2783 = vmatprep.subr.bf16.mxu0 %v2338
    %2784 = vmatpush2.bf16.msra.mxu0 %v2337
    %2785 = vmatprep.subr.bf16.mxu0 %v2334
    %2786 = vmatpush2.bf16.msra.mxu0 %v2333
    %2787 = vmatprep.subr.bf16.mxu0 %v2330
    %2788 = vmatpush2.bf16.msra.mxu0 %v2329
    %2789 = vmatprep.subr.bf16.mxu0 %v2326
    %2790 = vmatpush2.bf16.msra.mxu0 %v2325
    %2791 = vmatprep.mubr.bf16.mxu0 %v1115
    %2792 = vmatmul.mubr.bf16.gmra.mxu0 %v1114
    %v2793 = vpop.f32.mrf.mxu0
    %v2794 = vadd.f32 %v2753, %v2793
    %v2795 = vpop.f32.mrf.mxu0
    %v2796 = vadd.f32 %v2755, %v2795
    %v2797 = vpop.f32.mrf.mxu0
    %v2798 = vpop.f32.mrf.mxu0
    %2799 = vdwg.mxu0
    %2800 = vmatprep.subr.bf16.mxu0 %v2386
    %2801 = vmatpush1.bf16.msra.mxu0 %v2385
    %2802 = vmatprep.subr.bf16.mxu0 %v2382
    %2803 = vmatpush1.bf16.msra.mxu0 %v2381
    %2804 = vmatprep.subr.bf16.mxu0 %v2378
    %2805 = vmatpush1.bf16.msra.mxu0 %v2377
    %2806 = vmatprep.subr.bf16.mxu0 %v2374
    %2807 = vmatpush1.bf16.msra.mxu0 %v2373
    %2808 = vmatprep.subr.bf16.mxu0 %v2370
    %2809 = vmatpush1.bf16.msra.mxu0 %v2369
    %2810 = vmatprep.subr.bf16.mxu0 %v2366
    %2811 = vmatpush1.bf16.msra.mxu0 %v2365
    %2812 = vmatprep.subr.bf16.mxu0 %v2362
    %2813 = vmatpush1.bf16.msra.mxu0 %v2361
    %2814 = vmatprep.subr.bf16.mxu0 %v2358
    %2815 = vmatpush1.bf16.msra.mxu0 %v2357
    %2816 = vmatprep.subr.bf16.mxu0 %v2418
    %2817 = vmatpush2.bf16.msra.mxu0 %v2417
    %2818 = vmatprep.subr.bf16.mxu0 %v2414
    %2819 = vmatpush2.bf16.msra.mxu0 %v2413
    %2820 = vmatprep.subr.bf16.mxu0 %v2410
    %2821 = vmatpush2.bf16.msra.mxu0 %v2409
    %2822 = vmatprep.subr.bf16.mxu0 %v2406
    %2823 = vmatpush2.bf16.msra.mxu0 %v2405
    %2824 = vmatprep.subr.bf16.mxu0 %v2402
    %2825 = vmatpush2.bf16.msra.mxu0 %v2401
    %2826 = vmatprep.subr.bf16.mxu0 %v2398
    %2827 = vmatpush2.bf16.msra.mxu0 %v2397
    %2828 = vmatprep.subr.bf16.mxu0 %v2394
    %2829 = vmatpush2.bf16.msra.mxu0 %v2393
    %2830 = vmatprep.subr.bf16.mxu0 %v2390
    %2831 = vmatpush2.bf16.msra.mxu0 %v2389
    %2832 = vmatprep.mubr.bf16.mxu0 %v1117
    %2833 = vmatmul.mubr.bf16.gmra.mxu0 %v1116
    %v2834 = vpop.f32.mrf.mxu0
    %v2835 = vadd.f32 %v2794, %v2834
    %v2836 = vpop.f32.mrf.mxu0
    %v2837 = vadd.f32 %v2796, %v2836
    %v2838 = vpop.f32.mrf.mxu0
    %v2839 = vpop.f32.mrf.mxu0
    %2840 = vdwg.mxu0
    %2841 = vmatprep.subr.bf16.mxu0 %v2196
    %2842 = vmatpush1.bf16.msra.mxu0 %v2195
    %2843 = vmatprep.subr.bf16.mxu0 %v2192
    %2844 = vmatpush1.bf16.msra.mxu0 %v2191
    %2845 = vmatprep.subr.bf16.mxu0 %v2188
    %2846 = vmatpush1.bf16.msra.mxu0 %v2187
    %2847 = vmatprep.subr.bf16.mxu0 %v2184
    %2848 = vmatpush1.bf16.msra.mxu0 %v2183
    %2849 = vmatprep.subr.bf16.mxu0 %v2180
    %2850 = vmatpush1.bf16.msra.mxu0 %v2179
    %2851 = vmatprep.subr.bf16.mxu0 %v2176
    %2852 = vmatpush1.bf16.msra.mxu0 %v2175
    %2853 = vmatprep.subr.bf16.mxu0 %v2172
    %2854 = vmatpush1.bf16.msra.mxu0 %v2171
    %2855 = vmatprep.subr.bf16.mxu0 %v2168
    %2856 = vmatpush1.bf16.msra.mxu0 %v2167
    %2857 = vmatprep.subr.bf16.mxu0 %v2228
    %2858 = vmatpush2.bf16.msra.mxu0 %v2227
    %2859 = vmatprep.subr.bf16.mxu0 %v2224
    %2860 = vmatpush2.bf16.msra.mxu0 %v2223
    %2861 = vmatprep.subr.bf16.mxu0 %v2220
    %2862 = vmatpush2.bf16.msra.mxu0 %v2219
    %2863 = vmatprep.subr.bf16.mxu0 %v2216
    %2864 = vmatpush2.bf16.msra.mxu0 %v2215
    %2865 = vmatprep.subr.bf16.mxu0 %v2212
    %2866 = vmatpush2.bf16.msra.mxu0 %v2211
    %2867 = vmatprep.subr.bf16.mxu0 %v2208
    %2868 = vmatpush2.bf16.msra.mxu0 %v2207
    %2869 = vmatprep.subr.bf16.mxu0 %v2204
    %2870 = vmatpush2.bf16.msra.mxu0 %v2203
    %2871 = vmatprep.subr.bf16.mxu0 %v2200
    %2872 = vmatpush2.bf16.msra.mxu0 %v2199
    %2873 = vmatprep.mubr.bf16.mxu0 %v1111
    %2874 = vmatmul.mubr.bf16.gmra.mxu0 %v1110
    %v2875 = vpop.f32.mrf.mxu0
    %v2876 = vadd.f32 %v1388, %v2875
    %v2877 = vpop.f32.mrf.mxu0
    %v2878 = vadd.f32 %v1392, %v2877
    %v2879 = vpop.f32.mrf.mxu0
    %v2880 = vpop.f32.mrf.mxu0
    %2881 = vdwg.mxu0
    %2882 = vmatprep.subr.bf16.mxu0 %v2260
    %2883 = vmatpush1.bf16.msra.mxu0 %v2259
    %2884 = vmatprep.subr.bf16.mxu0 %v2256
    %2885 = vmatpush1.bf16.msra.mxu0 %v2255
    %2886 = vmatprep.subr.bf16.mxu0 %v2252
    %2887 = vmatpush1.bf16.msra.mxu0 %v2251
    %2888 = vmatprep.subr.bf16.mxu0 %v2248
    %2889 = vmatpush1.bf16.msra.mxu0 %v2247
    %2890 = vmatprep.subr.bf16.mxu0 %v2244
    %2891 = vmatpush1.bf16.msra.mxu0 %v2243
    %2892 = vmatprep.subr.bf16.mxu0 %v2240
    %2893 = vmatpush1.bf16.msra.mxu0 %v2239
    %2894 = vmatprep.subr.bf16.mxu0 %v2236
    %2895 = vmatpush1.bf16.msra.mxu0 %v2235
    %2896 = vmatprep.subr.bf16.mxu0 %v2232
    %2897 = vmatpush1.bf16.msra.mxu0 %v2231
    %2898 = vmatprep.subr.bf16.mxu0 %v2292
    %2899 = vmatpush2.bf16.msra.mxu0 %v2291
    %2900 = vmatprep.subr.bf16.mxu0 %v2288
    %2901 = vmatpush2.bf16.msra.mxu0 %v2287
    %2902 = vmatprep.subr.bf16.mxu0 %v2284
    %2903 = vmatpush2.bf16.msra.mxu0 %v2283
    %2904 = vmatprep.subr.bf16.mxu0 %v2280
    %2905 = vmatpush2.bf16.msra.mxu0 %v2279
    %2906 = vmatprep.subr.bf16.mxu0 %v2276
    %2907 = vmatpush2.bf16.msra.mxu0 %v2275
    %2908 = vmatprep.subr.bf16.mxu0 %v2272
    %2909 = vmatpush2.bf16.msra.mxu0 %v2271
    %2910 = vmatprep.subr.bf16.mxu0 %v2268
    %2911 = vmatpush2.bf16.msra.mxu0 %v2267
    %2912 = vmatprep.subr.bf16.mxu0 %v2264
    %2913 = vmatpush2.bf16.msra.mxu0 %v2263
    %2914 = vmatprep.mubr.bf16.mxu0 %v1113
    %2915 = vmatmul.mubr.bf16.gmra.mxu0 %v1112
    %v2916 = vpop.f32.mrf.mxu0
    %v2917 = vadd.f32 %v2876, %v2916
    %v2918 = vpop.f32.mrf.mxu0
    %v2919 = vadd.f32 %v2878, %v2918
    %v2920 = vpop.f32.mrf.mxu0
    %v2921 = vpop.f32.mrf.mxu0
    %2922 = vdwg.mxu0
    %2923 = vmatprep.subr.bf16.mxu0 %v2324
    %2924 = vmatpush1.bf16.msra.mxu0 %v2323
    %2925 = vmatprep.subr.bf16.mxu0 %v2320
    %2926 = vmatpush1.bf16.msra.mxu0 %v2319
    %2927 = vmatprep.subr.bf16.mxu0 %v2316
    %2928 = vmatpush1.bf16.msra.mxu0 %v2315
    %2929 = vmatprep.subr.bf16.mxu0 %v2312
    %2930 = vmatpush1.bf16.msra.mxu0 %v2311
    %2931 = vmatprep.subr.bf16.mxu0 %v2308
    %2932 = vmatpush1.bf16.msra.mxu0 %v2307
    %2933 = vmatprep.subr.bf16.mxu0 %v2304
    %2934 = vmatpush1.bf16.msra.mxu0 %v2303
    %2935 = vmatprep.subr.bf16.mxu0 %v2300
    %2936 = vmatpush1.bf16.msra.mxu0 %v2299
    %2937 = vmatprep.subr.bf16.mxu0 %v2296
    %2938 = vmatpush1.bf16.msra.mxu0 %v2295
    %2939 = vmatprep.subr.bf16.mxu0 %v2356
    %2940 = vmatpush2.bf16.msra.mxu0 %v2355
    %2941 = vmatprep.subr.bf16.mxu0 %v2352
    %2942 = vmatpush2.bf16.msra.mxu0 %v2351
    %2943 = vmatprep.subr.bf16.mxu0 %v2348
    %2944 = vmatpush2.bf16.msra.mxu0 %v2347
    %2945 = vmatprep.subr.bf16.mxu0 %v2344
    %2946 = vmatpush2.bf16.msra.mxu0 %v2343
    %2947 = vmatprep.subr.bf16.mxu0 %v2340
    %2948 = vmatpush2.bf16.msra.mxu0 %v2339
    %2949 = vmatprep.subr.bf16.mxu0 %v2336
    %2950 = vmatpush2.bf16.msra.mxu0 %v2335
    %2951 = vmatprep.subr.bf16.mxu0 %v2332
    %2952 = vmatpush2.bf16.msra.mxu0 %v2331
    %2953 = vmatprep.subr.bf16.mxu0 %v2328
    %2954 = vmatpush2.bf16.msra.mxu0 %v2327
    %2955 = vmatprep.mubr.bf16.mxu0 %v1115
    %2956 = vmatmul.mubr.bf16.gmra.mxu0 %v1114
    %v2957 = vpop.f32.mrf.mxu0
    %v2958 = vadd.f32 %v2917, %v2957
    %v2959 = vpop.f32.mrf.mxu0
    %v2960 = vadd.f32 %v2919, %v2959
    %v2961 = vpop.f32.mrf.mxu0
    %v2962 = vpop.f32.mrf.mxu0
    %2963 = vdwg.mxu0
    %2964 = vmatprep.subr.bf16.mxu0 %v2388
    %2965 = vmatpush1.bf16.msra.mxu0 %v2387
    %2966 = vmatprep.subr.bf16.mxu0 %v2384
    %2967 = vmatpush1.bf16.msra.mxu0 %v2383
    %2968 = vmatprep.subr.bf16.mxu0 %v2380
    %2969 = vmatpush1.bf16.msra.mxu0 %v2379
    %2970 = vmatprep.subr.bf16.mxu0 %v2376
    %2971 = vmatpush1.bf16.msra.mxu0 %v2375
    %2972 = vmatprep.subr.bf16.mxu0 %v2372
    %2973 = vmatpush1.bf16.msra.mxu0 %v2371
    %2974 = vmatprep.subr.bf16.mxu0 %v2368
    %2975 = vmatpush1.bf16.msra.mxu0 %v2367
    %2976 = vmatprep.subr.bf16.mxu0 %v2364
    %2977 = vmatpush1.bf16.msra.mxu0 %v2363
    %2978 = vmatprep.subr.bf16.mxu0 %v2360
    %2979 = vmatpush1.bf16.msra.mxu0 %v2359
    %2980 = vmatprep.subr.bf16.mxu0 %v2420
    %2981 = vmatpush2.bf16.msra.mxu0 %v2419
    %2982 = vmatprep.subr.bf16.mxu0 %v2416
    %2983 = vmatpush2.bf16.msra.mxu0 %v2415
    %2984 = vmatprep.subr.bf16.mxu0 %v2412
    %2985 = vmatpush2.bf16.msra.mxu0 %v2411
    %2986 = vmatprep.subr.bf16.mxu0 %v2408
    %2987 = vmatpush2.bf16.msra.mxu0 %v2407
    %2988 = vmatprep.subr.bf16.mxu0 %v2404
    %2989 = vmatpush2.bf16.msra.mxu0 %v2403
    %2990 = vmatprep.subr.bf16.mxu0 %v2400
    %2991 = vmatpush2.bf16.msra.mxu0 %v2399
    %2992 = vmatprep.subr.bf16.mxu0 %v2396
    %2993 = vmatpush2.bf16.msra.mxu0 %v2395
    %2994 = vmatprep.subr.bf16.mxu0 %v2392
    %2995 = vmatpush2.bf16.msra.mxu0 %v2391
    %2996 = vmatprep.mubr.bf16.mxu0 %v1117
    %2997 = vmatmul.mubr.bf16.gmra.mxu0 %v1116
    %v2998 = vpop.f32.mrf.mxu0
    %v2999 = vadd.f32 %v2958, %v2998
    %v3000 = vpop.f32.mrf.mxu0
    %v3001 = vadd.f32 %v2960, %v3000
    %v3002 = vpop.f32.mrf.mxu0
    %v3003 = vpop.f32.mrf.mxu0
    %3004 = vdwg.mxu0
    %vm3005 = vcmp.ge.f32.partialorder %v2835, 0.0
    %vm3006 = vcmp.ge.f32.partialorder %v2837, 0.0
    %vm3007 = vcmp.ge.f32.partialorder %v2999, 0.0
    %vm3008 = vcmp.ge.f32.partialorder %v3001, 0.0
    %v3009 = vmul.f32 %v2835, 0.01
    %v3010 = vmul.f32 %v2837, 0.01
    %v3011 = vmul.f32 %v2999, 0.01
    %v3012 = vmul.f32 %v3001, 0.01
    %v3013 = vsel %vm3005, %v2835, %v3009
    %v3014 = vsel %vm3006, %v2837, %v3010
    %v3015 = vsel %vm3007, %v2999, %v3011
    %v3016 = vsel %vm3008, %v3001, %v3012
    %v3017 = vpack.c.bf16 %v3013, %v3013
    %v3018 = vpack.c.bf16 %v3014, %v3014
    %v3019 = vpack.c.bf16 %v3015, %v3015
    %v3020 = vpack.c.bf16 %v3016, %v3016
    %v3021 = vld [vmem:[%s4] sm:$0xf]
    %v3022 = vld [vmem:[%s4 + $0x4] sm:$0xf]
    %v3023 = vld [vmem:[%s4 + $0x8] sm:$0xf]
    %v3024 = vld [vmem:[%s4 + $0xc] sm:$0xf]
    %v3025 = vld [vmem:[%s4 + $0x10] sm:$0xf]
    %v3026 = vld [vmem:[%s4 + $0x14] sm:$0xf]
    %v3027 = vld [vmem:[%s4 + $0x18] sm:$0xf]
    %v3028 = vld [vmem:[%s4 + $0x1c] sm:$0xf]
    %v3029 = vld [vmem:[%s4 + $0x20] sm:$0xf]
    %v3030 = vld [vmem:[%s4 + $0x24] sm:$0xf]
    %v3031 = vld [vmem:[%s4 + $0x28] sm:$0xf]
    %v3032 = vld [vmem:[%s4 + $0x2c] sm:$0xf]
    %v3033 = vld [vmem:[%s4 + $0x30] sm:$0xf]
    %v3034 = vld [vmem:[%s4 + $0x34] sm:$0xf]
    %v3035 = vld [vmem:[%s4 + $0x38] sm:$0xf]
    %v3036 = vld [vmem:[%s4 + $0x3c] sm:$0xf]
    %v3037 = vld [vmem:[%s4 + $0x40] sm:$0xf]
    %v3038 = vld [vmem:[%s4 + $0x44] sm:$0xf]
    %v3039 = vld [vmem:[%s4 + $0x48] sm:$0xf]
    %v3040 = vld [vmem:[%s4 + $0x4c] sm:$0xf]
    %v3041 = vld [vmem:[%s4 + $0x50] sm:$0xf]
    %v3042 = vld [vmem:[%s4 + $0x54] sm:$0xf]
    %v3043 = vld [vmem:[%s4 + $0x58] sm:$0xf]
    %v3044 = vld [vmem:[%s4 + $0x5c] sm:$0xf]
    %v3045 = vld [vmem:[%s4 + $0x60] sm:$0xf]
    %v3046 = vld [vmem:[%s4 + $0x64] sm:$0xf]
    %v3047 = vld [vmem:[%s4 + $0x68] sm:$0xf]
    %v3048 = vld [vmem:[%s4 + $0x6c] sm:$0xf]
    %v3049 = vld [vmem:[%s4 + $0x70] sm:$0xf]
    %v3050 = vld [vmem:[%s4 + $0x74] sm:$0xf]
    %v3051 = vld [vmem:[%s4 + $0x78] sm:$0xf]
    %v3052 = vld [vmem:[%s4 + $0x7c] sm:$0xf]
    %v3053 = vld [vmem:[%s4 + $0x80] sm:$0xf]
    %v3054 = vld [vmem:[%s4 + $0x84] sm:$0xf]
    %v3055 = vld [vmem:[%s4 + $0x88] sm:$0xf]
    %v3056 = vld [vmem:[%s4 + $0x8c] sm:$0xf]
    %v3057 = vld [vmem:[%s4 + $0x90] sm:$0xf]
    %v3058 = vld [vmem:[%s4 + $0x94] sm:$0xf]
    %v3059 = vld [vmem:[%s4 + $0x98] sm:$0xf]
    %v3060 = vld [vmem:[%s4 + $0x9c] sm:$0xf]
    %v3061 = vld [vmem:[%s4 + $0xa0] sm:$0xf]
    %v3062 = vld [vmem:[%s4 + $0xa4] sm:$0xf]
    %v3063 = vld [vmem:[%s4 + $0xa8] sm:$0xf]
    %v3064 = vld [vmem:[%s4 + $0xac] sm:$0xf]
    %v3065 = vld [vmem:[%s4 + $0xb0] sm:$0xf]
    %v3066 = vld [vmem:[%s4 + $0xb4] sm:$0xf]
    %v3067 = vld [vmem:[%s4 + $0xb8] sm:$0xf]
    %v3068 = vld [vmem:[%s4 + $0xbc] sm:$0xf]
    %v3069 = vld [vmem:[%s4 + $0xc0] sm:$0xf]
    %v3070 = vld [vmem:[%s4 + $0xc4] sm:$0xf]
    %v3071 = vld [vmem:[%s4 + $0xc8] sm:$0xf]
    %v3072 = vld [vmem:[%s4 + $0xcc] sm:$0xf]
    %v3073 = vld [vmem:[%s4 + $0xd0] sm:$0xf]
    %v3074 = vld [vmem:[%s4 + $0xd4] sm:$0xf]
    %v3075 = vld [vmem:[%s4 + $0xd8] sm:$0xf]
    %v3076 = vld [vmem:[%s4 + $0xdc] sm:$0xf]
    %v3077 = vld [vmem:[%s4 + $0xe0] sm:$0xf]
    %v3078 = vld [vmem:[%s4 + $0xe4] sm:$0xf]
    %v3079 = vld [vmem:[%s4 + $0xe8] sm:$0xf]
    %v3080 = vld [vmem:[%s4 + $0xec] sm:$0xf]
    %v3081 = vld [vmem:[%s4 + $0xf0] sm:$0xf]
    %v3082 = vld [vmem:[%s4 + $0xf4] sm:$0xf]
    %v3083 = vld [vmem:[%s4 + $0xf8] sm:$0xf]
    %v3084 = vld [vmem:[%s4 + $0xfc] sm:$0xf]
    %v3085 = vld [vmem:[#allocation8 + $0x2] ss:$0 sm:$0xff]
    %v3150 = vunpack.c.l.b16 %v3021
    %v3151 = vunpack.c.l.b16 %v3022
    %v3152 = vunpack.c.l.b16 %v3023
    %v3153 = vunpack.c.l.b16 %v3024
    %v3154 = vunpack.c.l.b16 %v3025
    %v3155 = vunpack.c.l.b16 %v3026
    %v3156 = vunpack.c.l.b16 %v3027
    %v3157 = vunpack.c.l.b16 %v3028
    %v3158 = vunpack.c.l.b16 %v3029
    %v3159 = vunpack.c.l.b16 %v3030
    %v3160 = vunpack.c.l.b16 %v3031
    %v3161 = vunpack.c.l.b16 %v3032
    %v3162 = vunpack.c.l.b16 %v3033
    %v3163 = vunpack.c.l.b16 %v3034
    %v3164 = vunpack.c.l.b16 %v3035
    %v3165 = vunpack.c.l.b16 %v3036
    %v3166 = vunpack.c.l.b16 %v3037
    %v3167 = vunpack.c.l.b16 %v3038
    %v3168 = vunpack.c.l.b16 %v3039
    %v3169 = vunpack.c.l.b16 %v3040
    %v3170 = vunpack.c.l.b16 %v3041
    %v3171 = vunpack.c.l.b16 %v3042
    %v3172 = vunpack.c.l.b16 %v3043
    %v3173 = vunpack.c.l.b16 %v3044
    %v3174 = vunpack.c.l.b16 %v3045
    %v3175 = vunpack.c.l.b16 %v3046
    %v3176 = vunpack.c.l.b16 %v3047
    %v3177 = vunpack.c.l.b16 %v3048
    %v3178 = vunpack.c.l.b16 %v3049
    %v3179 = vunpack.c.l.b16 %v3050
    %v3180 = vunpack.c.l.b16 %v3051
    %v3181 = vunpack.c.l.b16 %v3052
    %v3182 = vunpack.c.l.b16 %v3053
    %v3183 = vunpack.c.l.b16 %v3054
    %v3184 = vunpack.c.l.b16 %v3055
    %v3185 = vunpack.c.l.b16 %v3056
    %v3186 = vunpack.c.l.b16 %v3057
    %v3187 = vunpack.c.l.b16 %v3058
    %v3188 = vunpack.c.l.b16 %v3059
    %v3189 = vunpack.c.l.b16 %v3060
    %v3190 = vunpack.c.l.b16 %v3061
    %v3191 = vunpack.c.l.b16 %v3062
    %v3192 = vunpack.c.l.b16 %v3063
    %v3193 = vunpack.c.l.b16 %v3064
    %v3194 = vunpack.c.l.b16 %v3065
    %v3195 = vunpack.c.l.b16 %v3066
    %v3196 = vunpack.c.l.b16 %v3067
    %v3197 = vunpack.c.l.b16 %v3068
    %v3198 = vunpack.c.l.b16 %v3069
    %v3199 = vunpack.c.l.b16 %v3070
    %v3200 = vunpack.c.l.b16 %v3071
    %v3201 = vunpack.c.l.b16 %v3072
    %v3202 = vunpack.c.l.b16 %v3073
    %v3203 = vunpack.c.l.b16 %v3074
    %v3204 = vunpack.c.l.b16 %v3075
    %v3205 = vunpack.c.l.b16 %v3076
    %v3206 = vunpack.c.l.b16 %v3077
    %v3207 = vunpack.c.l.b16 %v3078
    %v3208 = vunpack.c.l.b16 %v3079
    %v3209 = vunpack.c.l.b16 %v3080
    %v3210 = vunpack.c.l.b16 %v3081
    %v3211 = vunpack.c.l.b16 %v3082
    %v3212 = vunpack.c.l.b16 %v3083
    %v3213 = vunpack.c.l.b16 %v3084
    %v3214 = vpack.c.b16 %v3151, %v3150
    %v3215 = vpack.c.b16 %v3153, %v3152
    %v3216 = vpack.c.b16 %v3155, %v3154
    %v3217 = vpack.c.b16 %v3157, %v3156
    %v3218 = vpack.c.b16 %v3159, %v3158
    %v3219 = vpack.c.b16 %v3161, %v3160
    %v3220 = vpack.c.b16 %v3163, %v3162
    %v3221 = vpack.c.b16 %v3165, %v3164
    %v3222 = vpack.c.b16 %v3167, %v3166
    %v3223 = vpack.c.b16 %v3169, %v3168
    %v3224 = vpack.c.b16 %v3171, %v3170
    %v3225 = vpack.c.b16 %v3173, %v3172
    %v3226 = vpack.c.b16 %v3175, %v3174
    %v3227 = vpack.c.b16 %v3177, %v3176
    %v3228 = vpack.c.b16 %v3179, %v3178
    %v3229 = vpack.c.b16 %v3181, %v3180
    %v3230 = vpack.c.b16 %v3183, %v3182
    %v3231 = vpack.c.b16 %v3185, %v3184
    %v3232 = vpack.c.b16 %v3187, %v3186
    %v3233 = vpack.c.b16 %v3189, %v3188
    %v3234 = vpack.c.b16 %v3191, %v3190
    %v3235 = vpack.c.b16 %v3193, %v3192
    %v3236 = vpack.c.b16 %v3195, %v3194
    %v3237 = vpack.c.b16 %v3197, %v3196
    %v3238 = vpack.c.b16 %v3199, %v3198
    %v3239 = vpack.c.b16 %v3201, %v3200
    %v3240 = vpack.c.b16 %v3203, %v3202
    %v3241 = vpack.c.b16 %v3205, %v3204
    %v3242 = vpack.c.b16 %v3207, %v3206
    %v3243 = vpack.c.b16 %v3209, %v3208
    %v3244 = vpack.c.b16 %v3211, %v3210
    %v3245 = vpack.c.b16 %v3213, %v3212
    %3278 = vmatprep.subr.bf16.mxu0 0
    %3279 = vmatpush1.bf16.msra.mxu0 %v3221
    %3280 = vmatprep.subr.bf16.mxu0 0
    %3281 = vmatpush1.bf16.msra.mxu0 %v3220
    %3282 = vmatprep.subr.bf16.mxu0 0
    %3283 = vmatpush1.bf16.msra.mxu0 %v3219
    %3284 = vmatprep.subr.bf16.mxu0 0
    %3285 = vmatpush1.bf16.msra.mxu0 %v3218
    %3286 = vmatprep.subr.bf16.mxu0 0
    %3287 = vmatpush1.bf16.msra.mxu0 %v3217
    %3288 = vmatprep.subr.bf16.mxu0 0
    %3289 = vmatpush1.bf16.msra.mxu0 %v3216
    %3290 = vmatprep.subr.bf16.mxu0 0
    %3291 = vmatpush1.bf16.msra.mxu0 %v3215
    %3292 = vmatprep.subr.bf16.mxu0 0
    %3293 = vmatpush1.bf16.msra.mxu0 %v3214
    %3294 = vmatprep.subr.bf16.mxu0 0
    %3295 = vmatpush2.bf16.msra.mxu0 %v3229
    %3296 = vmatprep.subr.bf16.mxu0 0
    %3297 = vmatpush2.bf16.msra.mxu0 %v3228
    %3298 = vmatprep.subr.bf16.mxu0 0
    %3299 = vmatpush2.bf16.msra.mxu0 %v3227
    %3300 = vmatprep.subr.bf16.mxu0 0
    %3301 = vmatpush2.bf16.msra.mxu0 %v3226
    %3302 = vmatprep.subr.bf16.mxu0 0
    %3303 = vmatpush2.bf16.msra.mxu0 %v3225
    %3304 = vmatprep.subr.bf16.mxu0 0
    %3305 = vmatpush2.bf16.msra.mxu0 %v3224
    %3306 = vmatprep.subr.bf16.mxu0 0
    %3307 = vmatpush2.bf16.msra.mxu0 %v3223
    %3308 = vmatprep.subr.bf16.mxu0 0
    %3309 = vmatpush2.bf16.msra.mxu0 %v3222
    %3310 = vmatprep.mubr.bf16.mxu0 %v3018
    %3311 = vmatmul.mubr.bf16.gmra.mxu0 %v3017
    %v3312 = vpop.f32.mrf.mxu0
    %v3313 = vadd.f32 %v3085, %v3312
    %v3314 = vpop.f32.mrf.mxu0
    %v3315 = vpop.f32.mrf.mxu0
    %v3316 = vpop.f32.mrf.mxu0
    %3317 = vdwg.mxu0
    %3318 = vmatprep.subr.bf16.mxu0 0
    %3319 = vmatpush1.bf16.msra.mxu0 %v3237
    %3320 = vmatprep.subr.bf16.mxu0 0
    %3321 = vmatpush1.bf16.msra.mxu0 %v3236
    %3322 = vmatprep.subr.bf16.mxu0 0
    %3323 = vmatpush1.bf16.msra.mxu0 %v3235
    %3324 = vmatprep.subr.bf16.mxu0 0
    %3325 = vmatpush1.bf16.msra.mxu0 %v3234
    %3326 = vmatprep.subr.bf16.mxu0 0
    %3327 = vmatpush1.bf16.msra.mxu0 %v3233
    %3328 = vmatprep.subr.bf16.mxu0 0
    %3329 = vmatpush1.bf16.msra.mxu0 %v3232
    %3330 = vmatprep.subr.bf16.mxu0 0
    %3331 = vmatpush1.bf16.msra.mxu0 %v3231
    %3332 = vmatprep.subr.bf16.mxu0 0
    %3333 = vmatpush1.bf16.msra.mxu0 %v3230
    %3334 = vmatprep.subr.bf16.mxu0 0
    %3335 = vmatpush2.bf16.msra.mxu0 %v3245
    %3336 = vmatprep.subr.bf16.mxu0 0
    %3337 = vmatpush2.bf16.msra.mxu0 %v3244
    %3338 = vmatprep.subr.bf16.mxu0 0
    %3339 = vmatpush2.bf16.msra.mxu0 %v3243
    %3340 = vmatprep.subr.bf16.mxu0 0
    %3341 = vmatpush2.bf16.msra.mxu0 %v3242
    %3342 = vmatprep.subr.bf16.mxu0 0
    %3343 = vmatpush2.bf16.msra.mxu0 %v3241
    %3344 = vmatprep.subr.bf16.mxu0 0
    %3345 = vmatpush2.bf16.msra.mxu0 %v3240
    %3346 = vmatprep.subr.bf16.mxu0 0
    %3347 = vmatpush2.bf16.msra.mxu0 %v3239
    %3348 = vmatprep.subr.bf16.mxu0 0
    %3349 = vmatpush2.bf16.msra.mxu0 %v3238
    %3350 = vmatprep.mubr.bf16.mxu0 %v3020
    %3351 = vmatmul.mubr.bf16.gmra.mxu0 %v3019
    %v3352 = vpop.f32.mrf.mxu0
    %v3353 = vadd.f32 %v3313, %v3352
    %v3354 = vpop.f32.mrf.mxu0
    %v3355 = vpop.f32.mrf.mxu0
    %v3356 = vpop.f32.mrf.mxu0
    %3357 = vdwg.mxu0
    %v3358 = vtanh.pop %v3353
    %vm3359 = vcmask 254976
    %3360 = vst.msk [vmem:[#allocation11] sm:$0x3] %vm3359, %v3358
    %v3361 = vpack.c.bf16 %v3358, %v3358
    %v3362 = vld [vmem:[#allocation5 + $0x800] sm:$0xff]
    %v3363 = vld [vmem:[#allocation5 + $0x808] sm:$0xff]
    %v3364 = vld [vmem:[#allocation5 + $0x810] sm:$0xff]
    %v3365 = vld [vmem:[#allocation5 + $0x818] sm:$0xff]
    %v3366 = vld [vmem:[#allocation5 + $0x820] sm:$0xff]
    %v3367 = vld [vmem:[#allocation5 + $0x828] sm:$0xff]
    %v3368 = vld [vmem:[#allocation5 + $0x830] sm:$0xff]
    %v3369 = vld [vmem:[#allocation5 + $0x838] sm:$0xff]
    %s3370 = scalar_lea.vmem [#allocation8], 3
    %v3371 = vld [vmem:[%s3370] ss:$8 sm:$0xf]
    %v3373 = vlaneseq
    %v3374 = vshrl.u32 %v3373, 7
    %v3375 = vsub.s32 0, %v3374
    %v3376 = vrot.slane %v3371, %v3375
    %v3377 = vlaneseq
    %v3378 = vshrl.u32 %v3377, 7
    %v3379 = vsub.s32 1, %v3378
    %v3380 = vrot.slane %v3371, %v3379
    %v3381 = vlaneseq
    %v3382 = vshrl.u32 %v3381, 7
    %v3383 = vsub.s32 2, %v3382
    %v3384 = vrot.slane %v3371, %v3383
    %v3385 = vlaneseq
    %v3386 = vshrl.u32 %v3385, 7
    %v3387 = vsub.s32 3, %v3386
    %v3388 = vrot.slane %v3371, %v3387
    %v3401 = vunpack.c.l.b16 %v3362
    %v3402 = vunpack.c.h.b16 %v3362
    %v3403 = vunpack.c.l.b16 %v3363
    %v3404 = vunpack.c.h.b16 %v3363
    %v3405 = vunpack.c.l.b16 %v3364
    %v3406 = vunpack.c.h.b16 %v3364
    %v3407 = vunpack.c.l.b16 %v3365
    %v3408 = vunpack.c.h.b16 %v3365
    %v3409 = vunpack.c.l.b16 %v3366
    %v3410 = vunpack.c.h.b16 %v3366
    %v3411 = vunpack.c.l.b16 %v3367
    %v3412 = vunpack.c.h.b16 %v3367
    %v3413 = vunpack.c.l.b16 %v3368
    %v3414 = vunpack.c.h.b16 %v3368
    %v3415 = vunpack.c.l.b16 %v3369
    %v3416 = vunpack.c.h.b16 %v3369
    %v3417 = vpack.c.b16 %v3405, %v3401
    %v3418 = vpack.c.b16 %v3406, %v3402
    %v3419 = vpack.c.b16 %v3407, %v3403
    %v3420 = vpack.c.b16 %v3408, %v3404
    %v3421 = vpack.c.b16 %v3413, %v3409
    %v3422 = vpack.c.b16 %v3414, %v3410
    %v3423 = vpack.c.b16 %v3415, %v3411
    %v3424 = vpack.c.b16 %v3416, %v3412
    %vm3433 = vcmask 261120
    %v3435 = vsel %vm3433, %v3361, 0
    %3437 = vmatprep.subr.bf16.mxu0 0
    %3438 = vmatpush1.bf16.msra.mxu0 0
    %3439 = vmatprep.subr.bf16.mxu0 0
    %3440 = vmatpush1.bf16.msra.mxu0 0
    %3441 = vmatprep.subr.bf16.mxu0 0
    %3442 = vmatpush1.bf16.msra.mxu0 0
    %3443 = vmatprep.subr.bf16.mxu0 0
    %3444 = vmatpush1.bf16.msra.mxu0 0
    %3445 = vmatprep.subr.bf16.mxu0 0
    %3446 = vmatpush1.bf16.msra.mxu0 0
    %3447 = vmatprep.subr.bf16.mxu0 0
    %3448 = vmatpush1.bf16.msra.mxu0 0
    %3449 = vmatprep.subr.bf16.mxu0 %v3422
    %3450 = vmatpush1.bf16.msra.mxu0 %v3421
    %3451 = vmatprep.subr.bf16.mxu0 %v3418
    %3452 = vmatpush1.bf16.msra.mxu0 %v3417
    %3453 = vmatprep.subr.bf16.mxu0 0
    %3454 = vmatpush2.bf16.msra.mxu0 0
    %3455 = vmatprep.subr.bf16.mxu0 0
    %3456 = vmatpush2.bf16.msra.mxu0 0
    %3457 = vmatprep.subr.bf16.mxu0 0
    %3458 = vmatpush2.bf16.msra.mxu0 0
    %3459 = vmatprep.subr.bf16.mxu0 0
    %3460 = vmatpush2.bf16.msra.mxu0 0
    %3461 = vmatprep.subr.bf16.mxu0 0
    %3462 = vmatpush2.bf16.msra.mxu0 0
    %3463 = vmatprep.subr.bf16.mxu0 0
    %3464 = vmatpush2.bf16.msra.mxu0 0
    %3465 = vmatprep.subr.bf16.mxu0 0
    %3466 = vmatpush2.bf16.msra.mxu0 0
    %3467 = vmatprep.subr.bf16.mxu0 0
    %3468 = vmatpush2.bf16.msra.mxu0 0
    %3469 = vmatprep.mubr.bf16.mxu0 0
    %3470 = vmatmul.mubr.bf16.gmra.mxu0 %v3435
    %v3471 = vpop.f32.mrf.mxu0
    %v3472 = vadd.f32 %v3376, %v3471
    %v3473 = vpop.f32.mrf.mxu0
    %v3474 = vadd.f32 %v3380, %v3473
    %v3475 = vpop.f32.mrf.mxu0
    %v3476 = vpop.f32.mrf.mxu0
    %3477 = vdwg.mxu0
    %3478 = vmatprep.subr.bf16.mxu0 0
    %3479 = vmatpush1.bf16.msra.mxu0 0
    %3480 = vmatprep.subr.bf16.mxu0 0
    %3481 = vmatpush1.bf16.msra.mxu0 0
    %3482 = vmatprep.subr.bf16.mxu0 0
    %3483 = vmatpush1.bf16.msra.mxu0 0
    %3484 = vmatprep.subr.bf16.mxu0 0
    %3485 = vmatpush1.bf16.msra.mxu0 0
    %3486 = vmatprep.subr.bf16.mxu0 0
    %3487 = vmatpush1.bf16.msra.mxu0 0
    %3488 = vmatprep.subr.bf16.mxu0 0
    %3489 = vmatpush1.bf16.msra.mxu0 0
    %3490 = vmatprep.subr.bf16.mxu0 %v3424
    %3491 = vmatpush1.bf16.msra.mxu0 %v3423
    %3492 = vmatprep.subr.bf16.mxu0 %v3420
    %3493 = vmatpush1.bf16.msra.mxu0 %v3419
    %3494 = vmatprep.subr.bf16.mxu0 0
    %3495 = vmatpush2.bf16.msra.mxu0 0
    %3496 = vmatprep.subr.bf16.mxu0 0
    %3497 = vmatpush2.bf16.msra.mxu0 0
    %3498 = vmatprep.subr.bf16.mxu0 0
    %3499 = vmatpush2.bf16.msra.mxu0 0
    %3500 = vmatprep.subr.bf16.mxu0 0
    %3501 = vmatpush2.bf16.msra.mxu0 0
    %3502 = vmatprep.subr.bf16.mxu0 0
    %3503 = vmatpush2.bf16.msra.mxu0 0
    %3504 = vmatprep.subr.bf16.mxu0 0
    %3505 = vmatpush2.bf16.msra.mxu0 0
    %3506 = vmatprep.subr.bf16.mxu0 0
    %3507 = vmatpush2.bf16.msra.mxu0 0
    %3508 = vmatprep.subr.bf16.mxu0 0
    %3509 = vmatpush2.bf16.msra.mxu0 0
    %3510 = vmatprep.mubr.bf16.mxu0 0
    %3511 = vmatmul.mubr.bf16.gmra.mxu0 %v3435
    %v3512 = vpop.f32.mrf.mxu0
    %v3513 = vadd.f32 %v3384, %v3512
    %v3514 = vpop.f32.mrf.mxu0
    %v3515 = vadd.f32 %v3388, %v3514
    %v3516 = vpop.f32.mrf.mxu0
    %v3517 = vpop.f32.mrf.mxu0
    %3518 = vdwg.mxu0
    %vm3519 = vcmp.ge.f32.partialorder %v3472, 0.0
    %vm3520 = vcmp.ge.f32.partialorder %v3474, 0.0
    %vm3521 = vcmp.ge.f32.partialorder %v3513, 0.0
    %vm3522 = vcmp.ge.f32.partialorder %v3515, 0.0
    %v3523 = vmul.f32 %v3472, 0.01
    %v3524 = vmul.f32 %v3474, 0.01
    %v3525 = vmul.f32 %v3513, 0.01
    %v3526 = vmul.f32 %v3515, 0.01
    %v3527 = vsel %vm3519, %v3472, %v3523
    %v3528 = vsel %vm3520, %v3474, %v3524
    %v3529 = vsel %vm3521, %v3513, %v3525
    %v3530 = vsel %vm3522, %v3515, %v3526
    %v3531 = vpack.c.bf16 %v3527, %v3527
    %v3532 = vpack.c.bf16 %v3528, %v3528
    %v3533 = vpack.c.bf16 %v3529, %v3529
    %v3534 = vpack.c.bf16 %v3530, %v3530
    %v3535 = vld [vmem:[#allocation2 + $0x400] sm:$0xff]
    %v3536 = vld [vmem:[#allocation2 + $0x408] sm:$0xff]
    %v3537 = vld [vmem:[#allocation2 + $0x410] sm:$0xff]
    %v3538 = vld [vmem:[#allocation2 + $0x418] sm:$0xff]
    %v3539 = vld [vmem:[#allocation2 + $0x420] sm:$0xff]
    %v3540 = vld [vmem:[#allocation2 + $0x428] sm:$0xff]
    %v3541 = vld [vmem:[#allocation2 + $0x430] sm:$0xff]
    %v3542 = vld [vmem:[#allocation2 + $0x438] sm:$0xff]
    %v3543 = vld [vmem:[#allocation2 + $0x440] sm:$0xff]
    %v3544 = vld [vmem:[#allocation2 + $0x448] sm:$0xff]
    %v3545 = vld [vmem:[#allocation2 + $0x450] sm:$0xff]
    %v3546 = vld [vmem:[#allocation2 + $0x458] sm:$0xff]
    %v3547 = vld [vmem:[#allocation2 + $0x460] sm:$0xff]
    %v3548 = vld [vmem:[#allocation2 + $0x468] sm:$0xff]
    %v3549 = vld [vmem:[#allocation2 + $0x470] sm:$0xff]
    %v3550 = vld [vmem:[#allocation2 + $0x478] sm:$0xff]
    %v3551 = vld [vmem:[#allocation2 + $0x480] sm:$0xff]
    %v3552 = vld [vmem:[#allocation2 + $0x488] sm:$0xff]
    %v3553 = vld [vmem:[#allocation2 + $0x490] sm:$0xff]
    %v3554 = vld [vmem:[#allocation2 + $0x498] sm:$0xff]
    %v3555 = vld [vmem:[#allocation2 + $0x4a0] sm:$0xff]
    %v3556 = vld [vmem:[#allocation2 + $0x4a8] sm:$0xff]
    %v3557 = vld [vmem:[#allocation2 + $0x4b0] sm:$0xff]
    %v3558 = vld [vmem:[#allocation2 + $0x4b8] sm:$0xff]
    %v3559 = vld [vmem:[#allocation2 + $0x4c0] sm:$0xff]
    %v3560 = vld [vmem:[#allocation2 + $0x4c8] sm:$0xff]
    %v3561 = vld [vmem:[#allocation2 + $0x4d0] sm:$0xff]
    %v3562 = vld [vmem:[#allocation2 + $0x4d8] sm:$0xff]
    %v3563 = vld [vmem:[#allocation2 + $0x4e0] sm:$0xff]
    %v3564 = vld [vmem:[#allocation2 + $0x4e8] sm:$0xff]
    %v3565 = vld [vmem:[#allocation2 + $0x4f0] sm:$0xff]
    %v3566 = vld [vmem:[#allocation2 + $0x4f8] sm:$0xff]
    %v3567 = vld [vmem:[#allocation2 + $0x500] sm:$0xff]
    %v3568 = vld [vmem:[#allocation2 + $0x508] sm:$0xff]
    %v3569 = vld [vmem:[#allocation2 + $0x510] sm:$0xff]
    %v3570 = vld [vmem:[#allocation2 + $0x518] sm:$0xff]
    %v3571 = vld [vmem:[#allocation2 + $0x520] sm:$0xff]
    %v3572 = vld [vmem:[#allocation2 + $0x528] sm:$0xff]
    %v3573 = vld [vmem:[#allocation2 + $0x530] sm:$0xff]
    %v3574 = vld [vmem:[#allocation2 + $0x538] sm:$0xff]
    %v3575 = vld [vmem:[#allocation2 + $0x540] sm:$0xff]
    %v3576 = vld [vmem:[#allocation2 + $0x548] sm:$0xff]
    %v3577 = vld [vmem:[#allocation2 + $0x550] sm:$0xff]
    %v3578 = vld [vmem:[#allocation2 + $0x558] sm:$0xff]
    %v3579 = vld [vmem:[#allocation2 + $0x560] sm:$0xff]
    %v3580 = vld [vmem:[#allocation2 + $0x568] sm:$0xff]
    %v3581 = vld [vmem:[#allocation2 + $0x570] sm:$0xff]
    %v3582 = vld [vmem:[#allocation2 + $0x578] sm:$0xff]
    %v3583 = vld [vmem:[#allocation2 + $0x580] sm:$0xff]
    %v3584 = vld [vmem:[#allocation2 + $0x588] sm:$0xff]
    %v3585 = vld [vmem:[#allocation2 + $0x590] sm:$0xff]
    %v3586 = vld [vmem:[#allocation2 + $0x598] sm:$0xff]
    %v3587 = vld [vmem:[#allocation2 + $0x5a0] sm:$0xff]
    %v3588 = vld [vmem:[#allocation2 + $0x5a8] sm:$0xff]
    %v3589 = vld [vmem:[#allocation2 + $0x5b0] sm:$0xff]
    %v3590 = vld [vmem:[#allocation2 + $0x5b8] sm:$0xff]
    %v3591 = vld [vmem:[#allocation2 + $0x5c0] sm:$0xff]
    %v3592 = vld [vmem:[#allocation2 + $0x5c8] sm:$0xff]
    %v3593 = vld [vmem:[#allocation2 + $0x5d0] sm:$0xff]
    %v3594 = vld [vmem:[#allocation2 + $0x5d8] sm:$0xff]
    %v3595 = vld [vmem:[#allocation2 + $0x5e0] sm:$0xff]
    %v3596 = vld [vmem:[#allocation2 + $0x5e8] sm:$0xff]
    %v3597 = vld [vmem:[#allocation2 + $0x5f0] sm:$0xff]
    %v3598 = vld [vmem:[#allocation2 + $0x5f8] sm:$0xff]
    %v3599 = vld [vmem:[#allocation2 + $0x600] sm:$0xff]
    %v3600 = vld [vmem:[#allocation2 + $0x608] sm:$0xff]
    %v3601 = vld [vmem:[#allocation2 + $0x610] sm:$0xff]
    %v3602 = vld [vmem:[#allocation2 + $0x618] sm:$0xff]
    %v3603 = vld [vmem:[#allocation2 + $0x620] sm:$0xff]
    %v3604 = vld [vmem:[#allocation2 + $0x628] sm:$0xff]
    %v3605 = vld [vmem:[#allocation2 + $0x630] sm:$0xff]
    %v3606 = vld [vmem:[#allocation2 + $0x638] sm:$0xff]
    %v3607 = vld [vmem:[#allocation2 + $0x640] sm:$0xff]
    %v3608 = vld [vmem:[#allocation2 + $0x648] sm:$0xff]
    %v3609 = vld [vmem:[#allocation2 + $0x650] sm:$0xff]
    %v3610 = vld [vmem:[#allocation2 + $0x658] sm:$0xff]
    %v3611 = vld [vmem:[#allocation2 + $0x660] sm:$0xff]
    %v3612 = vld [vmem:[#allocation2 + $0x668] sm:$0xff]
    %v3613 = vld [vmem:[#allocation2 + $0x670] sm:$0xff]
    %v3614 = vld [vmem:[#allocation2 + $0x678] sm:$0xff]
    %v3615 = vld [vmem:[#allocation2 + $0x680] sm:$0xff]
    %v3616 = vld [vmem:[#allocation2 + $0x688] sm:$0xff]
    %v3617 = vld [vmem:[#allocation2 + $0x690] sm:$0xff]
    %v3618 = vld [vmem:[#allocation2 + $0x698] sm:$0xff]
    %v3619 = vld [vmem:[#allocation2 + $0x6a0] sm:$0xff]
    %v3620 = vld [vmem:[#allocation2 + $0x6a8] sm:$0xff]
    %v3621 = vld [vmem:[#allocation2 + $0x6b0] sm:$0xff]
    %v3622 = vld [vmem:[#allocation2 + $0x6b8] sm:$0xff]
    %v3623 = vld [vmem:[#allocation2 + $0x6c0] sm:$0xff]
    %v3624 = vld [vmem:[#allocation2 + $0x6c8] sm:$0xff]
    %v3625 = vld [vmem:[#allocation2 + $0x6d0] sm:$0xff]
    %v3626 = vld [vmem:[#allocation2 + $0x6d8] sm:$0xff]
    %v3627 = vld [vmem:[#allocation2 + $0x6e0] sm:$0xff]
    %v3628 = vld [vmem:[#allocation2 + $0x6e8] sm:$0xff]
    %v3629 = vld [vmem:[#allocation2 + $0x6f0] sm:$0xff]
    %v3630 = vld [vmem:[#allocation2 + $0x6f8] sm:$0xff]
    %v3631 = vld [vmem:[#allocation2 + $0x700] sm:$0xff]
    %v3632 = vld [vmem:[#allocation2 + $0x708] sm:$0xff]
    %v3633 = vld [vmem:[#allocation2 + $0x710] sm:$0xff]
    %v3634 = vld [vmem:[#allocation2 + $0x718] sm:$0xff]
    %v3635 = vld [vmem:[#allocation2 + $0x720] sm:$0xff]
    %v3636 = vld [vmem:[#allocation2 + $0x728] sm:$0xff]
    %v3637 = vld [vmem:[#allocation2 + $0x730] sm:$0xff]
    %v3638 = vld [vmem:[#allocation2 + $0x738] sm:$0xff]
    %v3639 = vld [vmem:[#allocation2 + $0x740] sm:$0xff]
    %v3640 = vld [vmem:[#allocation2 + $0x748] sm:$0xff]
    %v3641 = vld [vmem:[#allocation2 + $0x750] sm:$0xff]
    %v3642 = vld [vmem:[#allocation2 + $0x758] sm:$0xff]
    %v3643 = vld [vmem:[#allocation2 + $0x760] sm:$0xff]
    %v3644 = vld [vmem:[#allocation2 + $0x768] sm:$0xff]
    %v3645 = vld [vmem:[#allocation2 + $0x770] sm:$0xff]
    %v3646 = vld [vmem:[#allocation2 + $0x778] sm:$0xff]
    %v3647 = vld [vmem:[#allocation2 + $0x780] sm:$0xff]
    %v3648 = vld [vmem:[#allocation2 + $0x788] sm:$0xff]
    %v3649 = vld [vmem:[#allocation2 + $0x790] sm:$0xff]
    %v3650 = vld [vmem:[#allocation2 + $0x798] sm:$0xff]
    %v3651 = vld [vmem:[#allocation2 + $0x7a0] sm:$0xff]
    %v3652 = vld [vmem:[#allocation2 + $0x7a8] sm:$0xff]
    %v3653 = vld [vmem:[#allocation2 + $0x7b0] sm:$0xff]
    %v3654 = vld [vmem:[#allocation2 + $0x7b8] sm:$0xff]
    %v3655 = vld [vmem:[#allocation2 + $0x7c0] sm:$0xff]
    %v3656 = vld [vmem:[#allocation2 + $0x7c8] sm:$0xff]
    %v3657 = vld [vmem:[#allocation2 + $0x7d0] sm:$0xff]
    %v3658 = vld [vmem:[#allocation2 + $0x7d8] sm:$0xff]
    %v3659 = vld [vmem:[#allocation2 + $0x7e0] sm:$0xff]
    %v3660 = vld [vmem:[#allocation2 + $0x7e8] sm:$0xff]
    %v3661 = vld [vmem:[#allocation2 + $0x7f0] sm:$0xff]
    %v3662 = vld [vmem:[#allocation2 + $0x7f8] sm:$0xff]
    %v3663 = vld [vmem:[#allocation2 + $0x800] sm:$0xff]
    %v3664 = vld [vmem:[#allocation2 + $0x808] sm:$0xff]
    %v3665 = vld [vmem:[#allocation2 + $0x810] sm:$0xff]
    %v3666 = vld [vmem:[#allocation2 + $0x818] sm:$0xff]
    %v3667 = vld [vmem:[#allocation2 + $0x820] sm:$0xff]
    %v3668 = vld [vmem:[#allocation2 + $0x828] sm:$0xff]
    %v3669 = vld [vmem:[#allocation2 + $0x830] sm:$0xff]
    %v3670 = vld [vmem:[#allocation2 + $0x838] sm:$0xff]
    %v3671 = vld [vmem:[#allocation2 + $0x840] sm:$0xff]
    %v3672 = vld [vmem:[#allocation2 + $0x848] sm:$0xff]
    %v3673 = vld [vmem:[#allocation2 + $0x850] sm:$0xff]
    %v3674 = vld [vmem:[#allocation2 + $0x858] sm:$0xff]
    %v3675 = vld [vmem:[#allocation2 + $0x860] sm:$0xff]
    %v3676 = vld [vmem:[#allocation2 + $0x868] sm:$0xff]
    %v3677 = vld [vmem:[#allocation2 + $0x870] sm:$0xff]
    %v3678 = vld [vmem:[#allocation2 + $0x878] sm:$0xff]
    %v3679 = vld [vmem:[#allocation2 + $0x880] sm:$0xff]
    %v3680 = vld [vmem:[#allocation2 + $0x888] sm:$0xff]
    %v3681 = vld [vmem:[#allocation2 + $0x890] sm:$0xff]
    %v3682 = vld [vmem:[#allocation2 + $0x898] sm:$0xff]
    %v3683 = vld [vmem:[#allocation2 + $0x8a0] sm:$0xff]
    %v3684 = vld [vmem:[#allocation2 + $0x8a8] sm:$0xff]
    %v3685 = vld [vmem:[#allocation2 + $0x8b0] sm:$0xff]
    %v3686 = vld [vmem:[#allocation2 + $0x8b8] sm:$0xff]
    %v3687 = vld [vmem:[#allocation2 + $0x8c0] sm:$0xff]
    %v3688 = vld [vmem:[#allocation2 + $0x8c8] sm:$0xff]
    %v3689 = vld [vmem:[#allocation2 + $0x8d0] sm:$0xff]
    %v3690 = vld [vmem:[#allocation2 + $0x8d8] sm:$0xff]
    %v3691 = vld [vmem:[#allocation2 + $0x8e0] sm:$0xff]
    %v3692 = vld [vmem:[#allocation2 + $0x8e8] sm:$0xff]
    %v3693 = vld [vmem:[#allocation2 + $0x8f0] sm:$0xff]
    %v3694 = vld [vmem:[#allocation2 + $0x8f8] sm:$0xff]
    %v3695 = vld [vmem:[#allocation2 + $0x900] sm:$0xff]
    %v3696 = vld [vmem:[#allocation2 + $0x908] sm:$0xff]
    %v3697 = vld [vmem:[#allocation2 + $0x910] sm:$0xff]
    %v3698 = vld [vmem:[#allocation2 + $0x918] sm:$0xff]
    %v3699 = vld [vmem:[#allocation2 + $0x920] sm:$0xff]
    %v3700 = vld [vmem:[#allocation2 + $0x928] sm:$0xff]
    %v3701 = vld [vmem:[#allocation2 + $0x930] sm:$0xff]
    %v3702 = vld [vmem:[#allocation2 + $0x938] sm:$0xff]
    %v3703 = vld [vmem:[#allocation2 + $0x940] sm:$0xff]
    %v3704 = vld [vmem:[#allocation2 + $0x948] sm:$0xff]
    %v3705 = vld [vmem:[#allocation2 + $0x950] sm:$0xff]
    %v3706 = vld [vmem:[#allocation2 + $0x958] sm:$0xff]
    %v3707 = vld [vmem:[#allocation2 + $0x960] sm:$0xff]
    %v3708 = vld [vmem:[#allocation2 + $0x968] sm:$0xff]
    %v3709 = vld [vmem:[#allocation2 + $0x970] sm:$0xff]
    %v3710 = vld [vmem:[#allocation2 + $0x978] sm:$0xff]
    %v3711 = vld [vmem:[#allocation2 + $0x980] sm:$0xff]
    %v3712 = vld [vmem:[#allocation2 + $0x988] sm:$0xff]
    %v3713 = vld [vmem:[#allocation2 + $0x990] sm:$0xff]
    %v3714 = vld [vmem:[#allocation2 + $0x998] sm:$0xff]
    %v3715 = vld [vmem:[#allocation2 + $0x9a0] sm:$0xff]
    %v3716 = vld [vmem:[#allocation2 + $0x9a8] sm:$0xff]
    %v3717 = vld [vmem:[#allocation2 + $0x9b0] sm:$0xff]
    %v3718 = vld [vmem:[#allocation2 + $0x9b8] sm:$0xff]
    %v3719 = vld [vmem:[#allocation2 + $0x9c0] sm:$0xff]
    %v3720 = vld [vmem:[#allocation2 + $0x9c8] sm:$0xff]
    %v3721 = vld [vmem:[#allocation2 + $0x9d0] sm:$0xff]
    %v3722 = vld [vmem:[#allocation2 + $0x9d8] sm:$0xff]
    %v3723 = vld [vmem:[#allocation2 + $0x9e0] sm:$0xff]
    %v3724 = vld [vmem:[#allocation2 + $0x9e8] sm:$0xff]
    %v3725 = vld [vmem:[#allocation2 + $0x9f0] sm:$0xff]
    %v3726 = vld [vmem:[#allocation2 + $0x9f8] sm:$0xff]
    %v3727 = vld [vmem:[#allocation2 + $0xa00] sm:$0xff]
    %v3728 = vld [vmem:[#allocation2 + $0xa08] sm:$0xff]
    %v3729 = vld [vmem:[#allocation2 + $0xa10] sm:$0xff]
    %v3730 = vld [vmem:[#allocation2 + $0xa18] sm:$0xff]
    %v3731 = vld [vmem:[#allocation2 + $0xa20] sm:$0xff]
    %v3732 = vld [vmem:[#allocation2 + $0xa28] sm:$0xff]
    %v3733 = vld [vmem:[#allocation2 + $0xa30] sm:$0xff]
    %v3734 = vld [vmem:[#allocation2 + $0xa38] sm:$0xff]
    %v3735 = vld [vmem:[#allocation2 + $0xa40] sm:$0xff]
    %v3736 = vld [vmem:[#allocation2 + $0xa48] sm:$0xff]
    %v3737 = vld [vmem:[#allocation2 + $0xa50] sm:$0xff]
    %v3738 = vld [vmem:[#allocation2 + $0xa58] sm:$0xff]
    %v3739 = vld [vmem:[#allocation2 + $0xa60] sm:$0xff]
    %v3740 = vld [vmem:[#allocation2 + $0xa68] sm:$0xff]
    %v3741 = vld [vmem:[#allocation2 + $0xa70] sm:$0xff]
    %v3742 = vld [vmem:[#allocation2 + $0xa78] sm:$0xff]
    %v3743 = vld [vmem:[#allocation2 + $0xa80] sm:$0xff]
    %v3744 = vld [vmem:[#allocation2 + $0xa88] sm:$0xff]
    %v3745 = vld [vmem:[#allocation2 + $0xa90] sm:$0xff]
    %v3746 = vld [vmem:[#allocation2 + $0xa98] sm:$0xff]
    %v3747 = vld [vmem:[#allocation2 + $0xaa0] sm:$0xff]
    %v3748 = vld [vmem:[#allocation2 + $0xaa8] sm:$0xff]
    %v3749 = vld [vmem:[#allocation2 + $0xab0] sm:$0xff]
    %v3750 = vld [vmem:[#allocation2 + $0xab8] sm:$0xff]
    %v3751 = vld [vmem:[#allocation2 + $0xac0] sm:$0xff]
    %v3752 = vld [vmem:[#allocation2 + $0xac8] sm:$0xff]
    %v3753 = vld [vmem:[#allocation2 + $0xad0] sm:$0xff]
    %v3754 = vld [vmem:[#allocation2 + $0xad8] sm:$0xff]
    %v3755 = vld [vmem:[#allocation2 + $0xae0] sm:$0xff]
    %v3756 = vld [vmem:[#allocation2 + $0xae8] sm:$0xff]
    %v3757 = vld [vmem:[#allocation2 + $0xaf0] sm:$0xff]
    %v3758 = vld [vmem:[#allocation2 + $0xaf8] sm:$0xff]
    %v3759 = vld [vmem:[#allocation2 + $0xb00] sm:$0xff]
    %v3760 = vld [vmem:[#allocation2 + $0xb08] sm:$0xff]
    %v3761 = vld [vmem:[#allocation2 + $0xb10] sm:$0xff]
    %v3762 = vld [vmem:[#allocation2 + $0xb18] sm:$0xff]
    %v3763 = vld [vmem:[#allocation2 + $0xb20] sm:$0xff]
    %v3764 = vld [vmem:[#allocation2 + $0xb28] sm:$0xff]
    %v3765 = vld [vmem:[#allocation2 + $0xb30] sm:$0xff]
    %v3766 = vld [vmem:[#allocation2 + $0xb38] sm:$0xff]
    %v3767 = vld [vmem:[#allocation2 + $0xb40] sm:$0xff]
    %v3768 = vld [vmem:[#allocation2 + $0xb48] sm:$0xff]
    %v3769 = vld [vmem:[#allocation2 + $0xb50] sm:$0xff]
    %v3770 = vld [vmem:[#allocation2 + $0xb58] sm:$0xff]
    %v3771 = vld [vmem:[#allocation2 + $0xb60] sm:$0xff]
    %v3772 = vld [vmem:[#allocation2 + $0xb68] sm:$0xff]
    %v3773 = vld [vmem:[#allocation2 + $0xb70] sm:$0xff]
    %v3774 = vld [vmem:[#allocation2 + $0xb78] sm:$0xff]
    %v3775 = vld [vmem:[#allocation2 + $0xb80] sm:$0xff]
    %v3776 = vld [vmem:[#allocation2 + $0xb88] sm:$0xff]
    %v3777 = vld [vmem:[#allocation2 + $0xb90] sm:$0xff]
    %v3778 = vld [vmem:[#allocation2 + $0xb98] sm:$0xff]
    %v3779 = vld [vmem:[#allocation2 + $0xba0] sm:$0xff]
    %v3780 = vld [vmem:[#allocation2 + $0xba8] sm:$0xff]
    %v3781 = vld [vmem:[#allocation2 + $0xbb0] sm:$0xff]
    %v3782 = vld [vmem:[#allocation2 + $0xbb8] sm:$0xff]
    %v3783 = vld [vmem:[#allocation2 + $0xbc0] sm:$0xff]
    %v3784 = vld [vmem:[#allocation2 + $0xbc8] sm:$0xff]
    %v3785 = vld [vmem:[#allocation2 + $0xbd0] sm:$0xff]
    %v3786 = vld [vmem:[#allocation2 + $0xbd8] sm:$0xff]
    %v3787 = vld [vmem:[#allocation2 + $0xbe0] sm:$0xff]
    %v3788 = vld [vmem:[#allocation2 + $0xbe8] sm:$0xff]
    %v3789 = vld [vmem:[#allocation2 + $0xbf0] sm:$0xff]
    %v3790 = vld [vmem:[#allocation2 + $0xbf8] sm:$0xff]
    %s3791 = scalar_lea.vmem [#allocation8], 4
    %v3792 = vld [vmem:[%s3791] ss:$8 sm:$0xf]
    %v3793 = vld [vmem:[%s3791] ss:$8 sm:$0xf0]
    %v3794 = vor.u32 %v3792, %v3793
    %v3796 = vlaneseq
    %v3797 = vshrl.u32 %v3796, 7
    %v3798 = vsub.s32 0, %v3797
    %v3799 = vrot.slane %v3794, %v3798
    %v3800 = vlaneseq
    %v3801 = vshrl.u32 %v3800, 7
    %v3802 = vsub.s32 1, %v3801
    %v3803 = vrot.slane %v3794, %v3802
    %v3804 = vlaneseq
    %v3805 = vshrl.u32 %v3804, 7
    %v3806 = vsub.s32 2, %v3805
    %v3807 = vrot.slane %v3794, %v3806
    %v3808 = vlaneseq
    %v3809 = vshrl.u32 %v3808, 7
    %v3810 = vsub.s32 3, %v3809
    %v3811 = vrot.slane %v3794, %v3810
    %v3812 = vlaneseq
    %v3813 = vshrl.u32 %v3812, 7
    %v3814 = vsub.s32 4, %v3813
    %v3815 = vrot.slane %v3794, %v3814
    %v3816 = vlaneseq
    %v3817 = vshrl.u32 %v3816, 7
    %v3818 = vsub.s32 5, %v3817
    %v3819 = vrot.slane %v3794, %v3818
    %v3820 = vlaneseq
    %v3821 = vshrl.u32 %v3820, 7
    %v3822 = vsub.s32 6, %v3821
    %v3823 = vrot.slane %v3794, %v3822
    %v3824 = vlaneseq
    %v3825 = vshrl.u32 %v3824, 7
    %v3826 = vsub.s32 7, %v3825
    %v3827 = vrot.slane %v3794, %v3826
    %v4092 = vunpack.c.l.b16 %v3535
    %v4093 = vunpack.c.h.b16 %v3535
    %v4094 = vunpack.c.l.b16 %v3536
    %v4095 = vunpack.c.h.b16 %v3536
    %v4096 = vunpack.c.l.b16 %v3537
    %v4097 = vunpack.c.h.b16 %v3537
    %v4098 = vunpack.c.l.b16 %v3538
    %v4099 = vunpack.c.h.b16 %v3538
    %v4100 = vunpack.c.l.b16 %v3539
    %v4101 = vunpack.c.h.b16 %v3539
    %v4102 = vunpack.c.l.b16 %v3540
    %v4103 = vunpack.c.h.b16 %v3540
    %v4104 = vunpack.c.l.b16 %v3541
    %v4105 = vunpack.c.h.b16 %v3541
    %v4106 = vunpack.c.l.b16 %v3542
    %v4107 = vunpack.c.h.b16 %v3542
    %v4108 = vunpack.c.l.b16 %v3543
    %v4109 = vunpack.c.h.b16 %v3543
    %v4110 = vunpack.c.l.b16 %v3544
    %v4111 = vunpack.c.h.b16 %v3544
    %v4112 = vunpack.c.l.b16 %v3545
    %v4113 = vunpack.c.h.b16 %v3545
    %v4114 = vunpack.c.l.b16 %v3546
    %v4115 = vunpack.c.h.b16 %v3546
    %v4116 = vunpack.c.l.b16 %v3547
    %v4117 = vunpack.c.h.b16 %v3547
    %v4118 = vunpack.c.l.b16 %v3548
    %v4119 = vunpack.c.h.b16 %v3548
    %v4120 = vunpack.c.l.b16 %v3549
    %v4121 = vunpack.c.h.b16 %v3549
    %v4122 = vunpack.c.l.b16 %v3550
    %v4123 = vunpack.c.h.b16 %v3550
    %v4124 = vunpack.c.l.b16 %v3551
    %v4125 = vunpack.c.h.b16 %v3551
    %v4126 = vunpack.c.l.b16 %v3552
    %v4127 = vunpack.c.h.b16 %v3552
    %v4128 = vunpack.c.l.b16 %v3553
    %v4129 = vunpack.c.h.b16 %v3553
    %v4130 = vunpack.c.l.b16 %v3554
    %v4131 = vunpack.c.h.b16 %v3554
    %v4132 = vunpack.c.l.b16 %v3555
    %v4133 = vunpack.c.h.b16 %v3555
    %v4134 = vunpack.c.l.b16 %v3556
    %v4135 = vunpack.c.h.b16 %v3556
    %v4136 = vunpack.c.l.b16 %v3557
    %v4137 = vunpack.c.h.b16 %v3557
    %v4138 = vunpack.c.l.b16 %v3558
    %v4139 = vunpack.c.h.b16 %v3558
    %v4140 = vunpack.c.l.b16 %v3559
    %v4141 = vunpack.c.h.b16 %v3559
    %v4142 = vunpack.c.l.b16 %v3560
    %v4143 = vunpack.c.h.b16 %v3560
    %v4144 = vunpack.c.l.b16 %v3561
    %v4145 = vunpack.c.h.b16 %v3561
    %v4146 = vunpack.c.l.b16 %v3562
    %v4147 = vunpack.c.h.b16 %v3562
    %v4148 = vunpack.c.l.b16 %v3563
    %v4149 = vunpack.c.h.b16 %v3563
    %v4150 = vunpack.c.l.b16 %v3564
    %v4151 = vunpack.c.h.b16 %v3564
    %v4152 = vunpack.c.l.b16 %v3565
    %v4153 = vunpack.c.h.b16 %v3565
    %v4154 = vunpack.c.l.b16 %v3566
    %v4155 = vunpack.c.h.b16 %v3566
    %v4156 = vunpack.c.l.b16 %v3567
    %v4157 = vunpack.c.h.b16 %v3567
    %v4158 = vunpack.c.l.b16 %v3568
    %v4159 = vunpack.c.h.b16 %v3568
    %v4160 = vunpack.c.l.b16 %v3569
    %v4161 = vunpack.c.h.b16 %v3569
    %v4162 = vunpack.c.l.b16 %v3570
    %v4163 = vunpack.c.h.b16 %v3570
    %v4164 = vunpack.c.l.b16 %v3571
    %v4165 = vunpack.c.h.b16 %v3571
    %v4166 = vunpack.c.l.b16 %v3572
    %v4167 = vunpack.c.h.b16 %v3572
    %v4168 = vunpack.c.l.b16 %v3573
    %v4169 = vunpack.c.h.b16 %v3573
    %v4170 = vunpack.c.l.b16 %v3574
    %v4171 = vunpack.c.h.b16 %v3574
    %v4172 = vunpack.c.l.b16 %v3575
    %v4173 = vunpack.c.h.b16 %v3575
    %v4174 = vunpack.c.l.b16 %v3576
    %v4175 = vunpack.c.h.b16 %v3576
    %v4176 = vunpack.c.l.b16 %v3577
    %v4177 = vunpack.c.h.b16 %v3577
    %v4178 = vunpack.c.l.b16 %v3578
    %v4179 = vunpack.c.h.b16 %v3578
    %v4180 = vunpack.c.l.b16 %v3579
    %v4181 = vunpack.c.h.b16 %v3579
    %v4182 = vunpack.c.l.b16 %v3580
    %v4183 = vunpack.c.h.b16 %v3580
    %v4184 = vunpack.c.l.b16 %v3581
    %v4185 = vunpack.c.h.b16 %v3581
    %v4186 = vunpack.c.l.b16 %v3582
    %v4187 = vunpack.c.h.b16 %v3582
    %v4188 = vunpack.c.l.b16 %v3583
    %v4189 = vunpack.c.h.b16 %v3583
    %v4190 = vunpack.c.l.b16 %v3584
    %v4191 = vunpack.c.h.b16 %v3584
    %v4192 = vunpack.c.l.b16 %v3585
    %v4193 = vunpack.c.h.b16 %v3585
    %v4194 = vunpack.c.l.b16 %v3586
    %v4195 = vunpack.c.h.b16 %v3586
    %v4196 = vunpack.c.l.b16 %v3587
    %v4197 = vunpack.c.h.b16 %v3587
    %v4198 = vunpack.c.l.b16 %v3588
    %v4199 = vunpack.c.h.b16 %v3588
    %v4200 = vunpack.c.l.b16 %v3589
    %v4201 = vunpack.c.h.b16 %v3589
    %v4202 = vunpack.c.l.b16 %v3590
    %v4203 = vunpack.c.h.b16 %v3590
    %v4204 = vunpack.c.l.b16 %v3591
    %v4205 = vunpack.c.h.b16 %v3591
    %v4206 = vunpack.c.l.b16 %v3592
    %v4207 = vunpack.c.h.b16 %v3592
    %v4208 = vunpack.c.l.b16 %v3593
    %v4209 = vunpack.c.h.b16 %v3593
    %v4210 = vunpack.c.l.b16 %v3594
    %v4211 = vunpack.c.h.b16 %v3594
    %v4212 = vunpack.c.l.b16 %v3595
    %v4213 = vunpack.c.h.b16 %v3595
    %v4214 = vunpack.c.l.b16 %v3596
    %v4215 = vunpack.c.h.b16 %v3596
    %v4216 = vunpack.c.l.b16 %v3597
    %v4217 = vunpack.c.h.b16 %v3597
    %v4218 = vunpack.c.l.b16 %v3598
    %v4219 = vunpack.c.h.b16 %v3598
    %v4220 = vunpack.c.l.b16 %v3599
    %v4221 = vunpack.c.h.b16 %v3599
    %v4222 = vunpack.c.l.b16 %v3600
    %v4223 = vunpack.c.h.b16 %v3600
    %v4224 = vunpack.c.l.b16 %v3601
    %v4225 = vunpack.c.h.b16 %v3601
    %v4226 = vunpack.c.l.b16 %v3602
    %v4227 = vunpack.c.h.b16 %v3602
    %v4228 = vunpack.c.l.b16 %v3603
    %v4229 = vunpack.c.h.b16 %v3603
    %v4230 = vunpack.c.l.b16 %v3604
    %v4231 = vunpack.c.h.b16 %v3604
    %v4232 = vunpack.c.l.b16 %v3605
    %v4233 = vunpack.c.h.b16 %v3605
    %v4234 = vunpack.c.l.b16 %v3606
    %v4235 = vunpack.c.h.b16 %v3606
    %v4236 = vunpack.c.l.b16 %v3607
    %v4237 = vunpack.c.h.b16 %v3607
    %v4238 = vunpack.c.l.b16 %v3608
    %v4239 = vunpack.c.h.b16 %v3608
    %v4240 = vunpack.c.l.b16 %v3609
    %v4241 = vunpack.c.h.b16 %v3609
    %v4242 = vunpack.c.l.b16 %v3610
    %v4243 = vunpack.c.h.b16 %v3610
    %v4244 = vunpack.c.l.b16 %v3611
    %v4245 = vunpack.c.h.b16 %v3611
    %v4246 = vunpack.c.l.b16 %v3612
    %v4247 = vunpack.c.h.b16 %v3612
    %v4248 = vunpack.c.l.b16 %v3613
    %v4249 = vunpack.c.h.b16 %v3613
    %v4250 = vunpack.c.l.b16 %v3614
    %v4251 = vunpack.c.h.b16 %v3614
    %v4252 = vunpack.c.l.b16 %v3615
    %v4253 = vunpack.c.h.b16 %v3615
    %v4254 = vunpack.c.l.b16 %v3616
    %v4255 = vunpack.c.h.b16 %v3616
    %v4256 = vunpack.c.l.b16 %v3617
    %v4257 = vunpack.c.h.b16 %v3617
    %v4258 = vunpack.c.l.b16 %v3618
    %v4259 = vunpack.c.h.b16 %v3618
    %v4260 = vunpack.c.l.b16 %v3619
    %v4261 = vunpack.c.h.b16 %v3619
    %v4262 = vunpack.c.l.b16 %v3620
    %v4263 = vunpack.c.h.b16 %v3620
    %v4264 = vunpack.c.l.b16 %v3621
    %v4265 = vunpack.c.h.b16 %v3621
    %v4266 = vunpack.c.l.b16 %v3622
    %v4267 = vunpack.c.h.b16 %v3622
    %v4268 = vunpack.c.l.b16 %v3623
    %v4269 = vunpack.c.h.b16 %v3623
    %v4270 = vunpack.c.l.b16 %v3624
    %v4271 = vunpack.c.h.b16 %v3624
    %v4272 = vunpack.c.l.b16 %v3625
    %v4273 = vunpack.c.h.b16 %v3625
    %v4274 = vunpack.c.l.b16 %v3626
    %v4275 = vunpack.c.h.b16 %v3626
    %v4276 = vunpack.c.l.b16 %v3627
    %v4277 = vunpack.c.h.b16 %v3627
    %v4278 = vunpack.c.l.b16 %v3628
    %v4279 = vunpack.c.h.b16 %v3628
    %v4280 = vunpack.c.l.b16 %v3629
    %v4281 = vunpack.c.h.b16 %v3629
    %v4282 = vunpack.c.l.b16 %v3630
    %v4283 = vunpack.c.h.b16 %v3630
    %v4284 = vunpack.c.l.b16 %v3631
    %v4285 = vunpack.c.h.b16 %v3631
    %v4286 = vunpack.c.l.b16 %v3632
    %v4287 = vunpack.c.h.b16 %v3632
    %v4288 = vunpack.c.l.b16 %v3633
    %v4289 = vunpack.c.h.b16 %v3633
    %v4290 = vunpack.c.l.b16 %v3634
    %v4291 = vunpack.c.h.b16 %v3634
    %v4292 = vunpack.c.l.b16 %v3635
    %v4293 = vunpack.c.h.b16 %v3635
    %v4294 = vunpack.c.l.b16 %v3636
    %v4295 = vunpack.c.h.b16 %v3636
    %v4296 = vunpack.c.l.b16 %v3637
    %v4297 = vunpack.c.h.b16 %v3637
    %v4298 = vunpack.c.l.b16 %v3638
    %v4299 = vunpack.c.h.b16 %v3638
    %v4300 = vunpack.c.l.b16 %v3639
    %v4301 = vunpack.c.h.b16 %v3639
    %v4302 = vunpack.c.l.b16 %v3640
    %v4303 = vunpack.c.h.b16 %v3640
    %v4304 = vunpack.c.l.b16 %v3641
    %v4305 = vunpack.c.h.b16 %v3641
    %v4306 = vunpack.c.l.b16 %v3642
    %v4307 = vunpack.c.h.b16 %v3642
    %v4308 = vunpack.c.l.b16 %v3643
    %v4309 = vunpack.c.h.b16 %v3643
    %v4310 = vunpack.c.l.b16 %v3644
    %v4311 = vunpack.c.h.b16 %v3644
    %v4312 = vunpack.c.l.b16 %v3645
    %v4313 = vunpack.c.h.b16 %v3645
    %v4314 = vunpack.c.l.b16 %v3646
    %v4315 = vunpack.c.h.b16 %v3646
    %v4316 = vunpack.c.l.b16 %v3647
    %v4317 = vunpack.c.h.b16 %v3647
    %v4318 = vunpack.c.l.b16 %v3648
    %v4319 = vunpack.c.h.b16 %v3648
    %v4320 = vunpack.c.l.b16 %v3649
    %v4321 = vunpack.c.h.b16 %v3649
    %v4322 = vunpack.c.l.b16 %v3650
    %v4323 = vunpack.c.h.b16 %v3650
    %v4324 = vunpack.c.l.b16 %v3651
    %v4325 = vunpack.c.h.b16 %v3651
    %v4326 = vunpack.c.l.b16 %v3652
    %v4327 = vunpack.c.h.b16 %v3652
    %v4328 = vunpack.c.l.b16 %v3653
    %v4329 = vunpack.c.h.b16 %v3653
    %v4330 = vunpack.c.l.b16 %v3654
    %v4331 = vunpack.c.h.b16 %v3654
    %v4332 = vunpack.c.l.b16 %v3655
    %v4333 = vunpack.c.h.b16 %v3655
    %v4334 = vunpack.c.l.b16 %v3656
    %v4335 = vunpack.c.h.b16 %v3656
    %v4336 = vunpack.c.l.b16 %v3657
    %v4337 = vunpack.c.h.b16 %v3657
    %v4338 = vunpack.c.l.b16 %v3658
    %v4339 = vunpack.c.h.b16 %v3658
    %v4340 = vunpack.c.l.b16 %v3659
    %v4341 = vunpack.c.h.b16 %v3659
    %v4342 = vunpack.c.l.b16 %v3660
    %v4343 = vunpack.c.h.b16 %v3660
    %v4344 = vunpack.c.l.b16 %v3661
    %v4345 = vunpack.c.h.b16 %v3661
    %v4346 = vunpack.c.l.b16 %v3662
    %v4347 = vunpack.c.h.b16 %v3662
    %v4348 = vunpack.c.l.b16 %v3663
    %v4349 = vunpack.c.h.b16 %v3663
    %v4350 = vunpack.c.l.b16 %v3664
    %v4351 = vunpack.c.h.b16 %v3664
    %v4352 = vunpack.c.l.b16 %v3665
    %v4353 = vunpack.c.h.b16 %v3665
    %v4354 = vunpack.c.l.b16 %v3666
    %v4355 = vunpack.c.h.b16 %v3666
    %v4356 = vunpack.c.l.b16 %v3667
    %v4357 = vunpack.c.h.b16 %v3667
    %v4358 = vunpack.c.l.b16 %v3668
    %v4359 = vunpack.c.h.b16 %v3668
    %v4360 = vunpack.c.l.b16 %v3669
    %v4361 = vunpack.c.h.b16 %v3669
    %v4362 = vunpack.c.l.b16 %v3670
    %v4363 = vunpack.c.h.b16 %v3670
    %v4364 = vunpack.c.l.b16 %v3671
    %v4365 = vunpack.c.h.b16 %v3671
    %v4366 = vunpack.c.l.b16 %v3672
    %v4367 = vunpack.c.h.b16 %v3672
    %v4368 = vunpack.c.l.b16 %v3673
    %v4369 = vunpack.c.h.b16 %v3673
    %v4370 = vunpack.c.l.b16 %v3674
    %v4371 = vunpack.c.h.b16 %v3674
    %v4372 = vunpack.c.l.b16 %v3675
    %v4373 = vunpack.c.h.b16 %v3675
    %v4374 = vunpack.c.l.b16 %v3676
    %v4375 = vunpack.c.h.b16 %v3676
    %v4376 = vunpack.c.l.b16 %v3677
    %v4377 = vunpack.c.h.b16 %v3677
    %v4378 = vunpack.c.l.b16 %v3678
    %v4379 = vunpack.c.h.b16 %v3678
    %v4380 = vunpack.c.l.b16 %v3679
    %v4381 = vunpack.c.h.b16 %v3679
    %v4382 = vunpack.c.l.b16 %v3680
    %v4383 = vunpack.c.h.b16 %v3680
    %v4384 = vunpack.c.l.b16 %v3681
    %v4385 = vunpack.c.h.b16 %v3681
    %v4386 = vunpack.c.l.b16 %v3682
    %v4387 = vunpack.c.h.b16 %v3682
    %v4388 = vunpack.c.l.b16 %v3683
    %v4389 = vunpack.c.h.b16 %v3683
    %v4390 = vunpack.c.l.b16 %v3684
    %v4391 = vunpack.c.h.b16 %v3684
    %v4392 = vunpack.c.l.b16 %v3685
    %v4393 = vunpack.c.h.b16 %v3685
    %v4394 = vunpack.c.l.b16 %v3686
    %v4395 = vunpack.c.h.b16 %v3686
    %v4396 = vunpack.c.l.b16 %v3687
    %v4397 = vunpack.c.h.b16 %v3687
    %v4398 = vunpack.c.l.b16 %v3688
    %v4399 = vunpack.c.h.b16 %v3688
    %v4400 = vunpack.c.l.b16 %v3689
    %v4401 = vunpack.c.h.b16 %v3689
    %v4402 = vunpack.c.l.b16 %v3690
    %v4403 = vunpack.c.h.b16 %v3690
    %v4404 = vunpack.c.l.b16 %v3691
    %v4405 = vunpack.c.h.b16 %v3691
    %v4406 = vunpack.c.l.b16 %v3692
    %v4407 = vunpack.c.h.b16 %v3692
    %v4408 = vunpack.c.l.b16 %v3693
    %v4409 = vunpack.c.h.b16 %v3693
    %v4410 = vunpack.c.l.b16 %v3694
    %v4411 = vunpack.c.h.b16 %v3694
    %v4412 = vunpack.c.l.b16 %v3695
    %v4413 = vunpack.c.h.b16 %v3695
    %v4414 = vunpack.c.l.b16 %v3696
    %v4415 = vunpack.c.h.b16 %v3696
    %v4416 = vunpack.c.l.b16 %v3697
    %v4417 = vunpack.c.h.b16 %v3697
    %v4418 = vunpack.c.l.b16 %v3698
    %v4419 = vunpack.c.h.b16 %v3698
    %v4420 = vunpack.c.l.b16 %v3699
    %v4421 = vunpack.c.h.b16 %v3699
    %v4422 = vunpack.c.l.b16 %v3700
    %v4423 = vunpack.c.h.b16 %v3700
    %v4424 = vunpack.c.l.b16 %v3701
    %v4425 = vunpack.c.h.b16 %v3701
    %v4426 = vunpack.c.l.b16 %v3702
    %v4427 = vunpack.c.h.b16 %v3702
    %v4428 = vunpack.c.l.b16 %v3703
    %v4429 = vunpack.c.h.b16 %v3703
    %v4430 = vunpack.c.l.b16 %v3704
    %v4431 = vunpack.c.h.b16 %v3704
    %v4432 = vunpack.c.l.b16 %v3705
    %v4433 = vunpack.c.h.b16 %v3705
    %v4434 = vunpack.c.l.b16 %v3706
    %v4435 = vunpack.c.h.b16 %v3706
    %v4436 = vunpack.c.l.b16 %v3707
    %v4437 = vunpack.c.h.b16 %v3707
    %v4438 = vunpack.c.l.b16 %v3708
    %v4439 = vunpack.c.h.b16 %v3708
    %v4440 = vunpack.c.l.b16 %v3709
    %v4441 = vunpack.c.h.b16 %v3709
    %v4442 = vunpack.c.l.b16 %v3710
    %v4443 = vunpack.c.h.b16 %v3710
    %v4444 = vunpack.c.l.b16 %v3711
    %v4445 = vunpack.c.h.b16 %v3711
    %v4446 = vunpack.c.l.b16 %v3712
    %v4447 = vunpack.c.h.b16 %v3712
    %v4448 = vunpack.c.l.b16 %v3713
    %v4449 = vunpack.c.h.b16 %v3713
    %v4450 = vunpack.c.l.b16 %v3714
    %v4451 = vunpack.c.h.b16 %v3714
    %v4452 = vunpack.c.l.b16 %v3715
    %v4453 = vunpack.c.h.b16 %v3715
    %v4454 = vunpack.c.l.b16 %v3716
    %v4455 = vunpack.c.h.b16 %v3716
    %v4456 = vunpack.c.l.b16 %v3717
    %v4457 = vunpack.c.h.b16 %v3717
    %v4458 = vunpack.c.l.b16 %v3718
    %v4459 = vunpack.c.h.b16 %v3718
    %v4460 = vunpack.c.l.b16 %v3719
    %v4461 = vunpack.c.h.b16 %v3719
    %v4462 = vunpack.c.l.b16 %v3720
    %v4463 = vunpack.c.h.b16 %v3720
    %v4464 = vunpack.c.l.b16 %v3721
    %v4465 = vunpack.c.h.b16 %v3721
    %v4466 = vunpack.c.l.b16 %v3722
    %v4467 = vunpack.c.h.b16 %v3722
    %v4468 = vunpack.c.l.b16 %v3723
    %v4469 = vunpack.c.h.b16 %v3723
    %v4470 = vunpack.c.l.b16 %v3724
    %v4471 = vunpack.c.h.b16 %v3724
    %v4472 = vunpack.c.l.b16 %v3725
    %v4473 = vunpack.c.h.b16 %v3725
    %v4474 = vunpack.c.l.b16 %v3726
    %v4475 = vunpack.c.h.b16 %v3726
    %v4476 = vunpack.c.l.b16 %v3727
    %v4477 = vunpack.c.h.b16 %v3727
    %v4478 = vunpack.c.l.b16 %v3728
    %v4479 = vunpack.c.h.b16 %v3728
    %v4480 = vunpack.c.l.b16 %v3729
    %v4481 = vunpack.c.h.b16 %v3729
    %v4482 = vunpack.c.l.b16 %v3730
    %v4483 = vunpack.c.h.b16 %v3730
    %v4484 = vunpack.c.l.b16 %v3731
    %v4485 = vunpack.c.h.b16 %v3731
    %v4486 = vunpack.c.l.b16 %v3732
    %v4487 = vunpack.c.h.b16 %v3732
    %v4488 = vunpack.c.l.b16 %v3733
    %v4489 = vunpack.c.h.b16 %v3733
    %v4490 = vunpack.c.l.b16 %v3734
    %v4491 = vunpack.c.h.b16 %v3734
    %v4492 = vunpack.c.l.b16 %v3735
    %v4493 = vunpack.c.h.b16 %v3735
    %v4494 = vunpack.c.l.b16 %v3736
    %v4495 = vunpack.c.h.b16 %v3736
    %v4496 = vunpack.c.l.b16 %v3737
    %v4497 = vunpack.c.h.b16 %v3737
    %v4498 = vunpack.c.l.b16 %v3738
    %v4499 = vunpack.c.h.b16 %v3738
    %v4500 = vunpack.c.l.b16 %v3739
    %v4501 = vunpack.c.h.b16 %v3739
    %v4502 = vunpack.c.l.b16 %v3740
    %v4503 = vunpack.c.h.b16 %v3740
    %v4504 = vunpack.c.l.b16 %v3741
    %v4505 = vunpack.c.h.b16 %v3741
    %v4506 = vunpack.c.l.b16 %v3742
    %v4507 = vunpack.c.h.b16 %v3742
    %v4508 = vunpack.c.l.b16 %v3743
    %v4509 = vunpack.c.h.b16 %v3743
    %v4510 = vunpack.c.l.b16 %v3744
    %v4511 = vunpack.c.h.b16 %v3744
    %v4512 = vunpack.c.l.b16 %v3745
    %v4513 = vunpack.c.h.b16 %v3745
    %v4514 = vunpack.c.l.b16 %v3746
    %v4515 = vunpack.c.h.b16 %v3746
    %v4516 = vunpack.c.l.b16 %v3747
    %v4517 = vunpack.c.h.b16 %v3747
    %v4518 = vunpack.c.l.b16 %v3748
    %v4519 = vunpack.c.h.b16 %v3748
    %v4520 = vunpack.c.l.b16 %v3749
    %v4521 = vunpack.c.h.b16 %v3749
    %v4522 = vunpack.c.l.b16 %v3750
    %v4523 = vunpack.c.h.b16 %v3750
    %v4524 = vunpack.c.l.b16 %v3751
    %v4525 = vunpack.c.h.b16 %v3751
    %v4526 = vunpack.c.l.b16 %v3752
    %v4527 = vunpack.c.h.b16 %v3752
    %v4528 = vunpack.c.l.b16 %v3753
    %v4529 = vunpack.c.h.b16 %v3753
    %v4530 = vunpack.c.l.b16 %v3754
    %v4531 = vunpack.c.h.b16 %v3754
    %v4532 = vunpack.c.l.b16 %v3755
    %v4533 = vunpack.c.h.b16 %v3755
    %v4534 = vunpack.c.l.b16 %v3756
    %v4535 = vunpack.c.h.b16 %v3756
    %v4536 = vunpack.c.l.b16 %v3757
    %v4537 = vunpack.c.h.b16 %v3757
    %v4538 = vunpack.c.l.b16 %v3758
    %v4539 = vunpack.c.h.b16 %v3758
    %v4540 = vunpack.c.l.b16 %v3759
    %v4541 = vunpack.c.h.b16 %v3759
    %v4542 = vunpack.c.l.b16 %v3760
    %v4543 = vunpack.c.h.b16 %v3760
    %v4544 = vunpack.c.l.b16 %v3761
    %v4545 = vunpack.c.h.b16 %v3761
    %v4546 = vunpack.c.l.b16 %v3762
    %v4547 = vunpack.c.h.b16 %v3762
    %v4548 = vunpack.c.l.b16 %v3763
    %v4549 = vunpack.c.h.b16 %v3763
    %v4550 = vunpack.c.l.b16 %v3764
    %v4551 = vunpack.c.h.b16 %v3764
    %v4552 = vunpack.c.l.b16 %v3765
    %v4553 = vunpack.c.h.b16 %v3765
    %v4554 = vunpack.c.l.b16 %v3766
    %v4555 = vunpack.c.h.b16 %v3766
    %v4556 = vunpack.c.l.b16 %v3767
    %v4557 = vunpack.c.h.b16 %v3767
    %v4558 = vunpack.c.l.b16 %v3768
    %v4559 = vunpack.c.h.b16 %v3768
    %v4560 = vunpack.c.l.b16 %v3769
    %v4561 = vunpack.c.h.b16 %v3769
    %v4562 = vunpack.c.l.b16 %v3770
    %v4563 = vunpack.c.h.b16 %v3770
    %v4564 = vunpack.c.l.b16 %v3771
    %v4565 = vunpack.c.h.b16 %v3771
    %v4566 = vunpack.c.l.b16 %v3772
    %v4567 = vunpack.c.h.b16 %v3772
    %v4568 = vunpack.c.l.b16 %v3773
    %v4569 = vunpack.c.h.b16 %v3773
    %v4570 = vunpack.c.l.b16 %v3774
    %v4571 = vunpack.c.h.b16 %v3774
    %v4572 = vunpack.c.l.b16 %v3775
    %v4573 = vunpack.c.h.b16 %v3775
    %v4574 = vunpack.c.l.b16 %v3776
    %v4575 = vunpack.c.h.b16 %v3776
    %v4576 = vunpack.c.l.b16 %v3777
    %v4577 = vunpack.c.h.b16 %v3777
    %v4578 = vunpack.c.l.b16 %v3778
    %v4579 = vunpack.c.h.b16 %v3778
    %v4580 = vunpack.c.l.b16 %v3779
    %v4581 = vunpack.c.h.b16 %v3779
    %v4582 = vunpack.c.l.b16 %v3780
    %v4583 = vunpack.c.h.b16 %v3780
    %v4584 = vunpack.c.l.b16 %v3781
    %v4585 = vunpack.c.h.b16 %v3781
    %v4586 = vunpack.c.l.b16 %v3782
    %v4587 = vunpack.c.h.b16 %v3782
    %v4588 = vunpack.c.l.b16 %v3783
    %v4589 = vunpack.c.h.b16 %v3783
    %v4590 = vunpack.c.l.b16 %v3784
    %v4591 = vunpack.c.h.b16 %v3784
    %v4592 = vunpack.c.l.b16 %v3785
    %v4593 = vunpack.c.h.b16 %v3785
    %v4594 = vunpack.c.l.b16 %v3786
    %v4595 = vunpack.c.h.b16 %v3786
    %v4596 = vunpack.c.l.b16 %v3787
    %v4597 = vunpack.c.h.b16 %v3787
    %v4598 = vunpack.c.l.b16 %v3788
    %v4599 = vunpack.c.h.b16 %v3788
    %v4600 = vunpack.c.l.b16 %v3789
    %v4601 = vunpack.c.h.b16 %v3789
    %v4602 = vunpack.c.l.b16 %v3790
    %v4603 = vunpack.c.h.b16 %v3790
    %v4604 = vpack.c.b16 %v4100, %v4092
    %v4605 = vpack.c.b16 %v4101, %v4093
    %v4606 = vpack.c.b16 %v4102, %v4094
    %v4607 = vpack.c.b16 %v4103, %v4095
    %v4608 = vpack.c.b16 %v4104, %v4096
    %v4609 = vpack.c.b16 %v4105, %v4097
    %v4610 = vpack.c.b16 %v4106, %v4098
    %v4611 = vpack.c.b16 %v4107, %v4099
    %v4612 = vpack.c.b16 %v4116, %v4108
    %v4613 = vpack.c.b16 %v4117, %v4109
    %v4614 = vpack.c.b16 %v4118, %v4110
    %v4615 = vpack.c.b16 %v4119, %v4111
    %v4616 = vpack.c.b16 %v4120, %v4112
    %v4617 = vpack.c.b16 %v4121, %v4113
    %v4618 = vpack.c.b16 %v4122, %v4114
    %v4619 = vpack.c.b16 %v4123, %v4115
    %v4620 = vpack.c.b16 %v4132, %v4124
    %v4621 = vpack.c.b16 %v4133, %v4125
    %v4622 = vpack.c.b16 %v4134, %v4126
    %v4623 = vpack.c.b16 %v4135, %v4127
    %v4624 = vpack.c.b16 %v4136, %v4128
    %v4625 = vpack.c.b16 %v4137, %v4129
    %v4626 = vpack.c.b16 %v4138, %v4130
    %v4627 = vpack.c.b16 %v4139, %v4131
    %v4628 = vpack.c.b16 %v4148, %v4140
    %v4629 = vpack.c.b16 %v4149, %v4141
    %v4630 = vpack.c.b16 %v4150, %v4142
    %v4631 = vpack.c.b16 %v4151, %v4143
    %v4632 = vpack.c.b16 %v4152, %v4144
    %v4633 = vpack.c.b16 %v4153, %v4145
    %v4634 = vpack.c.b16 %v4154, %v4146
    %v4635 = vpack.c.b16 %v4155, %v4147
    %v4636 = vpack.c.b16 %v4164, %v4156
    %v4637 = vpack.c.b16 %v4165, %v4157
    %v4638 = vpack.c.b16 %v4166, %v4158
    %v4639 = vpack.c.b16 %v4167, %v4159
    %v4640 = vpack.c.b16 %v4168, %v4160
    %v4641 = vpack.c.b16 %v4169, %v4161
    %v4642 = vpack.c.b16 %v4170, %v4162
    %v4643 = vpack.c.b16 %v4171, %v4163
    %v4644 = vpack.c.b16 %v4180, %v4172
    %v4645 = vpack.c.b16 %v4181, %v4173
    %v4646 = vpack.c.b16 %v4182, %v4174
    %v4647 = vpack.c.b16 %v4183, %v4175
    %v4648 = vpack.c.b16 %v4184, %v4176
    %v4649 = vpack.c.b16 %v4185, %v4177
    %v4650 = vpack.c.b16 %v4186, %v4178
    %v4651 = vpack.c.b16 %v4187, %v4179
    %v4652 = vpack.c.b16 %v4196, %v4188
    %v4653 = vpack.c.b16 %v4197, %v4189
    %v4654 = vpack.c.b16 %v4198, %v4190
    %v4655 = vpack.c.b16 %v4199, %v4191
    %v4656 = vpack.c.b16 %v4200, %v4192
    %v4657 = vpack.c.b16 %v4201, %v4193
    %v4658 = vpack.c.b16 %v4202, %v4194
    %v4659 = vpack.c.b16 %v4203, %v4195
    %v4660 = vpack.c.b16 %v4212, %v4204
    %v4661 = vpack.c.b16 %v4213, %v4205
    %v4662 = vpack.c.b16 %v4214, %v4206
    %v4663 = vpack.c.b16 %v4215, %v4207
    %v4664 = vpack.c.b16 %v4216, %v4208
    %v4665 = vpack.c.b16 %v4217, %v4209
    %v4666 = vpack.c.b16 %v4218, %v4210
    %v4667 = vpack.c.b16 %v4219, %v4211
    %v4668 = vpack.c.b16 %v4228, %v4220
    %v4669 = vpack.c.b16 %v4229, %v4221
    %v4670 = vpack.c.b16 %v4230, %v4222
    %v4671 = vpack.c.b16 %v4231, %v4223
    %v4672 = vpack.c.b16 %v4232, %v4224
    %v4673 = vpack.c.b16 %v4233, %v4225
    %v4674 = vpack.c.b16 %v4234, %v4226
    %v4675 = vpack.c.b16 %v4235, %v4227
    %v4676 = vpack.c.b16 %v4244, %v4236
    %v4677 = vpack.c.b16 %v4245, %v4237
    %v4678 = vpack.c.b16 %v4246, %v4238
    %v4679 = vpack.c.b16 %v4247, %v4239
    %v4680 = vpack.c.b16 %v4248, %v4240
    %v4681 = vpack.c.b16 %v4249, %v4241
    %v4682 = vpack.c.b16 %v4250, %v4242
    %v4683 = vpack.c.b16 %v4251, %v4243
    %v4684 = vpack.c.b16 %v4260, %v4252
    %v4685 = vpack.c.b16 %v4261, %v4253
    %v4686 = vpack.c.b16 %v4262, %v4254
    %v4687 = vpack.c.b16 %v4263, %v4255
    %v4688 = vpack.c.b16 %v4264, %v4256
    %v4689 = vpack.c.b16 %v4265, %v4257
    %v4690 = vpack.c.b16 %v4266, %v4258
    %v4691 = vpack.c.b16 %v4267, %v4259
    %v4692 = vpack.c.b16 %v4276, %v4268
    %v4693 = vpack.c.b16 %v4277, %v4269
    %v4694 = vpack.c.b16 %v4278, %v4270
    %v4695 = vpack.c.b16 %v4279, %v4271
    %v4696 = vpack.c.b16 %v4280, %v4272
    %v4697 = vpack.c.b16 %v4281, %v4273
    %v4698 = vpack.c.b16 %v4282, %v4274
    %v4699 = vpack.c.b16 %v4283, %v4275
    %v4700 = vpack.c.b16 %v4292, %v4284
    %v4701 = vpack.c.b16 %v4293, %v4285
    %v4702 = vpack.c.b16 %v4294, %v4286
    %v4703 = vpack.c.b16 %v4295, %v4287
    %v4704 = vpack.c.b16 %v4296, %v4288
    %v4705 = vpack.c.b16 %v4297, %v4289
    %v4706 = vpack.c.b16 %v4298, %v4290
    %v4707 = vpack.c.b16 %v4299, %v4291
    %v4708 = vpack.c.b16 %v4308, %v4300
    %v4709 = vpack.c.b16 %v4309, %v4301
    %v4710 = vpack.c.b16 %v4310, %v4302
    %v4711 = vpack.c.b16 %v4311, %v4303
    %v4712 = vpack.c.b16 %v4312, %v4304
    %v4713 = vpack.c.b16 %v4313, %v4305
    %v4714 = vpack.c.b16 %v4314, %v4306
    %v4715 = vpack.c.b16 %v4315, %v4307
    %v4716 = vpack.c.b16 %v4324, %v4316
    %v4717 = vpack.c.b16 %v4325, %v4317
    %v4718 = vpack.c.b16 %v4326, %v4318
    %v4719 = vpack.c.b16 %v4327, %v4319
    %v4720 = vpack.c.b16 %v4328, %v4320
    %v4721 = vpack.c.b16 %v4329, %v4321
    %v4722 = vpack.c.b16 %v4330, %v4322
    %v4723 = vpack.c.b16 %v4331, %v4323
    %v4724 = vpack.c.b16 %v4340, %v4332
    %v4725 = vpack.c.b16 %v4341, %v4333
    %v4726 = vpack.c.b16 %v4342, %v4334
    %v4727 = vpack.c.b16 %v4343, %v4335
    %v4728 = vpack.c.b16 %v4344, %v4336
    %v4729 = vpack.c.b16 %v4345, %v4337
    %v4730 = vpack.c.b16 %v4346, %v4338
    %v4731 = vpack.c.b16 %v4347, %v4339
    %v4732 = vpack.c.b16 %v4356, %v4348
    %v4733 = vpack.c.b16 %v4357, %v4349
    %v4734 = vpack.c.b16 %v4358, %v4350
    %v4735 = vpack.c.b16 %v4359, %v4351
    %v4736 = vpack.c.b16 %v4360, %v4352
    %v4737 = vpack.c.b16 %v4361, %v4353
    %v4738 = vpack.c.b16 %v4362, %v4354
    %v4739 = vpack.c.b16 %v4363, %v4355
    %v4740 = vpack.c.b16 %v4372, %v4364
    %v4741 = vpack.c.b16 %v4373, %v4365
    %v4742 = vpack.c.b16 %v4374, %v4366
    %v4743 = vpack.c.b16 %v4375, %v4367
    %v4744 = vpack.c.b16 %v4376, %v4368
    %v4745 = vpack.c.b16 %v4377, %v4369
    %v4746 = vpack.c.b16 %v4378, %v4370
    %v4747 = vpack.c.b16 %v4379, %v4371
    %v4748 = vpack.c.b16 %v4388, %v4380
    %v4749 = vpack.c.b16 %v4389, %v4381
    %v4750 = vpack.c.b16 %v4390, %v4382
    %v4751 = vpack.c.b16 %v4391, %v4383
    %v4752 = vpack.c.b16 %v4392, %v4384
    %v4753 = vpack.c.b16 %v4393, %v4385
    %v4754 = vpack.c.b16 %v4394, %v4386
    %v4755 = vpack.c.b16 %v4395, %v4387
    %v4756 = vpack.c.b16 %v4404, %v4396
    %v4757 = vpack.c.b16 %v4405, %v4397
    %v4758 = vpack.c.b16 %v4406, %v4398
    %v4759 = vpack.c.b16 %v4407, %v4399
    %v4760 = vpack.c.b16 %v4408, %v4400
    %v4761 = vpack.c.b16 %v4409, %v4401
    %v4762 = vpack.c.b16 %v4410, %v4402
    %v4763 = vpack.c.b16 %v4411, %v4403
    %v4764 = vpack.c.b16 %v4420, %v4412
    %v4765 = vpack.c.b16 %v4421, %v4413
    %v4766 = vpack.c.b16 %v4422, %v4414
    %v4767 = vpack.c.b16 %v4423, %v4415
    %v4768 = vpack.c.b16 %v4424, %v4416
    %v4769 = vpack.c.b16 %v4425, %v4417
    %v4770 = vpack.c.b16 %v4426, %v4418
    %v4771 = vpack.c.b16 %v4427, %v4419
    %v4772 = vpack.c.b16 %v4436, %v4428
    %v4773 = vpack.c.b16 %v4437, %v4429
    %v4774 = vpack.c.b16 %v4438, %v4430
    %v4775 = vpack.c.b16 %v4439, %v4431
    %v4776 = vpack.c.b16 %v4440, %v4432
    %v4777 = vpack.c.b16 %v4441, %v4433
    %v4778 = vpack.c.b16 %v4442, %v4434
    %v4779 = vpack.c.b16 %v4443, %v4435
    %v4780 = vpack.c.b16 %v4452, %v4444
    %v4781 = vpack.c.b16 %v4453, %v4445
    %v4782 = vpack.c.b16 %v4454, %v4446
    %v4783 = vpack.c.b16 %v4455, %v4447
    %v4784 = vpack.c.b16 %v4456, %v4448
    %v4785 = vpack.c.b16 %v4457, %v4449
    %v4786 = vpack.c.b16 %v4458, %v4450
    %v4787 = vpack.c.b16 %v4459, %v4451
    %v4788 = vpack.c.b16 %v4468, %v4460
    %v4789 = vpack.c.b16 %v4469, %v4461
    %v4790 = vpack.c.b16 %v4470, %v4462
    %v4791 = vpack.c.b16 %v4471, %v4463
    %v4792 = vpack.c.b16 %v4472, %v4464
    %v4793 = vpack.c.b16 %v4473, %v4465
    %v4794 = vpack.c.b16 %v4474, %v4466
    %v4795 = vpack.c.b16 %v4475, %v4467
    %v4796 = vpack.c.b16 %v4484, %v4476
    %v4797 = vpack.c.b16 %v4485, %v4477
    %v4798 = vpack.c.b16 %v4486, %v4478
    %v4799 = vpack.c.b16 %v4487, %v4479
    %v4800 = vpack.c.b16 %v4488, %v4480
    %v4801 = vpack.c.b16 %v4489, %v4481
    %v4802 = vpack.c.b16 %v4490, %v4482
    %v4803 = vpack.c.b16 %v4491, %v4483
    %v4804 = vpack.c.b16 %v4500, %v4492
    %v4805 = vpack.c.b16 %v4501, %v4493
    %v4806 = vpack.c.b16 %v4502, %v4494
    %v4807 = vpack.c.b16 %v4503, %v4495
    %v4808 = vpack.c.b16 %v4504, %v4496
    %v4809 = vpack.c.b16 %v4505, %v4497
    %v4810 = vpack.c.b16 %v4506, %v4498
    %v4811 = vpack.c.b16 %v4507, %v4499
    %v4812 = vpack.c.b16 %v4516, %v4508
    %v4813 = vpack.c.b16 %v4517, %v4509
    %v4814 = vpack.c.b16 %v4518, %v4510
    %v4815 = vpack.c.b16 %v4519, %v4511
    %v4816 = vpack.c.b16 %v4520, %v4512
    %v4817 = vpack.c.b16 %v4521, %v4513
    %v4818 = vpack.c.b16 %v4522, %v4514
    %v4819 = vpack.c.b16 %v4523, %v4515
    %v4820 = vpack.c.b16 %v4532, %v4524
    %v4821 = vpack.c.b16 %v4533, %v4525
    %v4822 = vpack.c.b16 %v4534, %v4526
    %v4823 = vpack.c.b16 %v4535, %v4527
    %v4824 = vpack.c.b16 %v4536, %v4528
    %v4825 = vpack.c.b16 %v4537, %v4529
    %v4826 = vpack.c.b16 %v4538, %v4530
    %v4827 = vpack.c.b16 %v4539, %v4531
    %v4828 = vpack.c.b16 %v4548, %v4540
    %v4829 = vpack.c.b16 %v4549, %v4541
    %v4830 = vpack.c.b16 %v4550, %v4542
    %v4831 = vpack.c.b16 %v4551, %v4543
    %v4832 = vpack.c.b16 %v4552, %v4544
    %v4833 = vpack.c.b16 %v4553, %v4545
    %v4834 = vpack.c.b16 %v4554, %v4546
    %v4835 = vpack.c.b16 %v4555, %v4547
    %v4836 = vpack.c.b16 %v4564, %v4556
    %v4837 = vpack.c.b16 %v4565, %v4557
    %v4838 = vpack.c.b16 %v4566, %v4558
    %v4839 = vpack.c.b16 %v4567, %v4559
    %v4840 = vpack.c.b16 %v4568, %v4560
    %v4841 = vpack.c.b16 %v4569, %v4561
    %v4842 = vpack.c.b16 %v4570, %v4562
    %v4843 = vpack.c.b16 %v4571, %v4563
    %v4844 = vpack.c.b16 %v4580, %v4572
    %v4845 = vpack.c.b16 %v4581, %v4573
    %v4846 = vpack.c.b16 %v4582, %v4574
    %v4847 = vpack.c.b16 %v4583, %v4575
    %v4848 = vpack.c.b16 %v4584, %v4576
    %v4849 = vpack.c.b16 %v4585, %v4577
    %v4850 = vpack.c.b16 %v4586, %v4578
    %v4851 = vpack.c.b16 %v4587, %v4579
    %v4852 = vpack.c.b16 %v4596, %v4588
    %v4853 = vpack.c.b16 %v4597, %v4589
    %v4854 = vpack.c.b16 %v4598, %v4590
    %v4855 = vpack.c.b16 %v4599, %v4591
    %v4856 = vpack.c.b16 %v4600, %v4592
    %v4857 = vpack.c.b16 %v4601, %v4593
    %v4858 = vpack.c.b16 %v4602, %v4594
    %v4859 = vpack.c.b16 %v4603, %v4595
    %5116 = vmatprep.subr.bf16.mxu0 %v4661
    %5117 = vmatpush1.bf16.msra.mxu0 %v4660
    %5118 = vmatprep.subr.bf16.mxu0 %v4653
    %5119 = vmatpush1.bf16.msra.mxu0 %v4652
    %5120 = vmatprep.subr.bf16.mxu0 %v4645
    %5121 = vmatpush1.bf16.msra.mxu0 %v4644
    %5122 = vmatprep.subr.bf16.mxu0 %v4637
    %5123 = vmatpush1.bf16.msra.mxu0 %v4636
    %5124 = vmatprep.subr.bf16.mxu0 %v4629
    %5125 = vmatpush1.bf16.msra.mxu0 %v4628
    %5126 = vmatprep.subr.bf16.mxu0 %v4621
    %5127 = vmatpush1.bf16.msra.mxu0 %v4620
    %5128 = vmatprep.subr.bf16.mxu0 %v4613
    %5129 = vmatpush1.bf16.msra.mxu0 %v4612
    %5130 = vmatprep.subr.bf16.mxu0 %v4605
    %5131 = vmatpush1.bf16.msra.mxu0 %v4604
    %5132 = vmatprep.subr.bf16.mxu0 %v4725
    %5133 = vmatpush2.bf16.msra.mxu0 %v4724
    %5134 = vmatprep.subr.bf16.mxu0 %v4717
    %5135 = vmatpush2.bf16.msra.mxu0 %v4716
    %5136 = vmatprep.subr.bf16.mxu0 %v4709
    %5137 = vmatpush2.bf16.msra.mxu0 %v4708
    %5138 = vmatprep.subr.bf16.mxu0 %v4701
    %5139 = vmatpush2.bf16.msra.mxu0 %v4700
    %5140 = vmatprep.subr.bf16.mxu0 %v4693
    %5141 = vmatpush2.bf16.msra.mxu0 %v4692
    %5142 = vmatprep.subr.bf16.mxu0 %v4685
    %5143 = vmatpush2.bf16.msra.mxu0 %v4684
    %5144 = vmatprep.subr.bf16.mxu0 %v4677
    %5145 = vmatpush2.bf16.msra.mxu0 %v4676
    %5146 = vmatprep.subr.bf16.mxu0 %v4669
    %5147 = vmatpush2.bf16.msra.mxu0 %v4668
    %5148 = vmatprep.mubr.bf16.mxu0 %v3532
    %5149 = vmatmul.mubr.bf16.gmra.mxu0 %v3531
    %v5150 = vpop.f32.mrf.mxu0
    %v5151 = vadd.f32 %v3799, %v5150
    %v5152 = vpop.f32.mrf.mxu0
    %v5153 = vadd.f32 %v3803, %v5152
    %v5154 = vpop.f32.mrf.mxu0
    %v5155 = vpop.f32.mrf.mxu0
    %5156 = vdwg.mxu0
    %5157 = vmatprep.subr.bf16.mxu0 %v4789
    %5158 = vmatpush1.bf16.msra.mxu0 %v4788
    %5159 = vmatprep.subr.bf16.mxu0 %v4781
    %5160 = vmatpush1.bf16.msra.mxu0 %v4780
    %5161 = vmatprep.subr.bf16.mxu0 %v4773
    %5162 = vmatpush1.bf16.msra.mxu0 %v4772
    %5163 = vmatprep.subr.bf16.mxu0 %v4765
    %5164 = vmatpush1.bf16.msra.mxu0 %v4764
    %5165 = vmatprep.subr.bf16.mxu0 %v4757
    %5166 = vmatpush1.bf16.msra.mxu0 %v4756
    %5167 = vmatprep.subr.bf16.mxu0 %v4749
    %5168 = vmatpush1.bf16.msra.mxu0 %v4748
    %5169 = vmatprep.subr.bf16.mxu0 %v4741
    %5170 = vmatpush1.bf16.msra.mxu0 %v4740
    %5171 = vmatprep.subr.bf16.mxu0 %v4733
    %5172 = vmatpush1.bf16.msra.mxu0 %v4732
    %5173 = vmatprep.subr.bf16.mxu0 %v4853
    %5174 = vmatpush2.bf16.msra.mxu0 %v4852
    %5175 = vmatprep.subr.bf16.mxu0 %v4845
    %5176 = vmatpush2.bf16.msra.mxu0 %v4844
    %5177 = vmatprep.subr.bf16.mxu0 %v4837
    %5178 = vmatpush2.bf16.msra.mxu0 %v4836
    %5179 = vmatprep.subr.bf16.mxu0 %v4829
    %5180 = vmatpush2.bf16.msra.mxu0 %v4828
    %5181 = vmatprep.subr.bf16.mxu0 %v4821
    %5182 = vmatpush2.bf16.msra.mxu0 %v4820
    %5183 = vmatprep.subr.bf16.mxu0 %v4813
    %5184 = vmatpush2.bf16.msra.mxu0 %v4812
    %5185 = vmatprep.subr.bf16.mxu0 %v4805
    %5186 = vmatpush2.bf16.msra.mxu0 %v4804
    %5187 = vmatprep.subr.bf16.mxu0 %v4797
    %5188 = vmatpush2.bf16.msra.mxu0 %v4796
    %5189 = vmatprep.mubr.bf16.mxu0 %v3534
    %5190 = vmatmul.mubr.bf16.gmra.mxu0 %v3533
    %v5191 = vpop.f32.mrf.mxu0
    %v5192 = vadd.f32 %v5151, %v5191
    %v5193 = vpop.f32.mrf.mxu0
    %v5194 = vadd.f32 %v5153, %v5193
    %v5195 = vpop.f32.mrf.mxu0
    %v5196 = vpop.f32.mrf.mxu0
    %5197 = vdwg.mxu0
    %5198 = vmatprep.subr.bf16.mxu0 %v4663
    %5199 = vmatpush1.bf16.msra.mxu0 %v4662
    %5200 = vmatprep.subr.bf16.mxu0 %v4655
    %5201 = vmatpush1.bf16.msra.mxu0 %v4654
    %5202 = vmatprep.subr.bf16.mxu0 %v4647
    %5203 = vmatpush1.bf16.msra.mxu0 %v4646
    %5204 = vmatprep.subr.bf16.mxu0 %v4639
    %5205 = vmatpush1.bf16.msra.mxu0 %v4638
    %5206 = vmatprep.subr.bf16.mxu0 %v4631
    %5207 = vmatpush1.bf16.msra.mxu0 %v4630
    %5208 = vmatprep.subr.bf16.mxu0 %v4623
    %5209 = vmatpush1.bf16.msra.mxu0 %v4622
    %5210 = vmatprep.subr.bf16.mxu0 %v4615
    %5211 = vmatpush1.bf16.msra.mxu0 %v4614
    %5212 = vmatprep.subr.bf16.mxu0 %v4607
    %5213 = vmatpush1.bf16.msra.mxu0 %v4606
    %5214 = vmatprep.subr.bf16.mxu0 %v4727
    %5215 = vmatpush2.bf16.msra.mxu0 %v4726
    %5216 = vmatprep.subr.bf16.mxu0 %v4719
    %5217 = vmatpush2.bf16.msra.mxu0 %v4718
    %5218 = vmatprep.subr.bf16.mxu0 %v4711
    %5219 = vmatpush2.bf16.msra.mxu0 %v4710
    %5220 = vmatprep.subr.bf16.mxu0 %v4703
    %5221 = vmatpush2.bf16.msra.mxu0 %v4702
    %5222 = vmatprep.subr.bf16.mxu0 %v4695
    %5223 = vmatpush2.bf16.msra.mxu0 %v4694
    %5224 = vmatprep.subr.bf16.mxu0 %v4687
    %5225 = vmatpush2.bf16.msra.mxu0 %v4686
    %5226 = vmatprep.subr.bf16.mxu0 %v4679
    %5227 = vmatpush2.bf16.msra.mxu0 %v4678
    %5228 = vmatprep.subr.bf16.mxu0 %v4671
    %5229 = vmatpush2.bf16.msra.mxu0 %v4670
    %5230 = vmatprep.mubr.bf16.mxu0 %v3532
    %5231 = vmatmul.mubr.bf16.gmra.mxu0 %v3531
    %v5232 = vpop.f32.mrf.mxu0
    %v5233 = vadd.f32 %v3807, %v5232
    %v5234 = vpop.f32.mrf.mxu0
    %v5235 = vadd.f32 %v3811, %v5234
    %v5236 = vpop.f32.mrf.mxu0
    %v5237 = vpop.f32.mrf.mxu0
    %5238 = vdwg.mxu0
    %5239 = vmatprep.subr.bf16.mxu0 %v4791
    %5240 = vmatpush1.bf16.msra.mxu0 %v4790
    %5241 = vmatprep.subr.bf16.mxu0 %v4783
    %5242 = vmatpush1.bf16.msra.mxu0 %v4782
    %5243 = vmatprep.subr.bf16.mxu0 %v4775
    %5244 = vmatpush1.bf16.msra.mxu0 %v4774
    %5245 = vmatprep.subr.bf16.mxu0 %v4767
    %5246 = vmatpush1.bf16.msra.mxu0 %v4766
    %5247 = vmatprep.subr.bf16.mxu0 %v4759
    %5248 = vmatpush1.bf16.msra.mxu0 %v4758
    %5249 = vmatprep.subr.bf16.mxu0 %v4751
    %5250 = vmatpush1.bf16.msra.mxu0 %v4750
    %5251 = vmatprep.subr.bf16.mxu0 %v4743
    %5252 = vmatpush1.bf16.msra.mxu0 %v4742
    %5253 = vmatprep.subr.bf16.mxu0 %v4735
    %5254 = vmatpush1.bf16.msra.mxu0 %v4734
    %5255 = vmatprep.subr.bf16.mxu0 %v4855
    %5256 = vmatpush2.bf16.msra.mxu0 %v4854
    %5257 = vmatprep.subr.bf16.mxu0 %v4847
    %5258 = vmatpush2.bf16.msra.mxu0 %v4846
    %5259 = vmatprep.subr.bf16.mxu0 %v4839
    %5260 = vmatpush2.bf16.msra.mxu0 %v4838
    %5261 = vmatprep.subr.bf16.mxu0 %v4831
    %5262 = vmatpush2.bf16.msra.mxu0 %v4830
    %5263 = vmatprep.subr.bf16.mxu0 %v4823
    %5264 = vmatpush2.bf16.msra.mxu0 %v4822
    %5265 = vmatprep.subr.bf16.mxu0 %v4815
    %5266 = vmatpush2.bf16.msra.mxu0 %v4814
    %5267 = vmatprep.subr.bf16.mxu0 %v4807
    %5268 = vmatpush2.bf16.msra.mxu0 %v4806
    %5269 = vmatprep.subr.bf16.mxu0 %v4799
    %5270 = vmatpush2.bf16.msra.mxu0 %v4798
    %5271 = vmatprep.mubr.bf16.mxu0 %v3534
    %5272 = vmatmul.mubr.bf16.gmra.mxu0 %v3533
    %v5273 = vpop.f32.mrf.mxu0
    %v5274 = vadd.f32 %v5233, %v5273
    %v5275 = vpop.f32.mrf.mxu0
    %v5276 = vadd.f32 %v5235, %v5275
    %v5277 = vpop.f32.mrf.mxu0
    %v5278 = vpop.f32.mrf.mxu0
    %5279 = vdwg.mxu0
    %5280 = vmatprep.subr.bf16.mxu0 %v4665
    %5281 = vmatpush1.bf16.msra.mxu0 %v4664
    %5282 = vmatprep.subr.bf16.mxu0 %v4657
    %5283 = vmatpush1.bf16.msra.mxu0 %v4656
    %5284 = vmatprep.subr.bf16.mxu0 %v4649
    %5285 = vmatpush1.bf16.msra.mxu0 %v4648
    %5286 = vmatprep.subr.bf16.mxu0 %v4641
    %5287 = vmatpush1.bf16.msra.mxu0 %v4640
    %5288 = vmatprep.subr.bf16.mxu0 %v4633
    %5289 = vmatpush1.bf16.msra.mxu0 %v4632
    %5290 = vmatprep.subr.bf16.mxu0 %v4625
    %5291 = vmatpush1.bf16.msra.mxu0 %v4624
    %5292 = vmatprep.subr.bf16.mxu0 %v4617
    %5293 = vmatpush1.bf16.msra.mxu0 %v4616
    %5294 = vmatprep.subr.bf16.mxu0 %v4609
    %5295 = vmatpush1.bf16.msra.mxu0 %v4608
    %5296 = vmatprep.subr.bf16.mxu0 %v4729
    %5297 = vmatpush2.bf16.msra.mxu0 %v4728
    %5298 = vmatprep.subr.bf16.mxu0 %v4721
    %5299 = vmatpush2.bf16.msra.mxu0 %v4720
    %5300 = vmatprep.subr.bf16.mxu0 %v4713
    %5301 = vmatpush2.bf16.msra.mxu0 %v4712
    %5302 = vmatprep.subr.bf16.mxu0 %v4705
    %5303 = vmatpush2.bf16.msra.mxu0 %v4704
    %5304 = vmatprep.subr.bf16.mxu0 %v4697
    %5305 = vmatpush2.bf16.msra.mxu0 %v4696
    %5306 = vmatprep.subr.bf16.mxu0 %v4689
    %5307 = vmatpush2.bf16.msra.mxu0 %v4688
    %5308 = vmatprep.subr.bf16.mxu0 %v4681
    %5309 = vmatpush2.bf16.msra.mxu0 %v4680
    %5310 = vmatprep.subr.bf16.mxu0 %v4673
    %5311 = vmatpush2.bf16.msra.mxu0 %v4672
    %5312 = vmatprep.mubr.bf16.mxu0 %v3532
    %5313 = vmatmul.mubr.bf16.gmra.mxu0 %v3531
    %v5314 = vpop.f32.mrf.mxu0
    %v5315 = vadd.f32 %v3815, %v5314
    %v5316 = vpop.f32.mrf.mxu0
    %v5317 = vadd.f32 %v3819, %v5316
    %v5318 = vpop.f32.mrf.mxu0
    %v5319 = vpop.f32.mrf.mxu0
    %5320 = vdwg.mxu0
    %5321 = vmatprep.subr.bf16.mxu0 %v4793
    %5322 = vmatpush1.bf16.msra.mxu0 %v4792
    %5323 = vmatprep.subr.bf16.mxu0 %v4785
    %5324 = vmatpush1.bf16.msra.mxu0 %v4784
    %5325 = vmatprep.subr.bf16.mxu0 %v4777
    %5326 = vmatpush1.bf16.msra.mxu0 %v4776
    %5327 = vmatprep.subr.bf16.mxu0 %v4769
    %5328 = vmatpush1.bf16.msra.mxu0 %v4768
    %5329 = vmatprep.subr.bf16.mxu0 %v4761
    %5330 = vmatpush1.bf16.msra.mxu0 %v4760
    %5331 = vmatprep.subr.bf16.mxu0 %v4753
    %5332 = vmatpush1.bf16.msra.mxu0 %v4752
    %5333 = vmatprep.subr.bf16.mxu0 %v4745
    %5334 = vmatpush1.bf16.msra.mxu0 %v4744
    %5335 = vmatprep.subr.bf16.mxu0 %v4737
    %5336 = vmatpush1.bf16.msra.mxu0 %v4736
    %5337 = vmatprep.subr.bf16.mxu0 %v4857
    %5338 = vmatpush2.bf16.msra.mxu0 %v4856
    %5339 = vmatprep.subr.bf16.mxu0 %v4849
    %5340 = vmatpush2.bf16.msra.mxu0 %v4848
    %5341 = vmatprep.subr.bf16.mxu0 %v4841
    %5342 = vmatpush2.bf16.msra.mxu0 %v4840
    %5343 = vmatprep.subr.bf16.mxu0 %v4833
    %5344 = vmatpush2.bf16.msra.mxu0 %v4832
    %5345 = vmatprep.subr.bf16.mxu0 %v4825
    %5346 = vmatpush2.bf16.msra.mxu0 %v4824
    %5347 = vmatprep.subr.bf16.mxu0 %v4817
    %5348 = vmatpush2.bf16.msra.mxu0 %v4816
    %5349 = vmatprep.subr.bf16.mxu0 %v4809
    %5350 = vmatpush2.bf16.msra.mxu0 %v4808
    %5351 = vmatprep.subr.bf16.mxu0 %v4801
    %5352 = vmatpush2.bf16.msra.mxu0 %v4800
    %5353 = vmatprep.mubr.bf16.mxu0 %v3534
    %5354 = vmatmul.mubr.bf16.gmra.mxu0 %v3533
    %v5355 = vpop.f32.mrf.mxu0
    %v5356 = vadd.f32 %v5315, %v5355
    %v5357 = vpop.f32.mrf.mxu0
    %v5358 = vadd.f32 %v5317, %v5357
    %v5359 = vpop.f32.mrf.mxu0
    %v5360 = vpop.f32.mrf.mxu0
    %5361 = vdwg.mxu0
    %5362 = vmatprep.subr.bf16.mxu0 %v4667
    %5363 = vmatpush1.bf16.msra.mxu0 %v4666
    %5364 = vmatprep.subr.bf16.mxu0 %v4659
    %5365 = vmatpush1.bf16.msra.mxu0 %v4658
    %5366 = vmatprep.subr.bf16.mxu0 %v4651
    %5367 = vmatpush1.bf16.msra.mxu0 %v4650
    %5368 = vmatprep.subr.bf16.mxu0 %v4643
    %5369 = vmatpush1.bf16.msra.mxu0 %v4642
    %5370 = vmatprep.subr.bf16.mxu0 %v4635
    %5371 = vmatpush1.bf16.msra.mxu0 %v4634
    %5372 = vmatprep.subr.bf16.mxu0 %v4627
    %5373 = vmatpush1.bf16.msra.mxu0 %v4626
    %5374 = vmatprep.subr.bf16.mxu0 %v4619
    %5375 = vmatpush1.bf16.msra.mxu0 %v4618
    %5376 = vmatprep.subr.bf16.mxu0 %v4611
    %5377 = vmatpush1.bf16.msra.mxu0 %v4610
    %5378 = vmatprep.subr.bf16.mxu0 %v4731
    %5379 = vmatpush2.bf16.msra.mxu0 %v4730
    %5380 = vmatprep.subr.bf16.mxu0 %v4723
    %5381 = vmatpush2.bf16.msra.mxu0 %v4722
    %5382 = vmatprep.subr.bf16.mxu0 %v4715
    %5383 = vmatpush2.bf16.msra.mxu0 %v4714
    %5384 = vmatprep.subr.bf16.mxu0 %v4707
    %5385 = vmatpush2.bf16.msra.mxu0 %v4706
    %5386 = vmatprep.subr.bf16.mxu0 %v4699
    %5387 = vmatpush2.bf16.msra.mxu0 %v4698
    %5388 = vmatprep.subr.bf16.mxu0 %v4691
    %5389 = vmatpush2.bf16.msra.mxu0 %v4690
    %5390 = vmatprep.subr.bf16.mxu0 %v4683
    %5391 = vmatpush2.bf16.msra.mxu0 %v4682
    %5392 = vmatprep.subr.bf16.mxu0 %v4675
    %5393 = vmatpush2.bf16.msra.mxu0 %v4674
    %5394 = vmatprep.mubr.bf16.mxu0 %v3532
    %5395 = vmatmul.mubr.bf16.gmra.mxu0 %v3531
    %v5396 = vpop.f32.mrf.mxu0
    %v5397 = vadd.f32 %v3823, %v5396
    %v5398 = vpop.f32.mrf.mxu0
    %v5399 = vadd.f32 %v3827, %v5398
    %v5400 = vpop.f32.mrf.mxu0
    %v5401 = vpop.f32.mrf.mxu0
    %5402 = vdwg.mxu0
    %5403 = vmatprep.subr.bf16.mxu0 %v4795
    %5404 = vmatpush1.bf16.msra.mxu0 %v4794
    %5405 = vmatprep.subr.bf16.mxu0 %v4787
    %5406 = vmatpush1.bf16.msra.mxu0 %v4786
    %5407 = vmatprep.subr.bf16.mxu0 %v4779
    %5408 = vmatpush1.bf16.msra.mxu0 %v4778
    %5409 = vmatprep.subr.bf16.mxu0 %v4771
    %5410 = vmatpush1.bf16.msra.mxu0 %v4770
    %5411 = vmatprep.subr.bf16.mxu0 %v4763
    %5412 = vmatpush1.bf16.msra.mxu0 %v4762
    %5413 = vmatprep.subr.bf16.mxu0 %v4755
    %5414 = vmatpush1.bf16.msra.mxu0 %v4754
    %5415 = vmatprep.subr.bf16.mxu0 %v4747
    %5416 = vmatpush1.bf16.msra.mxu0 %v4746
    %5417 = vmatprep.subr.bf16.mxu0 %v4739
    %5418 = vmatpush1.bf16.msra.mxu0 %v4738
    %5419 = vmatprep.subr.bf16.mxu0 %v4859
    %5420 = vmatpush2.bf16.msra.mxu0 %v4858
    %5421 = vmatprep.subr.bf16.mxu0 %v4851
    %5422 = vmatpush2.bf16.msra.mxu0 %v4850
    %5423 = vmatprep.subr.bf16.mxu0 %v4843
    %5424 = vmatpush2.bf16.msra.mxu0 %v4842
    %5425 = vmatprep.subr.bf16.mxu0 %v4835
    %5426 = vmatpush2.bf16.msra.mxu0 %v4834
    %5427 = vmatprep.subr.bf16.mxu0 %v4827
    %5428 = vmatpush2.bf16.msra.mxu0 %v4826
    %5429 = vmatprep.subr.bf16.mxu0 %v4819
    %5430 = vmatpush2.bf16.msra.mxu0 %v4818
    %5431 = vmatprep.subr.bf16.mxu0 %v4811
    %5432 = vmatpush2.bf16.msra.mxu0 %v4810
    %5433 = vmatprep.subr.bf16.mxu0 %v4803
    %5434 = vmatpush2.bf16.msra.mxu0 %v4802
    %5435 = vmatprep.mubr.bf16.mxu0 %v3534
    %5436 = vmatmul.mubr.bf16.gmra.mxu0 %v3533
    %v5437 = vpop.f32.mrf.mxu0
    %v5438 = vadd.f32 %v5397, %v5437
    %v5439 = vpop.f32.mrf.mxu0
    %v5440 = vadd.f32 %v5399, %v5439
    %v5441 = vpop.f32.mrf.mxu0
    %v5442 = vpop.f32.mrf.mxu0
    %5443 = vdwg.mxu0
    %vm5444 = vcmp.ge.f32.partialorder %v5192, 0.0
    %vm5445 = vcmp.ge.f32.partialorder %v5194, 0.0
    %vm5446 = vcmp.ge.f32.partialorder %v5274, 0.0
    %vm5447 = vcmp.ge.f32.partialorder %v5276, 0.0
    %vm5448 = vcmp.ge.f32.partialorder %v5356, 0.0
    %vm5449 = vcmp.ge.f32.partialorder %v5358, 0.0
    %vm5450 = vcmp.ge.f32.partialorder %v5438, 0.0
    %vm5451 = vcmp.ge.f32.partialorder %v5440, 0.0
    %v5452 = vmul.f32 %v5192, 0.01
    %v5453 = vmul.f32 %v5194, 0.01
    %v5454 = vmul.f32 %v5274, 0.01
    %v5455 = vmul.f32 %v5276, 0.01
    %v5456 = vmul.f32 %v5356, 0.01
    %v5457 = vmul.f32 %v5358, 0.01
    %v5458 = vmul.f32 %v5438, 0.01
    %v5459 = vmul.f32 %v5440, 0.01
    %v5460 = vsel %vm5444, %v5192, %v5452
    %v5461 = vsel %vm5445, %v5194, %v5453
    %v5462 = vsel %vm5446, %v5274, %v5454
    %v5463 = vsel %vm5447, %v5276, %v5455
    %v5464 = vsel %vm5448, %v5356, %v5456
    %v5465 = vsel %vm5449, %v5358, %v5457
    %v5466 = vsel %vm5450, %v5438, %v5458
    %v5467 = vsel %vm5451, %v5440, %v5459
    %v5468 = vpack.c.bf16 %v5460, %v5460
    %v5469 = vpack.c.bf16 %v5461, %v5461
    %v5470 = vpack.c.bf16 %v5462, %v5462
    %v5471 = vpack.c.bf16 %v5463, %v5463
    %v5472 = vpack.c.bf16 %v5464, %v5464
    %v5473 = vpack.c.bf16 %v5465, %v5465
    %v5474 = vpack.c.bf16 %v5466, %v5466
    %v5475 = vpack.c.bf16 %v5467, %v5467
    %v5476 = vld [vmem:[#allocation7] sm:$0xff]
    %v5477 = vld [vmem:[#allocation7 + $0x8] sm:$0xff]
    %v5478 = vld [vmem:[#allocation7 + $0x10] sm:$0xff]
    %v5479 = vld [vmem:[#allocation7 + $0x18] sm:$0xff]
    %v5480 = vld [vmem:[#allocation7 + $0x20] sm:$0xff]
    %v5481 = vld [vmem:[#allocation7 + $0x28] sm:$0xff]
    %v5482 = vld [vmem:[#allocation7 + $0x30] sm:$0xff]
    %v5483 = vld [vmem:[#allocation7 + $0x38] sm:$0xff]
    %v5484 = vld [vmem:[#allocation7 + $0x40] sm:$0xff]
    %v5485 = vld [vmem:[#allocation7 + $0x48] sm:$0xff]
    %v5486 = vld [vmem:[#allocation7 + $0x50] sm:$0xff]
    %v5487 = vld [vmem:[#allocation7 + $0x58] sm:$0xff]
    %v5488 = vld [vmem:[#allocation7 + $0x60] sm:$0xff]
    %v5489 = vld [vmem:[#allocation7 + $0x68] sm:$0xff]
    %v5490 = vld [vmem:[#allocation7 + $0x70] sm:$0xff]
    %v5491 = vld [vmem:[#allocation7 + $0x78] sm:$0xff]
    %v5492 = vld [vmem:[#allocation7 + $0x80] sm:$0xff]
    %v5493 = vld [vmem:[#allocation7 + $0x88] sm:$0xff]
    %v5494 = vld [vmem:[#allocation7 + $0x90] sm:$0xff]
    %v5495 = vld [vmem:[#allocation7 + $0x98] sm:$0xff]
    %v5496 = vld [vmem:[#allocation7 + $0xa0] sm:$0xff]
    %v5497 = vld [vmem:[#allocation7 + $0xa8] sm:$0xff]
    %v5498 = vld [vmem:[#allocation7 + $0xb0] sm:$0xff]
    %v5499 = vld [vmem:[#allocation7 + $0xb8] sm:$0xff]
    %v5500 = vld [vmem:[#allocation7 + $0xc0] sm:$0xff]
    %v5501 = vld [vmem:[#allocation7 + $0xc8] sm:$0xff]
    %v5502 = vld [vmem:[#allocation7 + $0xd0] sm:$0xff]
    %v5503 = vld [vmem:[#allocation7 + $0xd8] sm:$0xff]
    %v5504 = vld [vmem:[#allocation7 + $0xe0] sm:$0xff]
    %v5505 = vld [vmem:[#allocation7 + $0xe8] sm:$0xff]
    %v5506 = vld [vmem:[#allocation7 + $0xf0] sm:$0xff]
    %v5507 = vld [vmem:[#allocation7 + $0xf8] sm:$0xff]
    %v5508 = vld [vmem:[#allocation7 + $0x100] sm:$0xff]
    %v5509 = vld [vmem:[#allocation7 + $0x108] sm:$0xff]
    %v5510 = vld [vmem:[#allocation7 + $0x110] sm:$0xff]
    %v5511 = vld [vmem:[#allocation7 + $0x118] sm:$0xff]
    %v5512 = vld [vmem:[#allocation7 + $0x120] sm:$0xff]
    %v5513 = vld [vmem:[#allocation7 + $0x128] sm:$0xff]
    %v5514 = vld [vmem:[#allocation7 + $0x130] sm:$0xff]
    %v5515 = vld [vmem:[#allocation7 + $0x138] sm:$0xff]
    %v5516 = vld [vmem:[#allocation7 + $0x140] sm:$0xff]
    %v5517 = vld [vmem:[#allocation7 + $0x148] sm:$0xff]
    %v5518 = vld [vmem:[#allocation7 + $0x150] sm:$0xff]
    %v5519 = vld [vmem:[#allocation7 + $0x158] sm:$0xff]
    %v5520 = vld [vmem:[#allocation7 + $0x160] sm:$0xff]
    %v5521 = vld [vmem:[#allocation7 + $0x168] sm:$0xff]
    %v5522 = vld [vmem:[#allocation7 + $0x170] sm:$0xff]
    %v5523 = vld [vmem:[#allocation7 + $0x178] sm:$0xff]
    %v5524 = vld [vmem:[#allocation7 + $0x180] sm:$0xff]
    %v5525 = vld [vmem:[#allocation7 + $0x188] sm:$0xff]
    %v5526 = vld [vmem:[#allocation7 + $0x190] sm:$0xff]
    %v5527 = vld [vmem:[#allocation7 + $0x198] sm:$0xff]
    %v5528 = vld [vmem:[#allocation7 + $0x1a0] sm:$0xff]
    %v5529 = vld [vmem:[#allocation7 + $0x1a8] sm:$0xff]
    %v5530 = vld [vmem:[#allocation7 + $0x1b0] sm:$0xff]
    %v5531 = vld [vmem:[#allocation7 + $0x1b8] sm:$0xff]
    %v5532 = vld [vmem:[#allocation7 + $0x1c0] sm:$0xff]
    %v5533 = vld [vmem:[#allocation7 + $0x1c8] sm:$0xff]
    %v5534 = vld [vmem:[#allocation7 + $0x1d0] sm:$0xff]
    %v5535 = vld [vmem:[#allocation7 + $0x1d8] sm:$0xff]
    %v5536 = vld [vmem:[#allocation7 + $0x1e0] sm:$0xff]
    %v5537 = vld [vmem:[#allocation7 + $0x1e8] sm:$0xff]
    %v5538 = vld [vmem:[#allocation7 + $0x1f0] sm:$0xff]
    %v5539 = vld [vmem:[#allocation7 + $0x1f8] sm:$0xff]
    %v5540 = vld [vmem:[#allocation7 + $0x200] sm:$0xff]
    %v5541 = vld [vmem:[#allocation7 + $0x208] sm:$0xff]
    %v5542 = vld [vmem:[#allocation7 + $0x210] sm:$0xff]
    %v5543 = vld [vmem:[#allocation7 + $0x218] sm:$0xff]
    %v5544 = vld [vmem:[#allocation7 + $0x220] sm:$0xff]
    %v5545 = vld [vmem:[#allocation7 + $0x228] sm:$0xff]
    %v5546 = vld [vmem:[#allocation7 + $0x230] sm:$0xff]
    %v5547 = vld [vmem:[#allocation7 + $0x238] sm:$0xff]
    %v5548 = vld [vmem:[#allocation7 + $0x240] sm:$0xff]
    %v5549 = vld [vmem:[#allocation7 + $0x248] sm:$0xff]
    %v5550 = vld [vmem:[#allocation7 + $0x250] sm:$0xff]
    %v5551 = vld [vmem:[#allocation7 + $0x258] sm:$0xff]
    %v5552 = vld [vmem:[#allocation7 + $0x260] sm:$0xff]
    %v5553 = vld [vmem:[#allocation7 + $0x268] sm:$0xff]
    %v5554 = vld [vmem:[#allocation7 + $0x270] sm:$0xff]
    %v5555 = vld [vmem:[#allocation7 + $0x278] sm:$0xff]
    %v5556 = vld [vmem:[#allocation7 + $0x280] sm:$0xff]
    %v5557 = vld [vmem:[#allocation7 + $0x288] sm:$0xff]
    %v5558 = vld [vmem:[#allocation7 + $0x290] sm:$0xff]
    %v5559 = vld [vmem:[#allocation7 + $0x298] sm:$0xff]
    %v5560 = vld [vmem:[#allocation7 + $0x2a0] sm:$0xff]
    %v5561 = vld [vmem:[#allocation7 + $0x2a8] sm:$0xff]
    %v5562 = vld [vmem:[#allocation7 + $0x2b0] sm:$0xff]
    %v5563 = vld [vmem:[#allocation7 + $0x2b8] sm:$0xff]
    %v5564 = vld [vmem:[#allocation7 + $0x2c0] sm:$0xff]
    %v5565 = vld [vmem:[#allocation7 + $0x2c8] sm:$0xff]
    %v5566 = vld [vmem:[#allocation7 + $0x2d0] sm:$0xff]
    %v5567 = vld [vmem:[#allocation7 + $0x2d8] sm:$0xff]
    %v5568 = vld [vmem:[#allocation7 + $0x2e0] sm:$0xff]
    %v5569 = vld [vmem:[#allocation7 + $0x2e8] sm:$0xff]
    %v5570 = vld [vmem:[#allocation7 + $0x2f0] sm:$0xff]
    %v5571 = vld [vmem:[#allocation7 + $0x2f8] sm:$0xff]
    %v5572 = vld [vmem:[#allocation7 + $0x300] sm:$0xff]
    %v5573 = vld [vmem:[#allocation7 + $0x308] sm:$0xff]
    %v5574 = vld [vmem:[#allocation7 + $0x310] sm:$0xff]
    %v5575 = vld [vmem:[#allocation7 + $0x318] sm:$0xff]
    %v5576 = vld [vmem:[#allocation7 + $0x320] sm:$0xff]
    %v5577 = vld [vmem:[#allocation7 + $0x328] sm:$0xff]
    %v5578 = vld [vmem:[#allocation7 + $0x330] sm:$0xff]
    %v5579 = vld [vmem:[#allocation7 + $0x338] sm:$0xff]
    %v5580 = vld [vmem:[#allocation7 + $0x340] sm:$0xff]
    %v5581 = vld [vmem:[#allocation7 + $0x348] sm:$0xff]
    %v5582 = vld [vmem:[#allocation7 + $0x350] sm:$0xff]
    %v5583 = vld [vmem:[#allocation7 + $0x358] sm:$0xff]
    %v5584 = vld [vmem:[#allocation7 + $0x360] sm:$0xff]
    %v5585 = vld [vmem:[#allocation7 + $0x368] sm:$0xff]
    %v5586 = vld [vmem:[#allocation7 + $0x370] sm:$0xff]
    %v5587 = vld [vmem:[#allocation7 + $0x378] sm:$0xff]
    %v5588 = vld [vmem:[#allocation7 + $0x380] sm:$0xff]
    %v5589 = vld [vmem:[#allocation7 + $0x388] sm:$0xff]
    %v5590 = vld [vmem:[#allocation7 + $0x390] sm:$0xff]
    %v5591 = vld [vmem:[#allocation7 + $0x398] sm:$0xff]
    %v5592 = vld [vmem:[#allocation7 + $0x3a0] sm:$0xff]
    %v5593 = vld [vmem:[#allocation7 + $0x3a8] sm:$0xff]
    %v5594 = vld [vmem:[#allocation7 + $0x3b0] sm:$0xff]
    %v5595 = vld [vmem:[#allocation7 + $0x3b8] sm:$0xff]
    %v5596 = vld [vmem:[#allocation7 + $0x3c0] sm:$0xff]
    %v5597 = vld [vmem:[#allocation7 + $0x3c8] sm:$0xff]
    %v5598 = vld [vmem:[#allocation7 + $0x3d0] sm:$0xff]
    %v5599 = vld [vmem:[#allocation7 + $0x3d8] sm:$0xff]
    %v5600 = vld [vmem:[#allocation7 + $0x3e0] sm:$0xff]
    %v5601 = vld [vmem:[#allocation7 + $0x3e8] sm:$0xff]
    %v5602 = vld [vmem:[#allocation7 + $0x3f0] sm:$0xff]
    %v5603 = vld [vmem:[#allocation7 + $0x3f8] sm:$0xff]
    %s5604 = scalar_lea.vmem [#allocation8], 5
    %v5605 = vld [vmem:[%s5604] ss:$8 sm:$0x3]
    %v5607 = vlaneseq
    %v5608 = vshrl.u32 %v5607, 7
    %v5609 = vsub.s32 0, %v5608
    %v5610 = vrot.slane %v5605, %v5609
    %v5611 = vlaneseq
    %v5612 = vshrl.u32 %v5611, 7
    %v5613 = vsub.s32 1, %v5612
    %v5614 = vrot.slane %v5605, %v5613
    %v5745 = vunpack.c.l.b16 %v5476
    %v5746 = vunpack.c.h.b16 %v5476
    %v5747 = vunpack.c.l.b16 %v5477
    %v5748 = vunpack.c.h.b16 %v5477
    %v5749 = vunpack.c.l.b16 %v5478
    %v5750 = vunpack.c.h.b16 %v5478
    %v5751 = vunpack.c.l.b16 %v5479
    %v5752 = vunpack.c.h.b16 %v5479
    %v5753 = vunpack.c.l.b16 %v5480
    %v5754 = vunpack.c.h.b16 %v5480
    %v5755 = vunpack.c.l.b16 %v5481
    %v5756 = vunpack.c.h.b16 %v5481
    %v5757 = vunpack.c.l.b16 %v5482
    %v5758 = vunpack.c.h.b16 %v5482
    %v5759 = vunpack.c.l.b16 %v5483
    %v5760 = vunpack.c.h.b16 %v5483
    %v5761 = vunpack.c.l.b16 %v5484
    %v5762 = vunpack.c.h.b16 %v5484
    %v5763 = vunpack.c.l.b16 %v5485
    %v5764 = vunpack.c.h.b16 %v5485
    %v5765 = vunpack.c.l.b16 %v5486
    %v5766 = vunpack.c.h.b16 %v5486
    %v5767 = vunpack.c.l.b16 %v5487
    %v5768 = vunpack.c.h.b16 %v5487
    %v5769 = vunpack.c.l.b16 %v5488
    %v5770 = vunpack.c.h.b16 %v5488
    %v5771 = vunpack.c.l.b16 %v5489
    %v5772 = vunpack.c.h.b16 %v5489
    %v5773 = vunpack.c.l.b16 %v5490
    %v5774 = vunpack.c.h.b16 %v5490
    %v5775 = vunpack.c.l.b16 %v5491
    %v5776 = vunpack.c.h.b16 %v5491
    %v5777 = vunpack.c.l.b16 %v5492
    %v5778 = vunpack.c.h.b16 %v5492
    %v5779 = vunpack.c.l.b16 %v5493
    %v5780 = vunpack.c.h.b16 %v5493
    %v5781 = vunpack.c.l.b16 %v5494
    %v5782 = vunpack.c.h.b16 %v5494
    %v5783 = vunpack.c.l.b16 %v5495
    %v5784 = vunpack.c.h.b16 %v5495
    %v5785 = vunpack.c.l.b16 %v5496
    %v5786 = vunpack.c.h.b16 %v5496
    %v5787 = vunpack.c.l.b16 %v5497
    %v5788 = vunpack.c.h.b16 %v5497
    %v5789 = vunpack.c.l.b16 %v5498
    %v5790 = vunpack.c.h.b16 %v5498
    %v5791 = vunpack.c.l.b16 %v5499
    %v5792 = vunpack.c.h.b16 %v5499
    %v5793 = vunpack.c.l.b16 %v5500
    %v5794 = vunpack.c.h.b16 %v5500
    %v5795 = vunpack.c.l.b16 %v5501
    %v5796 = vunpack.c.h.b16 %v5501
    %v5797 = vunpack.c.l.b16 %v5502
    %v5798 = vunpack.c.h.b16 %v5502
    %v5799 = vunpack.c.l.b16 %v5503
    %v5800 = vunpack.c.h.b16 %v5503
    %v5801 = vunpack.c.l.b16 %v5504
    %v5802 = vunpack.c.h.b16 %v5504
    %v5803 = vunpack.c.l.b16 %v5505
    %v5804 = vunpack.c.h.b16 %v5505
    %v5805 = vunpack.c.l.b16 %v5506
    %v5806 = vunpack.c.h.b16 %v5506
    %v5807 = vunpack.c.l.b16 %v5507
    %v5808 = vunpack.c.h.b16 %v5507
    %v5809 = vunpack.c.l.b16 %v5508
    %v5810 = vunpack.c.h.b16 %v5508
    %v5811 = vunpack.c.l.b16 %v5509
    %v5812 = vunpack.c.h.b16 %v5509
    %v5813 = vunpack.c.l.b16 %v5510
    %v5814 = vunpack.c.h.b16 %v5510
    %v5815 = vunpack.c.l.b16 %v5511
    %v5816 = vunpack.c.h.b16 %v5511
    %v5817 = vunpack.c.l.b16 %v5512
    %v5818 = vunpack.c.h.b16 %v5512
    %v5819 = vunpack.c.l.b16 %v5513
    %v5820 = vunpack.c.h.b16 %v5513
    %v5821 = vunpack.c.l.b16 %v5514
    %v5822 = vunpack.c.h.b16 %v5514
    %v5823 = vunpack.c.l.b16 %v5515
    %v5824 = vunpack.c.h.b16 %v5515
    %v5825 = vunpack.c.l.b16 %v5516
    %v5826 = vunpack.c.h.b16 %v5516
    %v5827 = vunpack.c.l.b16 %v5517
    %v5828 = vunpack.c.h.b16 %v5517
    %v5829 = vunpack.c.l.b16 %v5518
    %v5830 = vunpack.c.h.b16 %v5518
    %v5831 = vunpack.c.l.b16 %v5519
    %v5832 = vunpack.c.h.b16 %v5519
    %v5833 = vunpack.c.l.b16 %v5520
    %v5834 = vunpack.c.h.b16 %v5520
    %v5835 = vunpack.c.l.b16 %v5521
    %v5836 = vunpack.c.h.b16 %v5521
    %v5837 = vunpack.c.l.b16 %v5522
    %v5838 = vunpack.c.h.b16 %v5522
    %v5839 = vunpack.c.l.b16 %v5523
    %v5840 = vunpack.c.h.b16 %v5523
    %v5841 = vunpack.c.l.b16 %v5524
    %v5842 = vunpack.c.h.b16 %v5524
    %v5843 = vunpack.c.l.b16 %v5525
    %v5844 = vunpack.c.h.b16 %v5525
    %v5845 = vunpack.c.l.b16 %v5526
    %v5846 = vunpack.c.h.b16 %v5526
    %v5847 = vunpack.c.l.b16 %v5527
    %v5848 = vunpack.c.h.b16 %v5527
    %v5849 = vunpack.c.l.b16 %v5528
    %v5850 = vunpack.c.h.b16 %v5528
    %v5851 = vunpack.c.l.b16 %v5529
    %v5852 = vunpack.c.h.b16 %v5529
    %v5853 = vunpack.c.l.b16 %v5530
    %v5854 = vunpack.c.h.b16 %v5530
    %v5855 = vunpack.c.l.b16 %v5531
    %v5856 = vunpack.c.h.b16 %v5531
    %v5857 = vunpack.c.l.b16 %v5532
    %v5858 = vunpack.c.h.b16 %v5532
    %v5859 = vunpack.c.l.b16 %v5533
    %v5860 = vunpack.c.h.b16 %v5533
    %v5861 = vunpack.c.l.b16 %v5534
    %v5862 = vunpack.c.h.b16 %v5534
    %v5863 = vunpack.c.l.b16 %v5535
    %v5864 = vunpack.c.h.b16 %v5535
    %v5865 = vunpack.c.l.b16 %v5536
    %v5866 = vunpack.c.h.b16 %v5536
    %v5867 = vunpack.c.l.b16 %v5537
    %v5868 = vunpack.c.h.b16 %v5537
    %v5869 = vunpack.c.l.b16 %v5538
    %v5870 = vunpack.c.h.b16 %v5538
    %v5871 = vunpack.c.l.b16 %v5539
    %v5872 = vunpack.c.h.b16 %v5539
    %v5873 = vunpack.c.l.b16 %v5540
    %v5874 = vunpack.c.h.b16 %v5540
    %v5875 = vunpack.c.l.b16 %v5541
    %v5876 = vunpack.c.h.b16 %v5541
    %v5877 = vunpack.c.l.b16 %v5542
    %v5878 = vunpack.c.h.b16 %v5542
    %v5879 = vunpack.c.l.b16 %v5543
    %v5880 = vunpack.c.h.b16 %v5543
    %v5881 = vunpack.c.l.b16 %v5544
    %v5882 = vunpack.c.h.b16 %v5544
    %v5883 = vunpack.c.l.b16 %v5545
    %v5884 = vunpack.c.h.b16 %v5545
    %v5885 = vunpack.c.l.b16 %v5546
    %v5886 = vunpack.c.h.b16 %v5546
    %v5887 = vunpack.c.l.b16 %v5547
    %v5888 = vunpack.c.h.b16 %v5547
    %v5889 = vunpack.c.l.b16 %v5548
    %v5890 = vunpack.c.h.b16 %v5548
    %v5891 = vunpack.c.l.b16 %v5549
    %v5892 = vunpack.c.h.b16 %v5549
    %v5893 = vunpack.c.l.b16 %v5550
    %v5894 = vunpack.c.h.b16 %v5550
    %v5895 = vunpack.c.l.b16 %v5551
    %v5896 = vunpack.c.h.b16 %v5551
    %v5897 = vunpack.c.l.b16 %v5552
    %v5898 = vunpack.c.h.b16 %v5552
    %v5899 = vunpack.c.l.b16 %v5553
    %v5900 = vunpack.c.h.b16 %v5553
    %v5901 = vunpack.c.l.b16 %v5554
    %v5902 = vunpack.c.h.b16 %v5554
    %v5903 = vunpack.c.l.b16 %v5555
    %v5904 = vunpack.c.h.b16 %v5555
    %v5905 = vunpack.c.l.b16 %v5556
    %v5906 = vunpack.c.h.b16 %v5556
    %v5907 = vunpack.c.l.b16 %v5557
    %v5908 = vunpack.c.h.b16 %v5557
    %v5909 = vunpack.c.l.b16 %v5558
    %v5910 = vunpack.c.h.b16 %v5558
    %v5911 = vunpack.c.l.b16 %v5559
    %v5912 = vunpack.c.h.b16 %v5559
    %v5913 = vunpack.c.l.b16 %v5560
    %v5914 = vunpack.c.h.b16 %v5560
    %v5915 = vunpack.c.l.b16 %v5561
    %v5916 = vunpack.c.h.b16 %v5561
    %v5917 = vunpack.c.l.b16 %v5562
    %v5918 = vunpack.c.h.b16 %v5562
    %v5919 = vunpack.c.l.b16 %v5563
    %v5920 = vunpack.c.h.b16 %v5563
    %v5921 = vunpack.c.l.b16 %v5564
    %v5922 = vunpack.c.h.b16 %v5564
    %v5923 = vunpack.c.l.b16 %v5565
    %v5924 = vunpack.c.h.b16 %v5565
    %v5925 = vunpack.c.l.b16 %v5566
    %v5926 = vunpack.c.h.b16 %v5566
    %v5927 = vunpack.c.l.b16 %v5567
    %v5928 = vunpack.c.h.b16 %v5567
    %v5929 = vunpack.c.l.b16 %v5568
    %v5930 = vunpack.c.h.b16 %v5568
    %v5931 = vunpack.c.l.b16 %v5569
    %v5932 = vunpack.c.h.b16 %v5569
    %v5933 = vunpack.c.l.b16 %v5570
    %v5934 = vunpack.c.h.b16 %v5570
    %v5935 = vunpack.c.l.b16 %v5571
    %v5936 = vunpack.c.h.b16 %v5571
    %v5937 = vunpack.c.l.b16 %v5572
    %v5938 = vunpack.c.h.b16 %v5572
    %v5939 = vunpack.c.l.b16 %v5573
    %v5940 = vunpack.c.h.b16 %v5573
    %v5941 = vunpack.c.l.b16 %v5574
    %v5942 = vunpack.c.h.b16 %v5574
    %v5943 = vunpack.c.l.b16 %v5575
    %v5944 = vunpack.c.h.b16 %v5575
    %v5945 = vunpack.c.l.b16 %v5576
    %v5946 = vunpack.c.h.b16 %v5576
    %v5947 = vunpack.c.l.b16 %v5577
    %v5948 = vunpack.c.h.b16 %v5577
    %v5949 = vunpack.c.l.b16 %v5578
    %v5950 = vunpack.c.h.b16 %v5578
    %v5951 = vunpack.c.l.b16 %v5579
    %v5952 = vunpack.c.h.b16 %v5579
    %v5953 = vunpack.c.l.b16 %v5580
    %v5954 = vunpack.c.h.b16 %v5580
    %v5955 = vunpack.c.l.b16 %v5581
    %v5956 = vunpack.c.h.b16 %v5581
    %v5957 = vunpack.c.l.b16 %v5582
    %v5958 = vunpack.c.h.b16 %v5582
    %v5959 = vunpack.c.l.b16 %v5583
    %v5960 = vunpack.c.h.b16 %v5583
    %v5961 = vunpack.c.l.b16 %v5584
    %v5962 = vunpack.c.h.b16 %v5584
    %v5963 = vunpack.c.l.b16 %v5585
    %v5964 = vunpack.c.h.b16 %v5585
    %v5965 = vunpack.c.l.b16 %v5586
    %v5966 = vunpack.c.h.b16 %v5586
    %v5967 = vunpack.c.l.b16 %v5587
    %v5968 = vunpack.c.h.b16 %v5587
    %v5969 = vunpack.c.l.b16 %v5588
    %v5970 = vunpack.c.h.b16 %v5588
    %v5971 = vunpack.c.l.b16 %v5589
    %v5972 = vunpack.c.h.b16 %v5589
    %v5973 = vunpack.c.l.b16 %v5590
    %v5974 = vunpack.c.h.b16 %v5590
    %v5975 = vunpack.c.l.b16 %v5591
    %v5976 = vunpack.c.h.b16 %v5591
    %v5977 = vunpack.c.l.b16 %v5592
    %v5978 = vunpack.c.h.b16 %v5592
    %v5979 = vunpack.c.l.b16 %v5593
    %v5980 = vunpack.c.h.b16 %v5593
    %v5981 = vunpack.c.l.b16 %v5594
    %v5982 = vunpack.c.h.b16 %v5594
    %v5983 = vunpack.c.l.b16 %v5595
    %v5984 = vunpack.c.h.b16 %v5595
    %v5985 = vunpack.c.l.b16 %v5596
    %v5986 = vunpack.c.h.b16 %v5596
    %v5987 = vunpack.c.l.b16 %v5597
    %v5988 = vunpack.c.h.b16 %v5597
    %v5989 = vunpack.c.l.b16 %v5598
    %v5990 = vunpack.c.h.b16 %v5598
    %v5991 = vunpack.c.l.b16 %v5599
    %v5992 = vunpack.c.h.b16 %v5599
    %v5993 = vunpack.c.l.b16 %v5600
    %v5994 = vunpack.c.h.b16 %v5600
    %v5995 = vunpack.c.l.b16 %v5601
    %v5996 = vunpack.c.h.b16 %v5601
    %v5997 = vunpack.c.l.b16 %v5602
    %v5998 = vunpack.c.h.b16 %v5602
    %v5999 = vunpack.c.l.b16 %v5603
    %v6000 = vunpack.c.h.b16 %v5603
    %v6001 = vpack.c.b16 %v5747, %v5745
    %v6002 = vpack.c.b16 %v5748, %v5746
    %v6003 = vpack.c.b16 %v5751, %v5749
    %v6004 = vpack.c.b16 %v5752, %v5750
    %v6005 = vpack.c.b16 %v5755, %v5753
    %v6006 = vpack.c.b16 %v5756, %v5754
    %v6007 = vpack.c.b16 %v5759, %v5757
    %v6008 = vpack.c.b16 %v5760, %v5758
    %v6009 = vpack.c.b16 %v5763, %v5761
    %v6010 = vpack.c.b16 %v5764, %v5762
    %v6011 = vpack.c.b16 %v5767, %v5765
    %v6012 = vpack.c.b16 %v5768, %v5766
    %v6013 = vpack.c.b16 %v5771, %v5769
    %v6014 = vpack.c.b16 %v5772, %v5770
    %v6015 = vpack.c.b16 %v5775, %v5773
    %v6016 = vpack.c.b16 %v5776, %v5774
    %v6017 = vpack.c.b16 %v5779, %v5777
    %v6018 = vpack.c.b16 %v5780, %v5778
    %v6019 = vpack.c.b16 %v5783, %v5781
    %v6020 = vpack.c.b16 %v5784, %v5782
    %v6021 = vpack.c.b16 %v5787, %v5785
    %v6022 = vpack.c.b16 %v5788, %v5786
    %v6023 = vpack.c.b16 %v5791, %v5789
    %v6024 = vpack.c.b16 %v5792, %v5790
    %v6025 = vpack.c.b16 %v5795, %v5793
    %v6026 = vpack.c.b16 %v5796, %v5794
    %v6027 = vpack.c.b16 %v5799, %v5797
    %v6028 = vpack.c.b16 %v5800, %v5798
    %v6029 = vpack.c.b16 %v5803, %v5801
    %v6030 = vpack.c.b16 %v5804, %v5802
    %v6031 = vpack.c.b16 %v5807, %v5805
    %v6032 = vpack.c.b16 %v5808, %v5806
    %v6033 = vpack.c.b16 %v5811, %v5809
    %v6034 = vpack.c.b16 %v5812, %v5810
    %v6035 = vpack.c.b16 %v5815, %v5813
    %v6036 = vpack.c.b16 %v5816, %v5814
    %v6037 = vpack.c.b16 %v5819, %v5817
    %v6038 = vpack.c.b16 %v5820, %v5818
    %v6039 = vpack.c.b16 %v5823, %v5821
    %v6040 = vpack.c.b16 %v5824, %v5822
    %v6041 = vpack.c.b16 %v5827, %v5825
    %v6042 = vpack.c.b16 %v5828, %v5826
    %v6043 = vpack.c.b16 %v5831, %v5829
    %v6044 = vpack.c.b16 %v5832, %v5830
    %v6045 = vpack.c.b16 %v5835, %v5833
    %v6046 = vpack.c.b16 %v5836, %v5834
    %v6047 = vpack.c.b16 %v5839, %v5837
    %v6048 = vpack.c.b16 %v5840, %v5838
    %v6049 = vpack.c.b16 %v5843, %v5841
    %v6050 = vpack.c.b16 %v5844, %v5842
    %v6051 = vpack.c.b16 %v5847, %v5845
    %v6052 = vpack.c.b16 %v5848, %v5846
    %v6053 = vpack.c.b16 %v5851, %v5849
    %v6054 = vpack.c.b16 %v5852, %v5850
    %v6055 = vpack.c.b16 %v5855, %v5853
    %v6056 = vpack.c.b16 %v5856, %v5854
    %v6057 = vpack.c.b16 %v5859, %v5857
    %v6058 = vpack.c.b16 %v5860, %v5858
    %v6059 = vpack.c.b16 %v5863, %v5861
    %v6060 = vpack.c.b16 %v5864, %v5862
    %v6061 = vpack.c.b16 %v5867, %v5865
    %v6062 = vpack.c.b16 %v5868, %v5866
    %v6063 = vpack.c.b16 %v5871, %v5869
    %v6064 = vpack.c.b16 %v5872, %v5870
    %v6065 = vpack.c.b16 %v5875, %v5873
    %v6066 = vpack.c.b16 %v5876, %v5874
    %v6067 = vpack.c.b16 %v5879, %v5877
    %v6068 = vpack.c.b16 %v5880, %v5878
    %v6069 = vpack.c.b16 %v5883, %v5881
    %v6070 = vpack.c.b16 %v5884, %v5882
    %v6071 = vpack.c.b16 %v5887, %v5885
    %v6072 = vpack.c.b16 %v5888, %v5886
    %v6073 = vpack.c.b16 %v5891, %v5889
    %v6074 = vpack.c.b16 %v5892, %v5890
    %v6075 = vpack.c.b16 %v5895, %v5893
    %v6076 = vpack.c.b16 %v5896, %v5894
    %v6077 = vpack.c.b16 %v5899, %v5897
    %v6078 = vpack.c.b16 %v5900, %v5898
    %v6079 = vpack.c.b16 %v5903, %v5901
    %v6080 = vpack.c.b16 %v5904, %v5902
    %v6081 = vpack.c.b16 %v5907, %v5905
    %v6082 = vpack.c.b16 %v5908, %v5906
    %v6083 = vpack.c.b16 %v5911, %v5909
    %v6084 = vpack.c.b16 %v5912, %v5910
    %v6085 = vpack.c.b16 %v5915, %v5913
    %v6086 = vpack.c.b16 %v5916, %v5914
    %v6087 = vpack.c.b16 %v5919, %v5917
    %v6088 = vpack.c.b16 %v5920, %v5918
    %v6089 = vpack.c.b16 %v5923, %v5921
    %v6090 = vpack.c.b16 %v5924, %v5922
    %v6091 = vpack.c.b16 %v5927, %v5925
    %v6092 = vpack.c.b16 %v5928, %v5926
    %v6093 = vpack.c.b16 %v5931, %v5929
    %v6094 = vpack.c.b16 %v5932, %v5930
    %v6095 = vpack.c.b16 %v5935, %v5933
    %v6096 = vpack.c.b16 %v5936, %v5934
    %v6097 = vpack.c.b16 %v5939, %v5937
    %v6098 = vpack.c.b16 %v5940, %v5938
    %v6099 = vpack.c.b16 %v5943, %v5941
    %v6100 = vpack.c.b16 %v5944, %v5942
    %v6101 = vpack.c.b16 %v5947, %v5945
    %v6102 = vpack.c.b16 %v5948, %v5946
    %v6103 = vpack.c.b16 %v5951, %v5949
    %v6104 = vpack.c.b16 %v5952, %v5950
    %v6105 = vpack.c.b16 %v5955, %v5953
    %v6106 = vpack.c.b16 %v5956, %v5954
    %v6107 = vpack.c.b16 %v5959, %v5957
    %v6108 = vpack.c.b16 %v5960, %v5958
    %v6109 = vpack.c.b16 %v5963, %v5961
    %v6110 = vpack.c.b16 %v5964, %v5962
    %v6111 = vpack.c.b16 %v5967, %v5965
    %v6112 = vpack.c.b16 %v5968, %v5966
    %v6113 = vpack.c.b16 %v5971, %v5969
    %v6114 = vpack.c.b16 %v5972, %v5970
    %v6115 = vpack.c.b16 %v5975, %v5973
    %v6116 = vpack.c.b16 %v5976, %v5974
    %v6117 = vpack.c.b16 %v5979, %v5977
    %v6118 = vpack.c.b16 %v5980, %v5978
    %v6119 = vpack.c.b16 %v5983, %v5981
    %v6120 = vpack.c.b16 %v5984, %v5982
    %v6121 = vpack.c.b16 %v5987, %v5985
    %v6122 = vpack.c.b16 %v5988, %v5986
    %v6123 = vpack.c.b16 %v5991, %v5989
    %v6124 = vpack.c.b16 %v5992, %v5990
    %v6125 = vpack.c.b16 %v5995, %v5993
    %v6126 = vpack.c.b16 %v5996, %v5994
    %v6127 = vpack.c.b16 %v5999, %v5997
    %v6128 = vpack.c.b16 %v6000, %v5998
    %6257 = vmatprep.subr.bf16.mxu0 %v6016
    %6258 = vmatpush1.bf16.msra.mxu0 %v6015
    %6259 = vmatprep.subr.bf16.mxu0 %v6014
    %6260 = vmatpush1.bf16.msra.mxu0 %v6013
    %6261 = vmatprep.subr.bf16.mxu0 %v6012
    %6262 = vmatpush1.bf16.msra.mxu0 %v6011
    %6263 = vmatprep.subr.bf16.mxu0 %v6010
    %6264 = vmatpush1.bf16.msra.mxu0 %v6009
    %6265 = vmatprep.subr.bf16.mxu0 %v6008
    %6266 = vmatpush1.bf16.msra.mxu0 %v6007
    %6267 = vmatprep.subr.bf16.mxu0 %v6006
    %6268 = vmatpush1.bf16.msra.mxu0 %v6005
    %6269 = vmatprep.subr.bf16.mxu0 %v6004
    %6270 = vmatpush1.bf16.msra.mxu0 %v6003
    %6271 = vmatprep.subr.bf16.mxu0 %v6002
    %6272 = vmatpush1.bf16.msra.mxu0 %v6001
    %6273 = vmatprep.subr.bf16.mxu0 %v6032
    %6274 = vmatpush2.bf16.msra.mxu0 %v6031
    %6275 = vmatprep.subr.bf16.mxu0 %v6030
    %6276 = vmatpush2.bf16.msra.mxu0 %v6029
    %6277 = vmatprep.subr.bf16.mxu0 %v6028
    %6278 = vmatpush2.bf16.msra.mxu0 %v6027
    %6279 = vmatprep.subr.bf16.mxu0 %v6026
    %6280 = vmatpush2.bf16.msra.mxu0 %v6025
    %6281 = vmatprep.subr.bf16.mxu0 %v6024
    %6282 = vmatpush2.bf16.msra.mxu0 %v6023
    %6283 = vmatprep.subr.bf16.mxu0 %v6022
    %6284 = vmatpush2.bf16.msra.mxu0 %v6021
    %6285 = vmatprep.subr.bf16.mxu0 %v6020
    %6286 = vmatpush2.bf16.msra.mxu0 %v6019
    %6287 = vmatprep.subr.bf16.mxu0 %v6018
    %6288 = vmatpush2.bf16.msra.mxu0 %v6017
    %6289 = vmatprep.mubr.bf16.mxu0 %v5469
    %6290 = vmatmul.mubr.bf16.gmra.mxu0 %v5468
    %v6291 = vpop.f32.mrf.mxu0
    %v6292 = vadd.f32 %v5610, %v6291
    %v6293 = vpop.f32.mrf.mxu0
    %v6294 = vadd.f32 %v5614, %v6293
    %v6295 = vpop.f32.mrf.mxu0
    %v6296 = vpop.f32.mrf.mxu0
    %6297 = vdwg.mxu0
    %6298 = vmatprep.subr.bf16.mxu0 %v6048
    %6299 = vmatpush1.bf16.msra.mxu0 %v6047
    %6300 = vmatprep.subr.bf16.mxu0 %v6046
    %6301 = vmatpush1.bf16.msra.mxu0 %v6045
    %6302 = vmatprep.subr.bf16.mxu0 %v6044
    %6303 = vmatpush1.bf16.msra.mxu0 %v6043
    %6304 = vmatprep.subr.bf16.mxu0 %v6042
    %6305 = vmatpush1.bf16.msra.mxu0 %v6041
    %6306 = vmatprep.subr.bf16.mxu0 %v6040
    %6307 = vmatpush1.bf16.msra.mxu0 %v6039
    %6308 = vmatprep.subr.bf16.mxu0 %v6038
    %6309 = vmatpush1.bf16.msra.mxu0 %v6037
    %6310 = vmatprep.subr.bf16.mxu0 %v6036
    %6311 = vmatpush1.bf16.msra.mxu0 %v6035
    %6312 = vmatprep.subr.bf16.mxu0 %v6034
    %6313 = vmatpush1.bf16.msra.mxu0 %v6033
    %6314 = vmatprep.subr.bf16.mxu0 %v6064
    %6315 = vmatpush2.bf16.msra.mxu0 %v6063
    %6316 = vmatprep.subr.bf16.mxu0 %v6062
    %6317 = vmatpush2.bf16.msra.mxu0 %v6061
    %6318 = vmatprep.subr.bf16.mxu0 %v6060
    %6319 = vmatpush2.bf16.msra.mxu0 %v6059
    %6320 = vmatprep.subr.bf16.mxu0 %v6058
    %6321 = vmatpush2.bf16.msra.mxu0 %v6057
    %6322 = vmatprep.subr.bf16.mxu0 %v6056
    %6323 = vmatpush2.bf16.msra.mxu0 %v6055
    %6324 = vmatprep.subr.bf16.mxu0 %v6054
    %6325 = vmatpush2.bf16.msra.mxu0 %v6053
    %6326 = vmatprep.subr.bf16.mxu0 %v6052
    %6327 = vmatpush2.bf16.msra.mxu0 %v6051
    %6328 = vmatprep.subr.bf16.mxu0 %v6050
    %6329 = vmatpush2.bf16.msra.mxu0 %v6049
    %6330 = vmatprep.mubr.bf16.mxu0 %v5471
    %6331 = vmatmul.mubr.bf16.gmra.mxu0 %v5470
    %v6332 = vpop.f32.mrf.mxu0
    %v6333 = vadd.f32 %v6292, %v6332
    %v6334 = vpop.f32.mrf.mxu0
    %v6335 = vadd.f32 %v6294, %v6334
    %v6336 = vpop.f32.mrf.mxu0
    %v6337 = vpop.f32.mrf.mxu0
    %6338 = vdwg.mxu0
    %6339 = vmatprep.subr.bf16.mxu0 %v6080
    %6340 = vmatpush1.bf16.msra.mxu0 %v6079
    %6341 = vmatprep.subr.bf16.mxu0 %v6078
    %6342 = vmatpush1.bf16.msra.mxu0 %v6077
    %6343 = vmatprep.subr.bf16.mxu0 %v6076
    %6344 = vmatpush1.bf16.msra.mxu0 %v6075
    %6345 = vmatprep.subr.bf16.mxu0 %v6074
    %6346 = vmatpush1.bf16.msra.mxu0 %v6073
    %6347 = vmatprep.subr.bf16.mxu0 %v6072
    %6348 = vmatpush1.bf16.msra.mxu0 %v6071
    %6349 = vmatprep.subr.bf16.mxu0 %v6070
    %6350 = vmatpush1.bf16.msra.mxu0 %v6069
    %6351 = vmatprep.subr.bf16.mxu0 %v6068
    %6352 = vmatpush1.bf16.msra.mxu0 %v6067
    %6353 = vmatprep.subr.bf16.mxu0 %v6066
    %6354 = vmatpush1.bf16.msra.mxu0 %v6065
    %6355 = vmatprep.subr.bf16.mxu0 %v6096
    %6356 = vmatpush2.bf16.msra.mxu0 %v6095
    %6357 = vmatprep.subr.bf16.mxu0 %v6094
    %6358 = vmatpush2.bf16.msra.mxu0 %v6093
    %6359 = vmatprep.subr.bf16.mxu0 %v6092
    %6360 = vmatpush2.bf16.msra.mxu0 %v6091
    %6361 = vmatprep.subr.bf16.mxu0 %v6090
    %6362 = vmatpush2.bf16.msra.mxu0 %v6089
    %6363 = vmatprep.subr.bf16.mxu0 %v6088
    %6364 = vmatpush2.bf16.msra.mxu0 %v6087
    %6365 = vmatprep.subr.bf16.mxu0 %v6086
    %6366 = vmatpush2.bf16.msra.mxu0 %v6085
    %6367 = vmatprep.subr.bf16.mxu0 %v6084
    %6368 = vmatpush2.bf16.msra.mxu0 %v6083
    %6369 = vmatprep.subr.bf16.mxu0 %v6082
    %6370 = vmatpush2.bf16.msra.mxu0 %v6081
    %6371 = vmatprep.mubr.bf16.mxu0 %v5473
    %6372 = vmatmul.mubr.bf16.gmra.mxu0 %v5472
    %v6373 = vpop.f32.mrf.mxu0
    %v6374 = vadd.f32 %v6333, %v6373
    %v6375 = vpop.f32.mrf.mxu0
    %v6376 = vadd.f32 %v6335, %v6375
    %v6377 = vpop.f32.mrf.mxu0
    %v6378 = vpop.f32.mrf.mxu0
    %6379 = vdwg.mxu0
    %6380 = vmatprep.subr.bf16.mxu0 %v6112
    %6381 = vmatpush1.bf16.msra.mxu0 %v6111
    %6382 = vmatprep.subr.bf16.mxu0 %v6110
    %6383 = vmatpush1.bf16.msra.mxu0 %v6109
    %6384 = vmatprep.subr.bf16.mxu0 %v6108
    %6385 = vmatpush1.bf16.msra.mxu0 %v6107
    %6386 = vmatprep.subr.bf16.mxu0 %v6106
    %6387 = vmatpush1.bf16.msra.mxu0 %v6105
    %6388 = vmatprep.subr.bf16.mxu0 %v6104
    %6389 = vmatpush1.bf16.msra.mxu0 %v6103
    %6390 = vmatprep.subr.bf16.mxu0 %v6102
    %6391 = vmatpush1.bf16.msra.mxu0 %v6101
    %6392 = vmatprep.subr.bf16.mxu0 %v6100
    %6393 = vmatpush1.bf16.msra.mxu0 %v6099
    %6394 = vmatprep.subr.bf16.mxu0 %v6098
    %6395 = vmatpush1.bf16.msra.mxu0 %v6097
    %6396 = vmatprep.subr.bf16.mxu0 %v6128
    %6397 = vmatpush2.bf16.msra.mxu0 %v6127
    %6398 = vmatprep.subr.bf16.mxu0 %v6126
    %6399 = vmatpush2.bf16.msra.mxu0 %v6125
    %6400 = vmatprep.subr.bf16.mxu0 %v6124
    %6401 = vmatpush2.bf16.msra.mxu0 %v6123
    %6402 = vmatprep.subr.bf16.mxu0 %v6122
    %6403 = vmatpush2.bf16.msra.mxu0 %v6121
    %6404 = vmatprep.subr.bf16.mxu0 %v6120
    %6405 = vmatpush2.bf16.msra.mxu0 %v6119
    %6406 = vmatprep.subr.bf16.mxu0 %v6118
    %6407 = vmatpush2.bf16.msra.mxu0 %v6117
    %6408 = vmatprep.subr.bf16.mxu0 %v6116
    %6409 = vmatpush2.bf16.msra.mxu0 %v6115
    %6410 = vmatprep.subr.bf16.mxu0 %v6114
    %6411 = vmatpush2.bf16.msra.mxu0 %v6113
    %6412 = vmatprep.mubr.bf16.mxu0 %v5475
    %6413 = vmatmul.mubr.bf16.gmra.mxu0 %v5474
    %v6414 = vpop.f32.mrf.mxu0
    %v6415 = vadd.f32 %v6374, %v6414
    %v6416 = vpop.f32.mrf.mxu0
    %v6417 = vadd.f32 %v6376, %v6416
    %v6418 = vpop.f32.mrf.mxu0
    %v6419 = vpop.f32.mrf.mxu0
    %6420 = vdwg.mxu0
    %v6421 = vxor.u32 %v6415, 2147483648
    %v6422 = vxor.u32 %v6417, 2147483648
    %v6423 = vmul.f32 %v6421, 1.442695
    %v6424 = vpow.pop %v6423
    %v6425 = vmul.f32 %v6422, 1.442695
    %v6426 = vpow.pop %v6425
    %v6427 = vadd.f32 %v6424, 1.0
    %v6428 = vadd.f32 %v6426, 1.0
    %v6429 = vrcp.pop %v6427
    %v6430 = vmul.f32 1.0, %v6429
    %v6431 = vrcp.pop %v6428
    %v6432 = vmul.f32 1.0, %v6431
    %v6435 = vcombine.low %v6430, %v6432
    %v6437 = vunpack.c.l.s4 1983009808
    %v6438 = vunpack.c.0.s8 %v6437
    %v6439 = vlaneseq
    %v6440 = vshrl.u32 %v6439, 7
    %v6441 = vsub.s32 %v6438, %v6440
    %v6442 = vrot.slane %v6435, %v6441
    %6444 = vst [vmem:[%s8] sm:$0xf] %v6442
    %v6445 = vld [vmem:[%s4 + $0x100] sm:$0xf]
    %v6446 = vld [vmem:[%s4 + $0x104] sm:$0xf]
    %v6447 = vld [vmem:[%s4 + $0x108] sm:$0xf]
    %v6448 = vld [vmem:[%s4 + $0x10c] sm:$0xf]
    %v6449 = vld [vmem:[#allocation8 + $0x6] ss:$0 sm:$0xff]
    %v6454 = vunpack.c.l.b16 %v6445
    %v6455 = vunpack.c.l.b16 %v6446
    %v6456 = vunpack.c.l.b16 %v6447
    %v6457 = vunpack.c.l.b16 %v6448
    %v6458 = vpack.c.b16 %v6455, %v6454
    %v6459 = vpack.c.b16 %v6457, %v6456
    %6462 = vmatprep.subr.bf16.mxu0 0
    %6463 = vmatpush1.bf16.msra.mxu0 0
    %6464 = vmatprep.subr.bf16.mxu0 0
    %6465 = vmatpush1.bf16.msra.mxu0 0
    %6466 = vmatprep.subr.bf16.mxu0 0
    %6467 = vmatpush1.bf16.msra.mxu0 0
    %6468 = vmatprep.subr.bf16.mxu0 0
    %6469 = vmatpush1.bf16.msra.mxu0 0
    %6470 = vmatprep.subr.bf16.mxu0 0
    %6471 = vmatpush1.bf16.msra.mxu0 0
    %6472 = vmatprep.subr.bf16.mxu0 0
    %6473 = vmatpush1.bf16.msra.mxu0 0
    %6474 = vmatprep.subr.bf16.mxu0 0
    %6475 = vmatpush1.bf16.msra.mxu0 %v6459
    %6476 = vmatprep.subr.bf16.mxu0 0
    %6477 = vmatpush1.bf16.msra.mxu0 %v6458
    %6478 = vmatprep.subr.bf16.mxu0 0
    %6479 = vmatpush2.bf16.msra.mxu0 0
    %6480 = vmatprep.subr.bf16.mxu0 0
    %6481 = vmatpush2.bf16.msra.mxu0 0
    %6482 = vmatprep.subr.bf16.mxu0 0
    %6483 = vmatpush2.bf16.msra.mxu0 0
    %6484 = vmatprep.subr.bf16.mxu0 0
    %6485 = vmatpush2.bf16.msra.mxu0 0
    %6486 = vmatprep.subr.bf16.mxu0 0
    %6487 = vmatpush2.bf16.msra.mxu0 0
    %6488 = vmatprep.subr.bf16.mxu0 0
    %6489 = vmatpush2.bf16.msra.mxu0 0
    %6490 = vmatprep.subr.bf16.mxu0 0
    %6491 = vmatpush2.bf16.msra.mxu0 0
    %6492 = vmatprep.subr.bf16.mxu0 0
    %6493 = vmatpush2.bf16.msra.mxu0 0
    %6494 = vmatprep.mubr.bf16.mxu0 0
    %6495 = vmatmul.mubr.bf16.gmra.mxu0 %v3435
    %v6496 = vpop.f32.mrf.mxu0
    %v6497 = vadd.f32 %v6449, %v6496
    %v6498 = vpop.f32.mrf.mxu0
    %v6499 = vpop.f32.mrf.mxu0
    %v6500 = vpop.f32.mrf.mxu0
    %6501 = vdwg.mxu0
    %v6502 = vmax.f32 %v6497, 0.0
    %v6503 = vpack.c.bf16 %v6502, %v6502
    %v6504 = vld [vmem:[%s4 + $0x110] sm:$0xf]
    %v6505 = vld [vmem:[%s4 + $0x114] sm:$0xf]
    %v6506 = vld [vmem:[%s4 + $0x118] sm:$0xf]
    %v6507 = vld [vmem:[%s4 + $0x11c] sm:$0xf]
    %v6508 = vld [vmem:[%s4 + $0x120] sm:$0xf]
    %v6509 = vld [vmem:[%s4 + $0x124] sm:$0xf]
    %v6510 = vld [vmem:[%s4 + $0x128] sm:$0xf]
    %v6511 = vld [vmem:[%s4 + $0x12c] sm:$0xf]
    %v6512 = vld [vmem:[#allocation8 + $0x7] ss:$0 sm:$0xff]
    %v6521 = vunpack.c.l.b16 %v6504
    %v6522 = vunpack.c.l.b16 %v6505
    %v6523 = vunpack.c.l.b16 %v6506
    %v6524 = vunpack.c.l.b16 %v6507
    %v6525 = vunpack.c.l.b16 %v6508
    %v6526 = vunpack.c.l.b16 %v6509
    %v6527 = vunpack.c.l.b16 %v6510
    %v6528 = vunpack.c.l.b16 %v6511
    %v6529 = vpack.c.b16 %v6522, %v6521
    %v6530 = vpack.c.b16 %v6524, %v6523
    %v6531 = vpack.c.b16 %v6526, %v6525
    %v6532 = vpack.c.b16 %v6528, %v6527
    %vm6537 = vcmask 523264
    %v6539 = vsel %vm6537, %v6503, 0
    %6541 = vmatprep.subr.bf16.mxu0 0
    %6542 = vmatpush1.bf16.msra.mxu0 0
    %6543 = vmatprep.subr.bf16.mxu0 0
    %6544 = vmatpush1.bf16.msra.mxu0 0
    %6545 = vmatprep.subr.bf16.mxu0 0
    %6546 = vmatpush1.bf16.msra.mxu0 0
    %6547 = vmatprep.subr.bf16.mxu0 0
    %6548 = vmatpush1.bf16.msra.mxu0 0
    %6549 = vmatprep.subr.bf16.mxu0 0
    %6550 = vmatpush1.bf16.msra.mxu0 %v6532
    %6551 = vmatprep.subr.bf16.mxu0 0
    %6552 = vmatpush1.bf16.msra.mxu0 %v6531
    %6553 = vmatprep.subr.bf16.mxu0 0
    %6554 = vmatpush1.bf16.msra.mxu0 %v6530
    %6555 = vmatprep.subr.bf16.mxu0 0
    %6556 = vmatpush1.bf16.msra.mxu0 %v6529
    %6557 = vmatprep.subr.bf16.mxu0 0
    %6558 = vmatpush2.bf16.msra.mxu0 0
    %6559 = vmatprep.subr.bf16.mxu0 0
    %6560 = vmatpush2.bf16.msra.mxu0 0
    %6561 = vmatprep.subr.bf16.mxu0 0
    %6562 = vmatpush2.bf16.msra.mxu0 0
    %6563 = vmatprep.subr.bf16.mxu0 0
    %6564 = vmatpush2.bf16.msra.mxu0 0
    %6565 = vmatprep.subr.bf16.mxu0 0
    %6566 = vmatpush2.bf16.msra.mxu0 0
    %6567 = vmatprep.subr.bf16.mxu0 0
    %6568 = vmatpush2.bf16.msra.mxu0 0
    %6569 = vmatprep.subr.bf16.mxu0 0
    %6570 = vmatpush2.bf16.msra.mxu0 0
    %6571 = vmatprep.subr.bf16.mxu0 0
    %6572 = vmatpush2.bf16.msra.mxu0 0
    %6573 = vmatprep.mubr.bf16.mxu0 0
    %6574 = vmatmul.mubr.bf16.gmra.mxu0 %v6539
    %v6575 = vpop.f32.mrf.mxu0
    %v6576 = vadd.f32 %v6512, %v6575
    %v6577 = vpop.f32.mrf.mxu0
    %v6578 = vpop.f32.mrf.mxu0
    %v6579 = vpop.f32.mrf.mxu0
    %6580 = vdwg.mxu0
    %v6581 = vmax.f32 %v6576, 0.0
    %v6582 = vpack.c.bf16 %v6581, %v6581
    %v6583 = vld [vmem:[%s4 + $0x130] sm:$0xf]
    %v6584 = vld [vmem:[%s4 + $0x134] sm:$0xf]
    %v6585 = vld [vmem:[%s4 + $0x138] sm:$0xf]
    %v6586 = vld [vmem:[%s4 + $0x13c] sm:$0xf]
    %v6587 = vld [vmem:[%s4 + $0x140] sm:$0xf]
    %v6588 = vld [vmem:[%s4 + $0x144] sm:$0xf]
    %v6589 = vld [vmem:[%s4 + $0x148] sm:$0xf]
    %v6590 = vld [vmem:[%s4 + $0x14c] sm:$0xf]
    %v6591 = vld [vmem:[#allocation8 + $0x40] ss:$0 sm:$0xff]
    %v6600 = vunpack.c.l.b16 %v6583
    %v6601 = vunpack.c.l.b16 %v6584
    %v6602 = vunpack.c.l.b16 %v6585
    %v6603 = vunpack.c.l.b16 %v6586
    %v6604 = vunpack.c.l.b16 %v6587
    %v6605 = vunpack.c.l.b16 %v6588
    %v6606 = vunpack.c.l.b16 %v6589
    %v6607 = vunpack.c.l.b16 %v6590
    %v6608 = vpack.c.b16 %v6601, %v6600
    %v6609 = vpack.c.b16 %v6603, %v6602
    %v6610 = vpack.c.b16 %v6605, %v6604
    %v6611 = vpack.c.b16 %v6607, %v6606
    %v6617 = vsel %vm6537, %v6582, 0
    %6619 = vmatprep.subr.bf16.mxu0 0
    %6620 = vmatpush1.bf16.msra.mxu0 0
    %6621 = vmatprep.subr.bf16.mxu0 0
    %6622 = vmatpush1.bf16.msra.mxu0 0
    %6623 = vmatprep.subr.bf16.mxu0 0
    %6624 = vmatpush1.bf16.msra.mxu0 0
    %6625 = vmatprep.subr.bf16.mxu0 0
    %6626 = vmatpush1.bf16.msra.mxu0 0
    %6627 = vmatprep.subr.bf16.mxu0 0
    %6628 = vmatpush1.bf16.msra.mxu0 %v6611
    %6629 = vmatprep.subr.bf16.mxu0 0
    %6630 = vmatpush1.bf16.msra.mxu0 %v6610
    %6631 = vmatprep.subr.bf16.mxu0 0
    %6632 = vmatpush1.bf16.msra.mxu0 %v6609
    %6633 = vmatprep.subr.bf16.mxu0 0
    %6634 = vmatpush1.bf16.msra.mxu0 %v6608
    %6635 = vmatprep.subr.bf16.mxu0 0
    %6636 = vmatpush2.bf16.msra.mxu0 0
    %6637 = vmatprep.subr.bf16.mxu0 0
    %6638 = vmatpush2.bf16.msra.mxu0 0
    %6639 = vmatprep.subr.bf16.mxu0 0
    %6640 = vmatpush2.bf16.msra.mxu0 0
    %6641 = vmatprep.subr.bf16.mxu0 0
    %6642 = vmatpush2.bf16.msra.mxu0 0
    %6643 = vmatprep.subr.bf16.mxu0 0
    %6644 = vmatpush2.bf16.msra.mxu0 0
    %6645 = vmatprep.subr.bf16.mxu0 0
    %6646 = vmatpush2.bf16.msra.mxu0 0
    %6647 = vmatprep.subr.bf16.mxu0 0
    %6648 = vmatpush2.bf16.msra.mxu0 0
    %6649 = vmatprep.subr.bf16.mxu0 0
    %6650 = vmatpush2.bf16.msra.mxu0 0
    %6651 = vmatprep.mubr.bf16.mxu0 0
    %6652 = vmatmul.mubr.bf16.gmra.mxu0 %v6617
    %v6653 = vpop.f32.mrf.mxu0
    %v6654 = vadd.f32 %v6591, %v6653
    %v6655 = vpop.f32.mrf.mxu0
    %v6656 = vpop.f32.mrf.mxu0
    %v6657 = vpop.f32.mrf.mxu0
    %6658 = vdwg.mxu0
    %vm6659 = vcmask 517120
    %6660 = vst.msk [vmem:[#allocation10] sm:$0x3] %vm6659, %v6654
    // Predicated region
    $region42: #{drmade_forward.1} parent=1 // pred_check
      _
    $region43: #{drmade_forward.1} parent=1 // pred_check_branch
      %6662 = sbr.rel (0) target = $region45
    $region44: #{drmade_forward.1} parent=1 // pred_region
      %s6664 = ssub.s32 32, 32
      %6665 = vsyncadd [#allocation4], %s6664
      %s6667 = sshll.u32 [#allocation10], 4
      %s6668 = int_to_ptr.vmem [resolvable:$true] %s6667
      %6670 = dma.vmem_to_hbm [thread:$0]  %s6668, 32, %s6, [#allocation4]
    $region45: #{drmade_forward.1} parent=1 // pred_fallthru
      _
    // Predicated region
    $region46: #{drmade_forward.1} parent=1 // pred_check
      _
    $region47: #{drmade_forward.1} parent=1 // pred_check_branch
      %6672 = sbr.rel (0) target = $region49
    $region48: #{drmade_forward.1} parent=1 // pred_region
      %s6674 = ssub.s32 32, 32
      %6675 = vsyncadd [#allocation12], %s6674
      %s6677 = sshll.u32 [#allocation11], 4
      %s6678 = int_to_ptr.vmem [resolvable:$true] %s6677
      %6680 = dma.vmem_to_hbm [thread:$0]  %s6678, 32, %s7, [#allocation12]
    $region49: #{drmade_forward.1} parent=1 // pred_fallthru
      _
    // Predicated region
    $region50: #{drmade_forward.1} parent=1 // pred_check
      _
    $region51: #{drmade_forward.1} parent=1 // pred_check_branch
      %6682 = sbr.rel (0) target = $region53
    $region52: #{drmade_forward.1} parent=1 // pred_region
      _
    $region53: #{drmade_forward.1} parent=1 // pred_fallthru
      _
    // Predicated region
    $region54: #{drmade_forward.1} parent=1 // pred_check
      _
    $region55: #{drmade_forward.1} parent=1 // pred_check_branch
      %6684 = sbr.rel (0) target = $region57
    $region56: #{drmade_forward.1} parent=1 // pred_region
      %6685 = dma.done [#allocation4], 32
    $region57: #{drmade_forward.1} parent=1 // pred_fallthru
      _
    // Predicated region
    $region58: #{drmade_forward.1} parent=1 // pred_check
      _
    $region59: #{drmade_forward.1} parent=1 // pred_check_branch
      %6687 = sbr.rel (0) target = $region61
    $region60: #{drmade_forward.1} parent=1 // pred_region
      %6688 = dma.done [#allocation12], 32
    $region61: #{drmade_forward.1} parent=1 // pred_fallthru
      _
    // Predicated region
    $region62: #{drmade_forward.1} parent=1 // pred_check
      _
    $region63: #{drmade_forward.1} parent=1 // pred_check_branch
      %6690 = sbr.rel (0) target = $region65
    $region64: #{drmade_forward.1} parent=1 // pred_region
      _
    $region65: #{drmade_forward.1} parent=1 // pred_fallthru
      _
    %6691 = vsyncpa [#allocation3], 1
    %6692 = vsyncpa [#allocation6], 1
    %6693 = vsyncpa [#allocation9], 1
    %6694 = vsyncpa [#allocation4], 1
    %6695 = vsyncpa [#allocation12], 1

</llo_original>
